<compile_context>
chip_gen: v5e
topology: v5e:2x2
jax: 0.10.0
libtpu: 0.0.40
codegen_flags: <defaults>
</compile_context>

<pallas_src>
import functools

import jax
import jax.numpy as jnp
from jax.experimental import pallas as pl
from jax.experimental.pallas import tpu as pltpu

_SELU_ALPHA = 1.6732632423543772
_SELU_SCALE = 1.0507009873554805

_H = _W = 10            # conv spatial size (stride 1, padding 1 keeps it)
_K = 3                  # kernel size
_PAD = 1
_WP = _W + 2 * _PAD     # 12  padded width
_HP = _H + 2 * _PAD     # 12  padded height
_PS = _HP * _WP         # 144 padded flat spatial per sample
_ZP = _PAD * _WP + _PAD  # 13  offset of output anchor -> next layer's interior
_CW = (_H - 1) * _WP + _W  # 118 anchor columns covering one sample's outputs
_C3 = 32                # conv3 output channels
_F1 = 256               # fc1 width


def _fused_forward_kernel(x_ref, mask_ref,
                          w1_ref, b1_ref, w2_ref, b2_ref, w3_ref, b3_ref,
                          fc1w_ref, fc1b_ref, fc2w_ref, fc2b_ref,
                          out_ref, act_ref, a3_ref, *, n_batch):
    """Whole convolution_d forward; every intermediate stays VMEM-resident.

    Activation layout: rows = channel (sublanes),
    cols = sample * 144 + (i_pad * 12 + j_pad)   (sample-major lanes).
    """
    L = n_batch * _PS
    cwf = L - 2 * _ZP                    # width of the shared anchor window
    mask = mask_ref[...]                 # (1, cwf): 1 on valid output anchors

    def selu(v):
        # exp only ever sees the non-positive branch -> no inf generation
        neg = _SELU_ALPHA * (jnp.exp(jnp.minimum(v, 0.0)) - 1.0)
        return _SELU_SCALE * jnp.where(v > 0.0, v, neg)

    def conv_selu(a_pad, w_ref, b_ref):
        # a_pad: (C_in_pad, L) f32 padded activations (C_in_pad multiple of 8)
        # w_ref: (C_out, 9*C_in_pad) bf16 -> single stacked-K matmul.
        slabs = [a_pad[:, (dh * _WP + dw):(dh * _WP + dw) + cwf]
                 for dh in range(_K) for dw in range(_K)]
        rhs = jnp.concatenate(slabs, axis=0).astype(w_ref.dtype)   # (9*C_in, cwf)
        h = jnp.dot(w_ref[...], rhs, preferred_element_type=jnp.float32)
        h = h + b_ref[...]                                         # (C_out, 1) bcast
        # zero anchors that are padding / cross-sample junk for the next layer
        return selu(h) * mask                                      # (C_out, cwf) f32

    # Zero the padded-activation scratch ONCE; since every layer only writes
    # masked values into the interior window, the padding ring stays zero.
    act_ref[...] = jnp.zeros_like(act_ref)

    h1 = conv_selu(x_ref[...], w1_ref, b1_ref)                     # (8,  cwf)
    act_ref[0:8, _ZP:_ZP + cwf] = h1
    h2 = conv_selu(act_ref[0:8, :], w2_ref, b2_ref)                # (16, cwf)
    act_ref[0:16, _ZP:_ZP + cwf] = h2
    h3 = conv_selu(act_ref[0:16, :], w3_ref, b3_ref)               # (32, cwf)

    # ---- fc1 as ONE matmul (K = 32*118 = 3776) ----
    # Per-sample feature row = lane-concat of the 32 per-channel anchor blocks
    # (static slices + aligned copies only; no reshape/transpose relayouts).
    for s in range(n_batch):
        base = s * _PS
        row = jnp.concatenate(
            [h3[c:c + 1, base:base + _CW] for c in range(_C3)], axis=1)  # (1, 3776)
        a3_ref[s:s + 1, :] = row
    a3 = a3_ref[...].astype(fc1w_ref.dtype)                        # (n, 3776) bf16

    hidden = jnp.dot(a3, fc1w_ref[...], preferred_element_type=jnp.float32)
    hidden = hidden + fc1b_ref[...]                                # (n, 256)
    hidden = jnp.where(hidden > 0.0, hidden, 0.2 * hidden)         # LeakyReLU(0.2)

    # ---- fc2 (256 -> 1): VPU multiply + lane reduction, sigmoid in f32 ----
    logits = jnp.sum(hidden * fc2w_ref[...], axis=1, keepdims=True) + fc2b_ref[...]
    out_ref[...] = 1.0 / (1.0 + jnp.exp(-logits))                  # (n, 1)


def prepare_input(x):
    """(N, C, 10, 10) -> (C_pad, N*144): channels on sublanes (zero-padded to a
    multiple of 8), sample-major padded flat spatial on lanes."""
    n, c = x.shape[0], x.shape[1]
    c_pad = ((c + 7) // 8) * 8
    xp = jnp.pad(x, ((0, 0), (0, c_pad - c), (_PAD, _PAD), (_PAD, _PAD)))
    return xp.transpose(1, 0, 2, 3).reshape(c_pad, n * _PS).astype(jnp.float32)


def prepare_params(params, n_batch):
    """One-time re-layout of the torch-style parameters for the fused kernel."""

    def conv_prep(w, b):
        c_out, c_in = w.shape[0], w.shape[1]
        c_in_pad = ((c_in + 7) // 8) * 8
        wp = jnp.pad(w, ((0, 0), (0, c_in_pad - c_in), (0, 0), (0, 0)))
        # (C_out, C_in, 3, 3) -> (C_out, (dh*3+dw)*C_in_pad + c_in), bf16
        w_flat = jnp.transpose(wp, (0, 2, 3, 1)).reshape(
            c_out, _K * _K * c_in_pad).astype(jnp.bfloat16)
        return w_flat, b.reshape(c_out, 1).astype(jnp.float32)

    w1, b1 = conv_prep(params["w1"], params["b1"])
    w2, b2 = conv_prep(params["w2"], params["b2"])
    w3, b3 = conv_prep(params["w3"], params["b3"])

    # fc1 weight (256, 3200) [f, c*100 + 10*i + j] -> (32*118, 256)
    # row index = c*118 + (i*12 + j); positions with j >= 10 are zero.
    wr = params["fc1_w"].reshape(_F1, _C3, _H, _W)
    wr = jnp.pad(wr, ((0, 0), (0, 0), (0, 0), (0, _WP - _W)))     # j: 10 -> 12
    wr = wr.reshape(_F1, _C3, _H * _WP)[:, :, :_CW]               # (256, 32, 118)
    fc1_w = wr.reshape(_F1, _C3 * _CW).T.astype(jnp.bfloat16)     # (3776, 256)

    # mask over the shared anchor window: valid iff i_pad < 10 and j_pad < 10
    cwf = n_batch * _PS - 2 * _ZP
    a = jnp.arange(cwf) % _PS
    mask = (((a % _WP) < _W) & ((a // _WP) < _H)).astype(jnp.float32).reshape(1, cwf)

    return {
        "w1": w1, "b1": b1, "w2": w2, "b2": b2, "w3": w3, "b3": b3,
        "fc1_w": fc1_w,
        "fc1_b": params["fc1_b"].reshape(1, _F1).astype(jnp.float32),
        "fc2_w": params["fc2_w"].reshape(1, _F1).astype(jnp.float32),
        "fc2_b": params["fc2_b"].reshape(1, 1).astype(jnp.float32),
        "mask": mask,
    }


def convolution_d_forward(x, prep):
    """Fused forward: one grid-less pallas_call, everything VMEM-resident."""
    n_batch = x.shape[0]
    L = n_batch * _PS
    cwf = L - 2 * _ZP
    a0 = prepare_input(x)              # tiny one-off layout prep (few KB)

    flops = (2 * cwf * (8 * 72 + 16 * 72 + 32 * 144)      # 3 convs
             + 2 * n_batch * (_C3 * _CW) * _F1            # fc1
             + 2 * n_batch * _F1)                         # fc2
    bytes_accessed = (a0.size * 4 + prep["fc1_w"].size * 2
                      + sum(prep[k].size * 2 for k in ("w1", "w2", "w3"))
                      + 8 * 1024)                         # biases / mask / out
    transcendentals = cwf * (8 + 16 + 32) + n_batch

    kernel = functools.partial(_fused_forward_kernel, n_batch=n_batch)
    return pl.pallas_call(
        kernel,
        out_shape=jax.ShapeDtypeStruct((n_batch, 1), jnp.float32),
        scratch_shapes=[
            pltpu.VMEM((16, L), jnp.float32),             # padded activations
            pltpu.VMEM((n_batch, _C3 * _CW), jnp.float32),  # fc1 input rows
        ],
        cost_estimate=pl.CostEstimate(flops=int(flops),
                                      transcendentals=int(transcendentals),
                                      bytes_accessed=int(bytes_accessed)),
    )(a0, prep["mask"], prep["w1"], prep["b1"], prep["w2"], prep["b2"],
      prep["w3"], prep["b3"], prep["fc1_w"], prep["fc1_b"],
      prep["fc2_w"], prep["fc2_b"])


def init_params(key, input_size, k):
    keys = jax.random.split(key, 10)

    def u(kk, shape, fan_in):
        bound = 1.0 / jnp.sqrt(fan_in)
        return jax.random.uniform(kk, shape, jnp.float32, -bound, bound)

    return {
        "w1": u(keys[0], (8, input_size, k, k), input_size * k * k),
        "b1": u(keys[1], (8,), input_size * k * k),
        "w2": u(keys[2], (16, 8, k, k), 8 * k * k),
        "b2": u(keys[3], (16,), 8 * k * k),
        "w3": u(keys[4], (32, 16, k, k), 16 * k * k),
        "b3": u(keys[5], (32,), 16 * k * k),
        "fc1_w": u(keys[6], (256, 3200), 3200),
        "fc1_b": u(keys[7], (256,), 3200),
        "fc2_w": u(keys[8], (1, 256), 256),
        "fc2_b": u(keys[9], (1,), 256),
    }


def _reference_forward(x, params):
    """Plain-JAX reference (f32) with the original torch-style parameters."""
    def conv(h, w, b):
        hp = jnp.pad(h, ((0, 0), (0, 0), (_PAD, _PAD), (_PAD, _PAD)))
        pats = [hp[:, :, dh:dh + _H, dw:dw + _W]
                for dh in range(_K) for dw in range(_K)]
        pats = jnp.stack(pats, axis=2)                       # (N, C, 9, H, W)
        out = jnp.einsum("nckij,ock->noij", pats,
                         w.reshape(w.shape[0], w.shape[1], _K * _K))
        return out + b[None, :, None, None]

    def selu(v):
        return _SELU_SCALE * jnp.where(
            v > 0, v, _SELU_ALPHA * (jnp.exp(jnp.minimum(v, 0.0)) - 1.0))

    h = selu(conv(x, params["w1"], params["b1"]))
    h = selu(conv(h, params["w2"], params["b2"]))
    h = selu(conv(h, params["w3"], params["b3"]))
    h = h.reshape(x.shape[0], -1)
    h = h @ params["fc1_w"].T + params["fc1_b"]
    h = jnp.where(h > 0, h, 0.2 * h)
    h = h @ params["fc2_w"].T + params["fc2_b"]
    return 1.0 / (1.0 + jnp.exp(-h))


if __name__ == "__main__":
    # TODO(synk): nn.Dropout layers are identity at inference and are not modeled.
    key = jax.random.PRNGKey(0)
    k_x, k_p = jax.random.split(key)

    input_size, kernel_size, stride, padding = 3, 3, 1, 1
    batch = 2                      # 32 * 10 * 10 = 3200 matches fc1 input

    x = jax.random.normal(k_x, (batch, input_size, _H, _W), jnp.float32)
    params = init_params(k_p, input_size, kernel_size)
    prep = prepare_params(params, batch)        # one-time weight re-layout

    fwd = jax.jit(convolution_d_forward)
    out = jax.block_until_ready(fwd(x, prep))

    assert out.shape == (batch, 1), out.shape
    assert bool(jnp.all((out >= 0.0) & (out <= 1.0)))

    # Correctness check against a plain-JAX f32 reference (bf16 matmul
    # operands in the kernel -> loose tolerance).
    ref = _reference_forward(x, params)
    max_err = float(jnp.max(jnp.abs(out - ref)))
    assert max_err < 5e-2, max_err

    print("KERNEL_OK")
</pallas_src>

<mosaic_0001>
module attributes {stable_mosaic.version = 11 : i64} {
  func.func @_fused_forward_kernel(%arg0: memref<8x288xf32, #tpu.memory_space<vmem>>, %arg1: memref<1x262xf32, #tpu.memory_space<vmem>>, %arg2: memref<8x72xbf16, #tpu.memory_space<vmem>>, %arg3: memref<8x1xf32, #tpu.memory_space<vmem>>, %arg4: memref<16x72xbf16, #tpu.memory_space<vmem>>, %arg5: memref<16x1xf32, #tpu.memory_space<vmem>>, %arg6: memref<32x144xbf16, #tpu.memory_space<vmem>>, %arg7: memref<32x1xf32, #tpu.memory_space<vmem>>, %arg8: memref<3776x256xbf16, #tpu.memory_space<vmem>>, %arg9: memref<1x256xf32, #tpu.memory_space<vmem>>, %arg10: memref<1x256xf32, #tpu.memory_space<vmem>>, %arg11: memref<1x1xf32, #tpu.memory_space<vmem>>, %arg12: memref<2x1xf32, #tpu.memory_space<vmem>>, %arg13: memref<16x288xf32, #tpu.memory_space<vmem>>, %arg14: memref<2x3776xf32, #tpu.memory_space<vmem>>) attributes {dimension_semantics = [], scalar_prefetch = 0 : i64, scratch_operands = 2 : i64, tpu.core_type = #tpu.core_type<tc>} {
    %c0 = arith.constant 0 : index
    %c0_0 = arith.constant 0 : index
    %0 = vector.load %arg1[%c0, %c0_0] : memref<1x262xf32, #tpu.memory_space<vmem>>, vector<1x262xf32>
    %cst = arith.constant 0.000000e+00 : f32
    %1 = vector.broadcast %cst : f32 to vector<16x288xf32>
    %c0_1 = arith.constant 0 : index
    %c0_2 = arith.constant 0 : index
    %2 = vector.load %arg13[%c0_1, %c0_2] : memref<16x288xf32, #tpu.memory_space<vmem>>, vector<16x288xf32>
    tpu.vector_store %arg13[%c0_1, %c0_2], %1 {strides = array<i32>} : memref<16x288xf32, #tpu.memory_space<vmem>>, vector<16x288xf32>,
    %c0_3 = arith.constant 0 : index
    %c0_4 = arith.constant 0 : index
    %3 = vector.load %arg0[%c0_3, %c0_4] : memref<8x288xf32, #tpu.memory_space<vmem>>, vector<8x288xf32>
    %4 = vector.extract_strided_slice %3 {offsets = [0, 0], sizes = [8, 262], strides = [1, 1]} : vector<8x288xf32> to vector<8x262xf32>
    %5 = vector.extract_strided_slice %3 {offsets = [0, 1], sizes = [8, 262], strides = [1, 1]} : vector<8x288xf32> to vector<8x262xf32>
    %6 = vector.extract_strided_slice %3 {offsets = [0, 2], sizes = [8, 262], strides = [1, 1]} : vector<8x288xf32> to vector<8x262xf32>
    %7 = vector.extract_strided_slice %3 {offsets = [0, 12], sizes = [8, 262], strides = [1, 1]} : vector<8x288xf32> to vector<8x262xf32>
    %8 = vector.extract_strided_slice %3 {offsets = [0, 13], sizes = [8, 262], strides = [1, 1]} : vector<8x288xf32> to vector<8x262xf32>
    %9 = vector.extract_strided_slice %3 {offsets = [0, 14], sizes = [8, 262], strides = [1, 1]} : vector<8x288xf32> to vector<8x262xf32>
    %10 = vector.extract_strided_slice %3 {offsets = [0, 24], sizes = [8, 262], strides = [1, 1]} : vector<8x288xf32> to vector<8x262xf32>
    %11 = vector.extract_strided_slice %3 {offsets = [0, 25], sizes = [8, 262], strides = [1, 1]} : vector<8x288xf32> to vector<8x262xf32>
    %12 = vector.extract_strided_slice %3 {offsets = [0, 26], sizes = [8, 262], strides = [1, 1]} : vector<8x288xf32> to vector<8x262xf32>
    %13 = tpu.concatenate %4, %5, %6, %7, %8, %9, %10, %11, %12 in 0 : vector<8x262xf32>, vector<8x262xf32>, vector<8x262xf32>, vector<8x262xf32>, vector<8x262xf32>, vector<8x262xf32>, vector<8x262xf32>, vector<8x262xf32>, vector<8x262xf32> -> vector<72x262xf32>
    %14 = arith.truncf %13 : vector<72x262xf32> to vector<72x262xbf16>
    %c0_5 = arith.constant 0 : index
    %c0_6 = arith.constant 0 : index
    %15 = vector.load %arg2[%c0_5, %c0_6] : memref<8x72xbf16, #tpu.memory_space<vmem>>, vector<8x72xbf16>
    %cst_7 = arith.constant dense<0.000000e+00> : vector<8x262xf32>
    %16 = tpu.matmul %15, %14, %cst_7 {dimension_numbers = #tpu.dot_dimension_numbers<[1], [0], [0], [1], [0, 0, 1, 1], [], []>} : vector<8x72xbf16>, vector<72x262xbf16>, vector<8x262xf32> -> vector<8x262xf32>
    %c0_8 = arith.constant 0 : index
    %c0_9 = arith.constant 0 : index
    %17 = vector.load %arg3[%c0_8, %c0_9] : memref<8x1xf32, #tpu.memory_space<vmem>>, vector<8x1xf32>
    %18 = vector.broadcast %17 : vector<8x1xf32> to vector<8x262xf32>
    %19 = arith.addf %16, %18 : vector<8x262xf32>
    %cst_10 = arith.constant 0.000000e+00 : f32
    %20 = vector.broadcast %cst_10 : f32 to vector<8x262xf32>
    %21 = arith.minimumf %19, %20 : vector<8x262xf32>
    %22 = math.exp %21 : vector<8x262xf32>
    %cst_11 = arith.constant 1.000000e+00 : f32
    %23 = vector.broadcast %cst_11 : f32 to vector<8x262xf32>
    %24 = arith.subf %22, %23 : vector<8x262xf32>
    %cst_12 = arith.constant 1.67326319 : f32
    %25 = vector.broadcast %cst_12 : f32 to vector<8x262xf32>
    %26 = arith.mulf %25, %24 : vector<8x262xf32>
    %cst_13 = arith.constant 0.000000e+00 : f32
    %27 = vector.broadcast %cst_13 : f32 to vector<8x262xf32>
    %28 = arith.cmpf ogt, %19, %27 : vector<8x262xf32>
    %29 = arith.select %28, %19, %26 : vector<8x262xi1>, vector<8x262xf32>
    %cst_14 = arith.constant 1.05070102 : f32
    %30 = vector.broadcast %cst_14 : f32 to vector<8x262xf32>
    %31 = arith.mulf %30, %29 : vector<8x262xf32>
    %32 = vector.broadcast %0 : vector<1x262xf32> to vector<8x262xf32>
    %33 = arith.mulf %31, %32 : vector<8x262xf32>
    %c0_15 = arith.constant 0 : index
    %c13 = arith.constant 13 : index
    %34 = vector.load %arg13[%c0_15, %c13] : memref<16x288xf32, #tpu.memory_space<vmem>>, vector<8x262xf32>
    tpu.vector_store %arg13[%c0_15, %c13], %33 {strides = array<i32>} : memref<16x288xf32, #tpu.memory_space<vmem>>, vector<8x262xf32>,
    %c0_16 = arith.constant 0 : index
    %c0_17 = arith.constant 0 : index
    %35 = vector.load %arg13[%c0_16, %c0_17] : memref<16x288xf32, #tpu.memory_space<vmem>>, vector<8x288xf32>
    %36 = vector.extract_strided_slice %35 {offsets = [0, 0], sizes = [8, 262], strides = [1, 1]} : vector<8x288xf32> to vector<8x262xf32>
    %37 = vector.extract_strided_slice %35 {offsets = [0, 1], sizes = [8, 262], strides = [1, 1]} : vector<8x288xf32> to vector<8x262xf32>
    %38 = vector.extract_strided_slice %35 {offsets = [0, 2], sizes = [8, 262], strides = [1, 1]} : vector<8x288xf32> to vector<8x262xf32>
    %39 = vector.extract_strided_slice %35 {offsets = [0, 12], sizes = [8, 262], strides = [1, 1]} : vector<8x288xf32> to vector<8x262xf32>
    %40 = vector.extract_strided_slice %35 {offsets = [0, 13], sizes = [8, 262], strides = [1, 1]} : vector<8x288xf32> to vector<8x262xf32>
    %41 = vector.extract_strided_slice %35 {offsets = [0, 14], sizes = [8, 262], strides = [1, 1]} : vector<8x288xf32> to vector<8x262xf32>
    %42 = vector.extract_strided_slice %35 {offsets = [0, 24], sizes = [8, 262], strides = [1, 1]} : vector<8x288xf32> to vector<8x262xf32>
    %43 = vector.extract_strided_slice %35 {offsets = [0, 25], sizes = [8, 262], strides = [1, 1]} : vector<8x288xf32> to vector<8x262xf32>
    %44 = vector.extract_strided_slice %35 {offsets = [0, 26], sizes = [8, 262], strides = [1, 1]} : vector<8x288xf32> to vector<8x262xf32>
    %45 = tpu.concatenate %36, %37, %38, %39, %40, %41, %42, %43, %44 in 0 : vector<8x262xf32>, vector<8x262xf32>, vector<8x262xf32>, vector<8x262xf32>, vector<8x262xf32>, vector<8x262xf32>, vector<8x262xf32>, vector<8x262xf32>, vector<8x262xf32> -> vector<72x262xf32>
    %46 = arith.truncf %45 : vector<72x262xf32> to vector<72x262xbf16>
    %c0_18 = arith.constant 0 : index
    %c0_19 = arith.constant 0 : index
    %47 = vector.load %arg4[%c0_18, %c0_19] : memref<16x72xbf16, #tpu.memory_space<vmem>>, vector<16x72xbf16>
    %cst_20 = arith.constant dense<0.000000e+00> : vector<16x262xf32>
    %48 = tpu.matmul %47, %46, %cst_20 {dimension_numbers = #tpu.dot_dimension_numbers<[1], [0], [0], [1], [0, 0, 1, 1], [], []>} : vector<16x72xbf16>, vector<72x262xbf16>, vector<16x262xf32> -> vector<16x262xf32>
    %c0_21 = arith.constant 0 : index
    %c0_22 = arith.constant 0 : index
    %49 = vector.load %arg5[%c0_21, %c0_22] : memref<16x1xf32, #tpu.memory_space<vmem>>, vector<16x1xf32>
    %50 = vector.broadcast %49 : vector<16x1xf32> to vector<16x262xf32>
    %51 = arith.addf %48, %50 : vector<16x262xf32>
    %cst_23 = arith.constant 0.000000e+00 : f32
    %52 = vector.broadcast %cst_23 : f32 to vector<16x262xf32>
    %53 = arith.minimumf %51, %52 : vector<16x262xf32>
    %54 = math.exp %53 : vector<16x262xf32>
    %cst_24 = arith.constant 1.000000e+00 : f32
    %55 = vector.broadcast %cst_24 : f32 to vector<16x262xf32>
    %56 = arith.subf %54, %55 : vector<16x262xf32>
    %cst_25 = arith.constant 1.67326319 : f32
    %57 = vector.broadcast %cst_25 : f32 to vector<16x262xf32>
    %58 = arith.mulf %57, %56 : vector<16x262xf32>
    %cst_26 = arith.constant 0.000000e+00 : f32
    %59 = vector.broadcast %cst_26 : f32 to vector<16x262xf32>
    %60 = arith.cmpf ogt, %51, %59 : vector<16x262xf32>
    %61 = arith.select %60, %51, %58 : vector<16x262xi1>, vector<16x262xf32>
    %cst_27 = arith.constant 1.05070102 : f32
    %62 = vector.broadcast %cst_27 : f32 to vector<16x262xf32>
    %63 = arith.mulf %62, %61 : vector<16x262xf32>
    %64 = vector.broadcast %0 : vector<1x262xf32> to vector<16x262xf32>
    %65 = arith.mulf %63, %64 : vector<16x262xf32>
    %c0_28 = arith.constant 0 : index
    %c13_29 = arith.constant 13 : index
    %66 = vector.load %arg13[%c0_28, %c13_29] : memref<16x288xf32, #tpu.memory_space<vmem>>, vector<16x262xf32>
    tpu.vector_store %arg13[%c0_28, %c13_29], %65 {strides = array<i32>} : memref<16x288xf32, #tpu.memory_space<vmem>>, vector<16x262xf32>,
    %c0_30 = arith.constant 0 : index
    %c0_31 = arith.constant 0 : index
    %67 = vector.load %arg13[%c0_30, %c0_31] : memref<16x288xf32, #tpu.memory_space<vmem>>, vector<16x288xf32>
    %68 = vector.extract_strided_slice %67 {offsets = [0, 0], sizes = [16, 262], strides = [1, 1]} : vector<16x288xf32> to vector<16x262xf32>
    %69 = vector.extract_strided_slice %67 {offsets = [0, 1], sizes = [16, 262], strides = [1, 1]} : vector<16x288xf32> to vector<16x262xf32>
    %70 = vector.extract_strided_slice %67 {offsets = [0, 2], sizes = [16, 262], strides = [1, 1]} : vector<16x288xf32> to vector<16x262xf32>
    %71 = vector.extract_strided_slice %67 {offsets = [0, 12], sizes = [16, 262], strides = [1, 1]} : vector<16x288xf32> to vector<16x262xf32>
    %72 = vector.extract_strided_slice %67 {offsets = [0, 13], sizes = [16, 262], strides = [1, 1]} : vector<16x288xf32> to vector<16x262xf32>
    %73 = vector.extract_strided_slice %67 {offsets = [0, 14], sizes = [16, 262], strides = [1, 1]} : vector<16x288xf32> to vector<16x262xf32>
    %74 = vector.extract_strided_slice %67 {offsets = [0, 24], sizes = [16, 262], strides = [1, 1]} : vector<16x288xf32> to vector<16x262xf32>
    %75 = vector.extract_strided_slice %67 {offsets = [0, 25], sizes = [16, 262], strides = [1, 1]} : vector<16x288xf32> to vector<16x262xf32>
    %76 = vector.extract_strided_slice %67 {offsets = [0, 26], sizes = [16, 262], strides = [1, 1]} : vector<16x288xf32> to vector<16x262xf32>
    %77 = tpu.concatenate %68, %69, %70, %71, %72, %73, %74, %75, %76 in 0 : vector<16x262xf32>, vector<16x262xf32>, vector<16x262xf32>, vector<16x262xf32>, vector<16x262xf32>, vector<16x262xf32>, vector<16x262xf32>, vector<16x262xf32>, vector<16x262xf32> -> vector<144x262xf32>
    %78 = arith.truncf %77 : vector<144x262xf32> to vector<144x262xbf16>
    %c0_32 = arith.constant 0 : index
    %c0_33 = arith.constant 0 : index
    %79 = vector.load %arg6[%c0_32, %c0_33] : memref<32x144xbf16, #tpu.memory_space<vmem>>, vector<32x144xbf16>
    %cst_34 = arith.constant dense<0.000000e+00> : vector<32x262xf32>
    %80 = tpu.matmul %79, %78, %cst_34 {dimension_numbers = #tpu.dot_dimension_numbers<[1], [0], [0], [1], [0, 0, 1, 1], [], []>} : vector<32x144xbf16>, vector<144x262xbf16>, vector<32x262xf32> -> vector<32x262xf32>
    %c0_35 = arith.constant 0 : index
    %c0_36 = arith.constant 0 : index
    %81 = vector.load %arg7[%c0_35, %c0_36] : memref<32x1xf32, #tpu.memory_space<vmem>>, vector<32x1xf32>
    %82 = vector.broadcast %81 : vector<32x1xf32> to vector<32x262xf32>
    %83 = arith.addf %80, %82 : vector<32x262xf32>
    %cst_37 = arith.constant 0.000000e+00 : f32
    %84 = vector.broadcast %cst_37 : f32 to vector<32x262xf32>
    %85 = arith.minimumf %83, %84 : vector<32x262xf32>
    %86 = math.exp %85 : vector<32x262xf32>
    %cst_38 = arith.constant 1.000000e+00 : f32
    %87 = vector.broadcast %cst_38 : f32 to vector<32x262xf32>
    %88 = arith.subf %86, %87 : vector<32x262xf32>
    %cst_39 = arith.constant 1.67326319 : f32
    %89 = vector.broadcast %cst_39 : f32 to vector<32x262xf32>
    %90 = arith.mulf %89, %88 : vector<32x262xf32>
    %cst_40 = arith.constant 0.000000e+00 : f32
    %91 = vector.broadcast %cst_40 : f32 to vector<32x262xf32>
    %92 = arith.cmpf ogt, %83, %91 : vector<32x262xf32>
    %93 = arith.select %92, %83, %90 : vector<32x262xi1>, vector<32x262xf32>
    %cst_41 = arith.constant 1.05070102 : f32
    %94 = vector.broadcast %cst_41 : f32 to vector<32x262xf32>
    %95 = arith.mulf %94, %93 : vector<32x262xf32>
    %96 = vector.broadcast %0 : vector<1x262xf32> to vector<32x262xf32>
    %97 = arith.mulf %95, %96 : vector<32x262xf32>
    %98 = vector.extract_strided_slice %97 {offsets = [0, 0], sizes = [1, 118], strides = [1, 1]} : vector<32x262xf32> to vector<1x118xf32>
    %99 = vector.extract_strided_slice %97 {offsets = [1, 0], sizes = [1, 118], strides = [1, 1]} : vector<32x262xf32> to vector<1x118xf32>
    %100 = vector.extract_strided_slice %97 {offsets = [2, 0], sizes = [1, 118], strides = [1, 1]} : vector<32x262xf32> to vector<1x118xf32>
    %101 = vector.extract_strided_slice %97 {offsets = [3, 0], sizes = [1, 118], strides = [1, 1]} : vector<32x262xf32> to vector<1x118xf32>
    %102 = vector.extract_strided_slice %97 {offsets = [4, 0], sizes = [1, 118], strides = [1, 1]} : vector<32x262xf32> to vector<1x118xf32>
    %103 = vector.extract_strided_slice %97 {offsets = [5, 0], sizes = [1, 118], strides = [1, 1]} : vector<32x262xf32> to vector<1x118xf32>
    %104 = vector.extract_strided_slice %97 {offsets = [6, 0], sizes = [1, 118], strides = [1, 1]} : vector<32x262xf32> to vector<1x118xf32>
    %105 = vector.extract_strided_slice %97 {offsets = [7, 0], sizes = [1, 118], strides = [1, 1]} : vector<32x262xf32> to vector<1x118xf32>
    %106 = vector.extract_strided_slice %97 {offsets = [8, 0], sizes = [1, 118], strides = [1, 1]} : vector<32x262xf32> to vector<1x118xf32>
    %107 = vector.extract_strided_slice %97 {offsets = [9, 0], sizes = [1, 118], strides = [1, 1]} : vector<32x262xf32> to vector<1x118xf32>
    %108 = vector.extract_strided_slice %97 {offsets = [10, 0], sizes = [1, 118], strides = [1, 1]} : vector<32x262xf32> to vector<1x118xf32>
    %109 = vector.extract_strided_slice %97 {offsets = [11, 0], sizes = [1, 118], strides = [1, 1]} : vector<32x262xf32> to vector<1x118xf32>
    %110 = vector.extract_strided_slice %97 {offsets = [12, 0], sizes = [1, 118], strides = [1, 1]} : vector<32x262xf32> to vector<1x118xf32>
    %111 = vector.extract_strided_slice %97 {offsets = [13, 0], sizes = [1, 118], strides = [1, 1]} : vector<32x262xf32> to vector<1x118xf32>
    %112 = vector.extract_strided_slice %97 {offsets = [14, 0], sizes = [1, 118], strides = [1, 1]} : vector<32x262xf32> to vector<1x118xf32>
    %113 = vector.extract_strided_slice %97 {offsets = [15, 0], sizes = [1, 118], strides = [1, 1]} : vector<32x262xf32> to vector<1x118xf32>
    %114 = vector.extract_strided_slice %97 {offsets = [16, 0], sizes = [1, 118], strides = [1, 1]} : vector<32x262xf32> to vector<1x118xf32>
    %115 = vector.extract_strided_slice %97 {offsets = [17, 0], sizes = [1, 118], strides = [1, 1]} : vector<32x262xf32> to vector<1x118xf32>
    %116 = vector.extract_strided_slice %97 {offsets = [18, 0], sizes = [1, 118], strides = [1, 1]} : vector<32x262xf32> to vector<1x118xf32>
    %117 = vector.extract_strided_slice %97 {offsets = [19, 0], sizes = [1, 118], strides = [1, 1]} : vector<32x262xf32> to vector<1x118xf32>
    %118 = vector.extract_strided_slice %97 {offsets = [20, 0], sizes = [1, 118], strides = [1, 1]} : vector<32x262xf32> to vector<1x118xf32>
    %119 = vector.extract_strided_slice %97 {offsets = [21, 0], sizes = [1, 118], strides = [1, 1]} : vector<32x262xf32> to vector<1x118xf32>
    %120 = vector.extract_strided_slice %97 {offsets = [22, 0], sizes = [1, 118], strides = [1, 1]} : vector<32x262xf32> to vector<1x118xf32>
    %121 = vector.extract_strided_slice %97 {offsets = [23, 0], sizes = [1, 118], strides = [1, 1]} : vector<32x262xf32> to vector<1x118xf32>
    %122 = vector.extract_strided_slice %97 {offsets = [24, 0], sizes = [1, 118], strides = [1, 1]} : vector<32x262xf32> to vector<1x118xf32>
    %123 = vector.extract_strided_slice %97 {offsets = [25, 0], sizes = [1, 118], strides = [1, 1]} : vector<32x262xf32> to vector<1x118xf32>
    %124 = vector.extract_strided_slice %97 {offsets = [26, 0], sizes = [1, 118], strides = [1, 1]} : vector<32x262xf32> to vector<1x118xf32>
    %125 = vector.extract_strided_slice %97 {offsets = [27, 0], sizes = [1, 118], strides = [1, 1]} : vector<32x262xf32> to vector<1x118xf32>
    %126 = vector.extract_strided_slice %97 {offsets = [28, 0], sizes = [1, 118], strides = [1, 1]} : vector<32x262xf32> to vector<1x118xf32>
    %127 = vector.extract_strided_slice %97 {offsets = [29, 0], sizes = [1, 118], strides = [1, 1]} : vector<32x262xf32> to vector<1x118xf32>
    %128 = vector.extract_strided_slice %97 {offsets = [30, 0], sizes = [1, 118], strides = [1, 1]} : vector<32x262xf32> to vector<1x118xf32>
    %129 = vector.extract_strided_slice %97 {offsets = [31, 0], sizes = [1, 118], strides = [1, 1]} : vector<32x262xf32> to vector<1x118xf32>
    %130 = tpu.concatenate %98, %99, %100, %101, %102, %103, %104, %105, %106, %107, %108, %109, %110, %111, %112, %113 in 1 : vector<1x118xf32>, vector<1x118xf32>, vector<1x118xf32>, vector<1x118xf32>, vector<1x118xf32>, vector<1x118xf32>, vector<1x118xf32>, vector<1x118xf32>, vector<1x118xf32>, vector<1x118xf32>, vector<1x118xf32>, vector<1x118xf32>, vector<1x118xf32>, vector<1x118xf32>, vector<1x118xf32>, vector<1x118xf32> -> vector<1x1888xf32>
    %131 = tpu.concatenate %114, %115, %116, %117, %118, %119, %120, %121, %122, %123, %124, %125, %126, %127, %128, %129 in 1 : vector<1x118xf32>, vector<1x118xf32>, vector<1x118xf32>, vector<1x118xf32>, vector<1x118xf32>, vector<1x118xf32>, vector<1x118xf32>, vector<1x118xf32>, vector<1x118xf32>, vector<1x118xf32>, vector<1x118xf32>, vector<1x118xf32>, vector<1x118xf32>, vector<1x118xf32>, vector<1x118xf32>, vector<1x118xf32> -> vector<1x1888xf32>
    %132 = tpu.concatenate %130, %131 in 1 : vector<1x1888xf32>, vector<1x1888xf32> -> vector<1x3776xf32>
    %c0_42 = arith.constant 0 : index
    %c0_43 = arith.constant 0 : index
    %133 = vector.load %arg14[%c0_42, %c0_43] : memref<2x3776xf32, #tpu.memory_space<vmem>>, vector<1x3776xf32>
    tpu.vector_store %arg14[%c0_42, %c0_43], %132 {strides = array<i32>} : memref<2x3776xf32, #tpu.memory_space<vmem>>, vector<1x3776xf32>,
    %134 = vector.extract_strided_slice %97 {offsets = [0, 144], sizes = [1, 118], strides = [1, 1]} : vector<32x262xf32> to vector<1x118xf32>
    %135 = vector.extract_strided_slice %97 {offsets = [1, 144], sizes = [1, 118], strides = [1, 1]} : vector<32x262xf32> to vector<1x118xf32>
    %136 = vector.extract_strided_slice %97 {offsets = [2, 144], sizes = [1, 118], strides = [1, 1]} : vector<32x262xf32> to vector<1x118xf32>
    %137 = vector.extract_strided_slice %97 {offsets = [3, 144], sizes = [1, 118], strides = [1, 1]} : vector<32x262xf32> to vector<1x118xf32>
    %138 = vector.extract_strided_slice %97 {offsets = [4, 144], sizes = [1, 118], strides = [1, 1]} : vector<32x262xf32> to vector<1x118xf32>
    %139 = vector.extract_strided_slice %97 {offsets = [5, 144], sizes = [1, 118], strides = [1, 1]} : vector<32x262xf32> to vector<1x118xf32>
    %140 = vector.extract_strided_slice %97 {offsets = [6, 144], sizes = [1, 118], strides = [1, 1]} : vector<32x262xf32> to vector<1x118xf32>
    %141 = vector.extract_strided_slice %97 {offsets = [7, 144], sizes = [1, 118], strides = [1, 1]} : vector<32x262xf32> to vector<1x118xf32>
    %142 = vector.extract_strided_slice %97 {offsets = [8, 144], sizes = [1, 118], strides = [1, 1]} : vector<32x262xf32> to vector<1x118xf32>
    %143 = vector.extract_strided_slice %97 {offsets = [9, 144], sizes = [1, 118], strides = [1, 1]} : vector<32x262xf32> to vector<1x118xf32>
    %144 = vector.extract_strided_slice %97 {offsets = [10, 144], sizes = [1, 118], strides = [1, 1]} : vector<32x262xf32> to vector<1x118xf32>
    %145 = vector.extract_strided_slice %97 {offsets = [11, 144], sizes = [1, 118], strides = [1, 1]} : vector<32x262xf32> to vector<1x118xf32>
    %146 = vector.extract_strided_slice %97 {offsets = [12, 144], sizes = [1, 118], strides = [1, 1]} : vector<32x262xf32> to vector<1x118xf32>
    %147 = vector.extract_strided_slice %97 {offsets = [13, 144], sizes = [1, 118], strides = [1, 1]} : vector<32x262xf32> to vector<1x118xf32>
    %148 = vector.extract_strided_slice %97 {offsets = [14, 144], sizes = [1, 118], strides = [1, 1]} : vector<32x262xf32> to vector<1x118xf32>
    %149 = vector.extract_strided_slice %97 {offsets = [15, 144], sizes = [1, 118], strides = [1, 1]} : vector<32x262xf32> to vector<1x118xf32>
    %150 = vector.extract_strided_slice %97 {offsets = [16, 144], sizes = [1, 118], strides = [1, 1]} : vector<32x262xf32> to vector<1x118xf32>
    %151 = vector.extract_strided_slice %97 {offsets = [17, 144], sizes = [1, 118], strides = [1, 1]} : vector<32x262xf32> to vector<1x118xf32>
    %152 = vector.extract_strided_slice %97 {offsets = [18, 144], sizes = [1, 118], strides = [1, 1]} : vector<32x262xf32> to vector<1x118xf32>
    %153 = vector.extract_strided_slice %97 {offsets = [19, 144], sizes = [1, 118], strides = [1, 1]} : vector<32x262xf32> to vector<1x118xf32>
    %154 = vector.extract_strided_slice %97 {offsets = [20, 144], sizes = [1, 118], strides = [1, 1]} : vector<32x262xf32> to vector<1x118xf32>
    %155 = vector.extract_strided_slice %97 {offsets = [21, 144], sizes = [1, 118], strides = [1, 1]} : vector<32x262xf32> to vector<1x118xf32>
    %156 = vector.extract_strided_slice %97 {offsets = [22, 144], sizes = [1, 118], strides = [1, 1]} : vector<32x262xf32> to vector<1x118xf32>
    %157 = vector.extract_strided_slice %97 {offsets = [23, 144], sizes = [1, 118], strides = [1, 1]} : vector<32x262xf32> to vector<1x118xf32>
    %158 = vector.extract_strided_slice %97 {offsets = [24, 144], sizes = [1, 118], strides = [1, 1]} : vector<32x262xf32> to vector<1x118xf32>
    %159 = vector.extract_strided_slice %97 {offsets = [25, 144], sizes = [1, 118], strides = [1, 1]} : vector<32x262xf32> to vector<1x118xf32>
    %160 = vector.extract_strided_slice %97 {offsets = [26, 144], sizes = [1, 118], strides = [1, 1]} : vector<32x262xf32> to vector<1x118xf32>
    %161 = vector.extract_strided_slice %97 {offsets = [27, 144], sizes = [1, 118], strides = [1, 1]} : vector<32x262xf32> to vector<1x118xf32>
    %162 = vector.extract_strided_slice %97 {offsets = [28, 144], sizes = [1, 118], strides = [1, 1]} : vector<32x262xf32> to vector<1x118xf32>
    %163 = vector.extract_strided_slice %97 {offsets = [29, 144], sizes = [1, 118], strides = [1, 1]} : vector<32x262xf32> to vector<1x118xf32>
    %164 = vector.extract_strided_slice %97 {offsets = [30, 144], sizes = [1, 118], strides = [1, 1]} : vector<32x262xf32> to vector<1x118xf32>
    %165 = vector.extract_strided_slice %97 {offsets = [31, 144], sizes = [1, 118], strides = [1, 1]} : vector<32x262xf32> to vector<1x118xf32>
    %166 = tpu.concatenate %134, %135, %136, %137, %138, %139, %140, %141, %142, %143, %144, %145, %146, %147, %148, %149 in 1 : vector<1x118xf32>, vector<1x118xf32>, vector<1x118xf32>, vector<1x118xf32>, vector<1x118xf32>, vector<1x118xf32>, vector<1x118xf32>, vector<1x118xf32>, vector<1x118xf32>, vector<1x118xf32>, vector<1x118xf32>, vector<1x118xf32>, vector<1x118xf32>, vector<1x118xf32>, vector<1x118xf32>, vector<1x118xf32> -> vector<1x1888xf32>
    %167 = tpu.concatenate %150, %151, %152, %153, %154, %155, %156, %157, %158, %159, %160, %161, %162, %163, %164, %165 in 1 : vector<1x118xf32>, vector<1x118xf32>, vector<1x118xf32>, vector<1x118xf32>, vector<1x118xf32>, vector<1x118xf32>, vector<1x118xf32>, vector<1x118xf32>, vector<1x118xf32>, vector<1x118xf32>, vector<1x118xf32>, vector<1x118xf32>, vector<1x118xf32>, vector<1x118xf32>, vector<1x118xf32>, vector<1x118xf32> -> vector<1x1888xf32>
    %168 = tpu.concatenate %166, %167 in 1 : vector<1x1888xf32>, vector<1x1888xf32> -> vector<1x3776xf32>
    %c1 = arith.constant 1 : index
    %c0_44 = arith.constant 0 : index
    %169 = vector.load %arg14[%c1, %c0_44] : memref<2x3776xf32, #tpu.memory_space<vmem>>, vector<1x3776xf32>
    tpu.vector_store %arg14[%c1, %c0_44], %168 {strides = array<i32>} : memref<2x3776xf32, #tpu.memory_space<vmem>>, vector<1x3776xf32>,
    %c0_45 = arith.constant 0 : index
    %c0_46 = arith.constant 0 : index
    %170 = vector.load %arg14[%c0_45, %c0_46] : memref<2x3776xf32, #tpu.memory_space<vmem>>, vector<2x3776xf32>
    %171 = arith.truncf %170 : vector<2x3776xf32> to vector<2x3776xbf16>
    %c0_47 = arith.constant 0 : index
    %c0_48 = arith.constant 0 : index
    %172 = vector.load %arg8[%c0_47, %c0_48] : memref<3776x256xbf16, #tpu.memory_space<vmem>>, vector<3776x256xbf16>
    %cst_49 = arith.constant dense<0.000000e+00> : vector<2x256xf32>
    %173 = tpu.matmul %171, %172, %cst_49 {dimension_numbers = #tpu.dot_dimension_numbers<[1], [0], [0], [1], [0, 0, 1, 1], [], []>} : vector<2x3776xbf16>, vector<3776x256xbf16>, vector<2x256xf32> -> vector<2x256xf32>
    %c0_50 = arith.constant 0 : index
    %c0_51 = arith.constant 0 : index
    %174 = vector.load %arg9[%c0_50, %c0_51] : memref<1x256xf32, #tpu.memory_space<vmem>>, vector<1x256xf32>
    %175 = vector.broadcast %174 : vector<1x256xf32> to vector<2x256xf32>
    %176 = arith.addf %173, %175 : vector<2x256xf32>
    %cst_52 = arith.constant 0.000000e+00 : f32
    %177 = vector.broadcast %cst_52 : f32 to vector<2x256xf32>
    %178 = arith.cmpf ogt, %176, %177 : vector<2x256xf32>
    %cst_53 = arith.constant 2.000000e-01 : f32
    %179 = vector.broadcast %cst_53 : f32 to vector<2x256xf32>
    %180 = arith.mulf %179, %176 : vector<2x256xf32>
    %181 = arith.select %178, %176, %180 : vector<2x256xi1>, vector<2x256xf32>
    %c0_54 = arith.constant 0 : index
    %c0_55 = arith.constant 0 : index
    %182 = vector.load %arg10[%c0_54, %c0_55] : memref<1x256xf32, #tpu.memory_space<vmem>>, vector<1x256xf32>
    %183 = vector.broadcast %182 : vector<1x256xf32> to vector<2x256xf32>
    %184 = arith.mulf %181, %183 : vector<2x256xf32>
    %cst_56 = arith.constant dense<0.000000e+00> : vector<2xf32>
    %185 = vector.multi_reduction <add>, %184, %cst_56 [1] : vector<2x256xf32> to vector<2xf32>
    %186 = vector.shape_cast %185 : vector<2xf32> to vector<2x1xf32>
    %c0_57 = arith.constant 0 : index
    %c0_58 = arith.constant 0 : index
    %187 = vector.load %arg11[%c0_57, %c0_58] : memref<1x1xf32, #tpu.memory_space<vmem>>, vector<1x1xf32>
    %188 = vector.broadcast %187 : vector<1x1xf32> to vector<2x1xf32>
    %189 = arith.addf %186, %188 : vector<2x1xf32>
    %cst_59 = arith.constant 0.000000e+00 : f32
    %190 = vector.broadcast %cst_59 : f32 to vector<2x1xf32>
    %191 = arith.subf %190, %189 : vector<2x1xf32>
    %192 = math.exp %191 : vector<2x1xf32>
    %cst_60 = arith.constant 1.000000e+00 : f32
    %193 = vector.broadcast %cst_60 : f32 to vector<2x1xf32>
    %194 = arith.addf %193, %192 : vector<2x1xf32>
    %cst_61 = arith.constant 1.000000e+00 : f32
    %195 = vector.broadcast %cst_61 : f32 to vector<2x1xf32>
    %196 = arith.divf %195, %194 : vector<2x1xf32>
    %c0_62 = arith.constant 0 : index
    %c0_63 = arith.constant 0 : index
    %197 = vector.load %arg12[%c0_62, %c0_63] : memref<2x1xf32, #tpu.memory_space<vmem>>, vector<2x1xf32>
    tpu.vector_store %arg12[%c0_62, %c0_63], %196 {strides = array<i32>} : memref<2x1xf32, #tpu.memory_space<vmem>>, vector<2x1xf32>,
    return
  }
}

</mosaic_0001>

<llo_original>
// kernel: convolution_d_forward.1
$region0: #{convolution_d_forward.1}
  #allocation0 [shape = 'u32[]', space=smem, size = 0x4, offset = 0x4, fixed_abs, tag = 'smem constant byte address 0x4 - core index']
  #allocation1 [shape = 'u32[72,128]{1,0:T(1,128)}', space=vmem, size = 0x9000, scoped, tag = 'internal scratch']
  #allocation2 [shape = 'f32[16,288]{1,0:T(8,128)}', space=vmem, size = 0x6000, scoped, tag = 'scratch operand']
  #allocation3 [shape = 'f32[2,3776]{1,0:T(2,128)}', space=vmem, size = 0x7800, scoped, tag = 'scratch operand']
  #allocation4 [shape = 'f32[1,1]{1,0:T(1,128)S(1)}', space=vmem, size = 0x200, scoped, tag = 'scoped memory for convolution_d_forward.1']
  %s0 = inlined_call_operand.vmem [shape: f32[8,288], index: 0, kind: input, shape index: {}]
  %s1 = inlined_call_operand.hbm [shape: f32[1,262], index: 1, kind: input, shape index: {}]
  %s2 = inlined_call_operand.hbm [shape: bf16[8,72], index: 2, kind: input, shape index: {}]
  %s3 = inlined_call_operand.vmem [shape: f32[8,1], index: 3, kind: input, shape index: {}]
  %s4 = inlined_call_operand.hbm [shape: bf16[16,72], index: 4, kind: input, shape index: {}]
  %s5 = inlined_call_operand.vmem [shape: f32[16,1], index: 5, kind: input, shape index: {}]
  %s6 = inlined_call_operand.hbm [shape: bf16[32,144], index: 6, kind: input, shape index: {}]
  %s7 = inlined_call_operand.vmem [shape: f32[32,1], index: 7, kind: input, shape index: {}]
  %s8 = inlined_call_operand.hbm [shape: bf16[3776,256], index: 8, kind: input, shape index: {}]
  %s9 = inlined_call_operand.hbm [shape: f32[1,256], index: 9, kind: input, shape index: {}]
  %s10 = inlined_call_operand.hbm [shape: f32[1,256], index: 10, kind: input, shape index: {}]
  %s11 = inlined_call_operand.<no memory space> [shape: f32[1,1], index: 11, kind: input, shape index: {}]
  %s12 = inlined_call_operand.vmem [shape: f32[2,1], index: 12, kind: output, shape index: {}]
  %s13 = sld [smem:[#allocation0]]
  $region86: #{convolution_d_forward.1} parent=0
    _
  %s15 = ssub.s32 1, %s13
  %s16 = scalar_select 0, %s15, %s13
  %v17 = vstv %s11
  %18 = vst [vmem:[#allocation4] sm:$0x1] %v17
  $region1: #{convolution_d_forward.1} parent=0
    #allocation5 [shape = 'u8[1536]{0}', space=vmem, size = 0x800, scoped, tag = 'input window, operand 1, single buffered']
    #allocation6 [shape = 's32[1]{0}', space=sflag, size = 0x4, scoped, tag = 'scoped memory for convolution_d_forward.1']
    #allocation7 [shape = 'u8[2048]{0}', space=vmem, size = 0x800, scoped, tag = 'input window, operand 2, single buffered']
    #allocation8 [shape = 's32[1]{0}', space=sflag, size = 0x4, scoped, tag = 'scoped memory for convolution_d_forward.1']
    #allocation9 [shape = 'u8[4096]{0}', space=vmem, size = 0x1000, scoped, tag = 'input window, operand 4, single buffered']
    #allocation10 [shape = 'u8[16384]{0}', space=vmem, size = 0x4000, scoped, tag = 'input window, operand 6, single buffered']
    #allocation11 [shape = 's32[1]{0}', space=sflag, size = 0x4, scoped, tag = 'scoped memory for convolution_d_forward.1']
    #allocation12 [shape = 'u8[1933312]{0}', space=vmem, size = 0x1d8000, scoped, tag = 'input window, operand 8, single buffered']
    #allocation13 [shape = 'u8[1024]{0}', space=vmem, size = 0x400, scoped, tag = 'input window, operand 9, single buffered']
    #allocation14 [shape = 's32[1]{0}', space=sflag, size = 0x4, scoped, tag = 'scoped memory for convolution_d_forward.1']
    #allocation15 [shape = 'u8[1024]{0}', space=vmem, size = 0x400, scoped, tag = 'input window, operand 10, single buffered']
    %19 = vsyncpa [#allocation6], 0
    %20 = vsyncpa [#allocation8], 0
    %21 = vsyncpa [#allocation11], 0
    %22 = vsyncpa [#allocation14], 0
    // Predicated region
    $region2: #{convolution_d_forward.1} parent=1 // pred_check
      _
    $region3: #{convolution_d_forward.1} parent=1 // pred_check_branch
      %24 = sbr.rel (0) target = $region5
    $region4: #{convolution_d_forward.1} parent=1 // pred_region
      _
    $region5: #{convolution_d_forward.1} parent=1 // pred_fallthru
      _
    // Predicated region
    $region6: #{convolution_d_forward.1} parent=1 // pred_check
      _
    $region7: #{convolution_d_forward.1} parent=1 // pred_check_branch
      %26 = sbr.rel (0) target = $region9
    $region8: #{convolution_d_forward.1} parent=1 // pred_region
      %28 = vsyncadd [#allocation6], 0
      %s30 = sshll.u32 %s1, 4
      %s31 = int_to_ptr.hbm [resolvable:$true] %s30
      %s32 = sshll.u32 [#allocation5], 4
      %s33 = int_to_ptr.vmem [resolvable:$true] %s32
      %35 = dma.hbm_to_vmem [thread:$0]  %s31, 48, %s33, [#allocation6]
    $region9: #{convolution_d_forward.1} parent=1 // pred_fallthru
      _
    // Predicated region
    $region10: #{convolution_d_forward.1} parent=1 // pred_check
      _
    $region11: #{convolution_d_forward.1} parent=1 // pred_check_branch
      %37 = sbr.rel (0) target = $region13
    $region12: #{convolution_d_forward.1} parent=1 // pred_region
      %39 = vsyncadd [#allocation8], 0
      %s41 = sshll.u32 %s2, 4
      %s42 = int_to_ptr.hbm [resolvable:$true] %s41
      %s43 = sshll.u32 [#allocation7], 4
      %s44 = int_to_ptr.vmem [resolvable:$true] %s43
      %46 = dma.hbm_to_vmem [thread:$0]  %s42, 64, %s44, [#allocation8]
    $region13: #{convolution_d_forward.1} parent=1 // pred_fallthru
      _
    // Predicated region
    $region14: #{convolution_d_forward.1} parent=1 // pred_check
      _
    $region15: #{convolution_d_forward.1} parent=1 // pred_check_branch
      %48 = sbr.rel (0) target = $region17
    $region16: #{convolution_d_forward.1} parent=1 // pred_region
      _
    $region17: #{convolution_d_forward.1} parent=1 // pred_fallthru
      _
    // Predicated region
    $region18: #{convolution_d_forward.1} parent=1 // pred_check
      _
    $region19: #{convolution_d_forward.1} parent=1 // pred_check_branch
      %50 = sbr.rel (0) target = $region21
    $region20: #{convolution_d_forward.1} parent=1 // pred_region
      %52 = vsyncadd [#allocation8], 0
      %s53 = sshll.u32 %s4, 4
      %s54 = int_to_ptr.hbm [resolvable:$true] %s53
      %s55 = sshll.u32 [#allocation9], 4
      %s56 = int_to_ptr.vmem [resolvable:$true] %s55
      %61 = dma.hbm_to_vmem [thread:$0]  %s54, 128, %s56, [#allocation8], 64, 64, 4
    $region21: #{convolution_d_forward.1} parent=1 // pred_fallthru
      _
    // Predicated region
    $region22: #{convolution_d_forward.1} parent=1 // pred_check
      _
    $region23: #{convolution_d_forward.1} parent=1 // pred_check_branch
      %63 = sbr.rel (0) target = $region25
    $region24: #{convolution_d_forward.1} parent=1 // pred_region
      _
    $region25: #{convolution_d_forward.1} parent=1 // pred_fallthru
      _
    // Predicated region
    $region26: #{convolution_d_forward.1} parent=1 // pred_check
      _
    $region27: #{convolution_d_forward.1} parent=1 // pred_check_branch
      %65 = sbr.rel (0) target = $region29
    $region28: #{convolution_d_forward.1} parent=1 // pred_region
      %67 = vsyncadd [#allocation11], 0
      %s68 = sshll.u32 %s6, 4
      %s69 = int_to_ptr.hbm [resolvable:$true] %s68
      %s70 = sshll.u32 [#allocation10], 4
      %s71 = int_to_ptr.vmem [resolvable:$true] %s70
      %76 = dma.hbm_to_vmem [thread:$0]  %s69, 512, %s71, [#allocation11], 128, 128, 8
    $region29: #{convolution_d_forward.1} parent=1 // pred_fallthru
      _
    // Predicated region
    $region30: #{convolution_d_forward.1} parent=1 // pred_check
      _
    $region31: #{convolution_d_forward.1} parent=1 // pred_check_branch
      %78 = sbr.rel (0) target = $region33
    $region32: #{convolution_d_forward.1} parent=1 // pred_region
      _
    $region33: #{convolution_d_forward.1} parent=1 // pred_fallthru
      _
    // Predicated region
    $region34: #{convolution_d_forward.1} parent=1 // pred_check
      _
    $region35: #{convolution_d_forward.1} parent=1 // pred_check_branch
      %80 = sbr.rel (0) target = $region37
    $region36: #{convolution_d_forward.1} parent=1 // pred_region
      %82 = vsyncadd [#allocation11], 0
      %s83 = sshll.u32 %s8, 4
      %s84 = int_to_ptr.hbm [resolvable:$true] %s83
      %s85 = sshll.u32 [#allocation12], 4
      %s86 = int_to_ptr.vmem [resolvable:$true] %s85
      %91 = dma.hbm_to_vmem [thread:$0]  %s84, 60416, %s86, [#allocation11], 128, 128, 8
    $region37: #{convolution_d_forward.1} parent=1 // pred_fallthru
      _
    // Predicated region
    $region38: #{convolution_d_forward.1} parent=1 // pred_check
      _
    $region39: #{convolution_d_forward.1} parent=1 // pred_check_branch
      %93 = sbr.rel (0) target = $region41
    $region40: #{convolution_d_forward.1} parent=1 // pred_region
      %95 = vsyncadd [#allocation14], 0
      %s97 = sshll.u32 %s9, 4
      %s98 = int_to_ptr.hbm [resolvable:$true] %s97
      %s99 = sshll.u32 [#allocation13], 4
      %s100 = int_to_ptr.vmem [resolvable:$true] %s99
      %102 = dma.hbm_to_vmem [thread:$0]  %s98, 32, %s100, [#allocation14]
    $region41: #{convolution_d_forward.1} parent=1 // pred_fallthru
      _
    // Predicated region
    $region42: #{convolution_d_forward.1} parent=1 // pred_check
      _
    $region43: #{convolution_d_forward.1} parent=1 // pred_check_branch
      %104 = sbr.rel (0) target = $region45
    $region44: #{convolution_d_forward.1} parent=1 // pred_region
      %106 = vsyncadd [#allocation14], 0
      %s108 = sshll.u32 %s10, 4
      %s109 = int_to_ptr.hbm [resolvable:$true] %s108
      %s110 = sshll.u32 [#allocation15], 4
      %s111 = int_to_ptr.vmem [resolvable:$true] %s110
      %113 = dma.hbm_to_vmem [thread:$0]  %s109, 32, %s111, [#allocation14]
    $region45: #{convolution_d_forward.1} parent=1 // pred_fallthru
      _
    // Predicated region
    $region46: #{convolution_d_forward.1} parent=1 // pred_check
      _
    $region47: #{convolution_d_forward.1} parent=1 // pred_check_branch
      %115 = sbr.rel (0) target = $region49
    $region48: #{convolution_d_forward.1} parent=1 // pred_region
      _
    $region49: #{convolution_d_forward.1} parent=1 // pred_fallthru
      _
    // Predicated region
    $region50: #{convolution_d_forward.1} parent=1 // pred_check
      _
    $region51: #{convolution_d_forward.1} parent=1 // pred_check_branch
      %117 = sbr.rel (0) target = $region53
    $region52: #{convolution_d_forward.1} parent=1 // pred_region
      %119 = dma.done [#allocation6], 48
    $region53: #{convolution_d_forward.1} parent=1 // pred_fallthru
      _
    // Predicated region
    $region54: #{convolution_d_forward.1} parent=1 // pred_check
      _
    $region55: #{convolution_d_forward.1} parent=1 // pred_check_branch
      %121 = sbr.rel (0) target = $region57
    $region56: #{convolution_d_forward.1} parent=1 // pred_region
      %123 = dma.done [#allocation8], 64
    $region57: #{convolution_d_forward.1} parent=1 // pred_fallthru
      _
    // Predicated region
    $region58: #{convolution_d_forward.1} parent=1 // pred_check
      _
    $region59: #{convolution_d_forward.1} parent=1 // pred_check_branch
      %125 = sbr.rel (0) target = $region61
    $region60: #{convolution_d_forward.1} parent=1 // pred_region
      %127 = dma.done [#allocation8], 128
    $region61: #{convolution_d_forward.1} parent=1 // pred_fallthru
      _
    // Predicated region
    $region62: #{convolution_d_forward.1} parent=1 // pred_check
      _
    $region63: #{convolution_d_forward.1} parent=1 // pred_check_branch
      %129 = sbr.rel (0) target = $region65
    $region64: #{convolution_d_forward.1} parent=1 // pred_region
      %131 = dma.done [#allocation11], 512
    $region65: #{convolution_d_forward.1} parent=1 // pred_fallthru
      _
    // Predicated region
    $region66: #{convolution_d_forward.1} parent=1 // pred_check
      _
    $region67: #{convolution_d_forward.1} parent=1 // pred_check_branch
      %133 = sbr.rel (0) target = $region69
    $region68: #{convolution_d_forward.1} parent=1 // pred_region
      %135 = dma.done [#allocation11], 60416
    $region69: #{convolution_d_forward.1} parent=1 // pred_fallthru
      _
    // Predicated region
    $region70: #{convolution_d_forward.1} parent=1 // pred_check
      _
    $region71: #{convolution_d_forward.1} parent=1 // pred_check_branch
      %137 = sbr.rel (0) target = $region73
    $region72: #{convolution_d_forward.1} parent=1 // pred_region
      %139 = dma.done [#allocation14], 32
    $region73: #{convolution_d_forward.1} parent=1 // pred_fallthru
      _
    // Predicated region
    $region74: #{convolution_d_forward.1} parent=1 // pred_check
      _
    $region75: #{convolution_d_forward.1} parent=1 // pred_check_branch
      %141 = sbr.rel (0) target = $region77
    $region76: #{convolution_d_forward.1} parent=1 // pred_region
      %143 = dma.done [#allocation14], 32
    $region77: #{convolution_d_forward.1} parent=1 // pred_fallthru
      _
    %v145 = vld [vmem:[#allocation5] sm:$0x7]
    %146 = vst [vmem:[#allocation2] sm:$0xff] 0.0
    %147 = vst [vmem:[#allocation2 + $0x8] sm:$0xff] 0.0
    %vm148 = vcmask 261120
    %149 = vst.msk [vmem:[#allocation2 + $0x10] sm:$0xff] %vm148, 0.0
    %150 = vst [vmem:[#allocation2 + $0x18] sm:$0xff] 0.0
    %151 = vst [vmem:[#allocation2 + $0x20] sm:$0xff] 0.0
    %152 = vst.msk [vmem:[#allocation2 + $0x28] sm:$0xff] %vm148, 0.0
    %v153 = vld [vmem:[%s0] sm:$0xff]
    %v154 = vld [vmem:[%s0 + $0x8] sm:$0xff]
    %v155 = vld [vmem:[%s0 + $0x10] sm:$0xff]
    %159 = vrot.lane.b32.xlu0 %v153, 127
    %v160 = vpop.permute.xlu0 %159
    %161 = vrot.lane.b32.xlu0 %v154, 127
    %v162 = vpop.permute.xlu0 %161
    %163 = vrot.lane.b32.xlu0 %v155, 127
    %v164 = vpop.permute.xlu0 %163
    %vm165 = vcmask 1039360
    %v166 = vsel %vm165, %v160, %v162
    %v167 = vsel %vm165, %v162, %v164
    %171 = vrot.lane.b32.xlu0 %v153, 126
    %v172 = vpop.permute.xlu0 %171
    %173 = vrot.lane.b32.xlu0 %v154, 126
    %v174 = vpop.permute.xlu0 %173
    %175 = vrot.lane.b32.xlu0 %v155, 126
    %v176 = vpop.permute.xlu0 %175
    %vm177 = vcmask 1031168
    %v178 = vsel %vm177, %v172, %v174
    %v179 = vsel %vm177, %v174, %v176
    %183 = vrot.lane.b32.xlu0 %v153, 116
    %v184 = vpop.permute.xlu0 %183
    %185 = vrot.lane.b32.xlu0 %v154, 116
    %v186 = vpop.permute.xlu0 %185
    %187 = vrot.lane.b32.xlu0 %v155, 116
    %v188 = vpop.permute.xlu0 %187
    %vm189 = vcmask 949248
    %v190 = vsel %vm189, %v184, %v186
    %v191 = vsel %vm189, %v186, %v188
    %195 = vrot.lane.b32.xlu0 %v153, 115
    %v196 = vpop.permute.xlu0 %195
    %197 = vrot.lane.b32.xlu0 %v154, 115
    %v198 = vpop.permute.xlu0 %197
    %199 = vrot.lane.b32.xlu0 %v155, 115
    %v200 = vpop.permute.xlu0 %199
    %vm201 = vcmask 941056
    %v202 = vsel %vm201, %v196, %v198
    %v203 = vsel %vm201, %v198, %v200
    %207 = vrot.lane.b32.xlu0 %v153, 114
    %v208 = vpop.permute.xlu0 %207
    %209 = vrot.lane.b32.xlu0 %v154, 114
    %v210 = vpop.permute.xlu0 %209
    %211 = vrot.lane.b32.xlu0 %v155, 114
    %v212 = vpop.permute.xlu0 %211
    %vm213 = vcmask 932864
    %v214 = vsel %vm213, %v208, %v210
    %v215 = vsel %vm213, %v210, %v212
    %219 = vrot.lane.b32.xlu0 %v153, 104
    %v220 = vpop.permute.xlu0 %219
    %221 = vrot.lane.b32.xlu0 %v154, 104
    %v222 = vpop.permute.xlu0 %221
    %223 = vrot.lane.b32.xlu0 %v155, 104
    %v224 = vpop.permute.xlu0 %223
    %vm225 = vcmask 850944
    %v226 = vsel %vm225, %v220, %v222
    %v227 = vsel %vm225, %v222, %v224
    %231 = vrot.lane.b32.xlu0 %v153, 103
    %v232 = vpop.permute.xlu0 %231
    %233 = vrot.lane.b32.xlu0 %v154, 103
    %v234 = vpop.permute.xlu0 %233
    %235 = vrot.lane.b32.xlu0 %v155, 103
    %v236 = vpop.permute.xlu0 %235
    %vm237 = vcmask 842752
    %v238 = vsel %vm237, %v232, %v234
    %v239 = vsel %vm237, %v234, %v236
    %243 = vrot.lane.b32.xlu0 %v153, 102
    %v244 = vpop.permute.xlu0 %243
    %245 = vrot.lane.b32.xlu0 %v154, 102
    %v246 = vpop.permute.xlu0 %245
    %247 = vrot.lane.b32.xlu0 %v155, 102
    %v248 = vpop.permute.xlu0 %247
    %vm249 = vcmask 834560
    %v250 = vsel %vm249, %v244, %v246
    %v251 = vsel %vm249, %v246, %v248
    %v255 = vpack.c.bf16 %v166, %v153
    %v256 = vpack.c.bf16 %v167, %v154
    %v257 = vpack.c.bf16 %v164, %v155
    %v258 = vpack.c.bf16 %v190, %v178
    %v259 = vpack.c.bf16 %v191, %v179
    %v260 = vpack.c.bf16 %v188, %v176
    %v261 = vpack.c.bf16 %v214, %v202
    %v262 = vpack.c.bf16 %v215, %v203
    %v263 = vpack.c.bf16 %v212, %v200
    %v264 = vpack.c.bf16 %v238, %v226
    %v265 = vpack.c.bf16 %v239, %v227
    %v266 = vpack.c.bf16 %v236, %v224
    %v267 = vpack.c.bf16 %v250, %v250
    %v268 = vpack.c.bf16 %v251, %v251
    %v269 = vpack.c.bf16 %v248, %v248
    %v270 = vld [vmem:[#allocation7] sm:$0xf]
    %v271 = vld [vmem:[%s3] sm:$0xff]
    %273 = vset.pattern.permute.xlu0 0
    %274 = vperm.xlu0 %273, %v271
    %v275 = vpop.permute.xlu0 %274
    %vm277 = vcmask 588800
    %v279 = vsel %vm277, %v270, 0
    %vm281 = vcmask 1043456
    %v283 = vsel %vm281, %v267, 0
    %v286 = vsel %vm281, %v268, 0
    %v289 = vsel %vm281, %v269, 0
    %291 = vmatpush.bf16.msra.mxu0 0
    %292 = vmatpush.bf16.msra.mxu0 0
    %293 = vmatpush.bf16.msra.mxu0 0
    %294 = vmatpush.bf16.msra.mxu0 %v283
    %295 = vmatpush.bf16.msra.mxu0 %v264
    %296 = vmatpush.bf16.msra.mxu0 %v261
    %297 = vmatpush.bf16.msra.mxu0 %v258
    %298 = vmatpush.bf16.msra.mxu0 %v255
    %299 = vmatmul.bf16.gmra.mxu0 %v279
    %v300 = vpop.f32.mrf.mxu0
    %v301 = vadd.f32 %v275, %v300
    %v302 = vpop.f32.mrf.mxu0
    %303 = vdwg.mxu0
    %304 = vmatpush.bf16.msra.mxu0 0
    %305 = vmatpush.bf16.msra.mxu0 0
    %306 = vmatpush.bf16.msra.mxu0 0
    %307 = vmatpush.bf16.msra.mxu0 %v286
    %308 = vmatpush.bf16.msra.mxu0 %v265
    %309 = vmatpush.bf16.msra.mxu0 %v262
    %310 = vmatpush.bf16.msra.mxu0 %v259
    %311 = vmatpush.bf16.msra.mxu0 %v256
    %312 = vmatmul.bf16.gmra.mxu0 %v279
    %v313 = vpop.f32.mrf.mxu0
    %v314 = vadd.f32 %v275, %v313
    %v315 = vpop.f32.mrf.mxu0
    %316 = vdwg.mxu0
    %317 = vmatpush.bf16.msra.mxu0 0
    %318 = vmatpush.bf16.msra.mxu0 0
    %319 = vmatpush.bf16.msra.mxu0 0
    %320 = vmatpush.bf16.msra.mxu0 %v289
    %321 = vmatpush.bf16.msra.mxu0 %v266
    %322 = vmatpush.bf16.msra.mxu0 %v263
    %323 = vmatpush.bf16.msra.mxu0 %v260
    %324 = vmatpush.bf16.msra.mxu0 %v257
    %325 = vmatmul.bf16.gmra.mxu0 %v279
    %v326 = vpop.f32.mrf.mxu0
    %v327 = vadd.f32 %v275, %v326
    %v328 = vpop.f32.mrf.mxu0
    %329 = vdwg.mxu0
    %v330 = vmin.f32 %v301, 0.0
    %v331 = vmin.f32 %v314, 0.0
    %v332 = vmin.f32 %v327, 0.0
    %v333 = vmul.f32 %v330, 1.442695
    %v334 = vpow.pop %v333
    %v335 = vmul.f32 %v331, 1.442695
    %v336 = vpow.pop %v335
    %v337 = vmul.f32 %v332, 1.442695
    %v338 = vpow.pop %v337
    %v339 = vsub.f32 %v334, 1.0
    %v340 = vsub.f32 %v336, 1.0
    %v341 = vsub.f32 %v338, 1.0
    %v342 = vmul.f32 %v339, 1.6732632
    %v343 = vmul.f32 %v340, 1.6732632
    %v344 = vmul.f32 %v341, 1.6732632
    %vm345 = vcmp.gt.f32.partialorder %v301, 0.0
    %vm346 = vcmp.gt.f32.partialorder %v314, 0.0
    %vm347 = vcmp.gt.f32.partialorder %v327, 0.0
    %v348 = vsel %vm345, %v301, %v342
    %v349 = vsel %vm346, %v314, %v343
    %v350 = vsel %vm347, %v327, %v344
    %v351 = vmul.f32 %v348, 1.050701
    %v352 = vmul.f32 %v349, 1.050701
    %v353 = vmul.f32 %v350, 1.050701
    %v355 = vperm.slane %v145, 0
    %v356 = vperm.slane %v145, 1
    %v357 = vperm.slane %v145, 2
    %v361 = vmul.f32 %v351, %v355
    %v362 = vmul.f32 %v352, %v356
    %v363 = vmul.f32 %v353, %v357
    %367 = vrot.lane.b32.xlu0 %v361, 13
    %v368 = vpop.permute.xlu0 %367
    %369 = vrot.lane.b32.xlu0 %v362, 13
    %v370 = vpop.permute.xlu0 %369
    %371 = vrot.lane.b32.xlu0 %v363, 13
    %v372 = vpop.permute.xlu0 %371
    %vm373 = vcmask 105472
    %v374 = vsel %vm373, %v368, %v370
    %v375 = vsel %vm373, %v370, %v372
    %vm379 = vcmask 1047656
    %380 = vst.msk [vmem:[#allocation2] sm:$0xff] %vm379, %v368
    %381 = vst [vmem:[#allocation2 + $0x8] sm:$0xff] %v374
    %vm382 = vcmask 154624
    %383 = vst.msk [vmem:[#allocation2 + $0x10] sm:$0xff] %vm382, %v375
    %v384 = vld [vmem:[#allocation2] sm:$0xff]
    %v385 = vld [vmem:[#allocation2 + $0x8] sm:$0xff]
    %v386 = vld [vmem:[#allocation2 + $0x10] sm:$0xff]
    %390 = vrot.lane.b32.xlu0 %v384, 127
    %v391 = vpop.permute.xlu0 %390
    %392 = vrot.lane.b32.xlu0 %v385, 127
    %v393 = vpop.permute.xlu0 %392
    %394 = vrot.lane.b32.xlu0 %v386, 127
    %v395 = vpop.permute.xlu0 %394
    %v396 = vsel %vm165, %v391, %v393
    %v397 = vsel %vm165, %v393, %v395
    %401 = vrot.lane.b32.xlu0 %v384, 126
    %v402 = vpop.permute.xlu0 %401
    %403 = vrot.lane.b32.xlu0 %v385, 126
    %v404 = vpop.permute.xlu0 %403
    %405 = vrot.lane.b32.xlu0 %v386, 126
    %v406 = vpop.permute.xlu0 %405
    %v407 = vsel %vm177, %v402, %v404
    %v408 = vsel %vm177, %v404, %v406
    %412 = vrot.lane.b32.xlu0 %v384, 116
    %v413 = vpop.permute.xlu0 %412
    %414 = vrot.lane.b32.xlu0 %v385, 116
    %v415 = vpop.permute.xlu0 %414
    %416 = vrot.lane.b32.xlu0 %v386, 116
    %v417 = vpop.permute.xlu0 %416
    %v418 = vsel %vm189, %v413, %v415
    %v419 = vsel %vm189, %v415, %v417
    %423 = vrot.lane.b32.xlu0 %v384, 115
    %v424 = vpop.permute.xlu0 %423
    %425 = vrot.lane.b32.xlu0 %v385, 115
    %v426 = vpop.permute.xlu0 %425
    %427 = vrot.lane.b32.xlu0 %v386, 115
    %v428 = vpop.permute.xlu0 %427
    %v429 = vsel %vm201, %v424, %v426
    %v430 = vsel %vm201, %v426, %v428
    %434 = vrot.lane.b32.xlu0 %v384, 114
    %v435 = vpop.permute.xlu0 %434
    %436 = vrot.lane.b32.xlu0 %v385, 114
    %v437 = vpop.permute.xlu0 %436
    %438 = vrot.lane.b32.xlu0 %v386, 114
    %v439 = vpop.permute.xlu0 %438
    %v440 = vsel %vm213, %v435, %v437
    %v441 = vsel %vm213, %v437, %v439
    %445 = vrot.lane.b32.xlu0 %v384, 104
    %v446 = vpop.permute.xlu0 %445
    %447 = vrot.lane.b32.xlu0 %v385, 104
    %v448 = vpop.permute.xlu0 %447
    %449 = vrot.lane.b32.xlu0 %v386, 104
    %v450 = vpop.permute.xlu0 %449
    %v451 = vsel %vm225, %v446, %v448
    %v452 = vsel %vm225, %v448, %v450
    %456 = vrot.lane.b32.xlu0 %v384, 103
    %v457 = vpop.permute.xlu0 %456
    %458 = vrot.lane.b32.xlu0 %v385, 103
    %v459 = vpop.permute.xlu0 %458
    %460 = vrot.lane.b32.xlu0 %v386, 103
    %v461 = vpop.permute.xlu0 %460
    %v462 = vsel %vm237, %v457, %v459
    %v463 = vsel %vm237, %v459, %v461
    %467 = vrot.lane.b32.xlu0 %v384, 102
    %v468 = vpop.permute.xlu0 %467
    %469 = vrot.lane.b32.xlu0 %v385, 102
    %v470 = vpop.permute.xlu0 %469
    %471 = vrot.lane.b32.xlu0 %v386, 102
    %v472 = vpop.permute.xlu0 %471
    %v473 = vsel %vm249, %v468, %v470
    %v474 = vsel %vm249, %v470, %v472
    %v478 = vpack.c.bf16 %v396, %v384
    %v479 = vpack.c.bf16 %v397, %v385
    %v480 = vpack.c.bf16 %v395, %v386
    %v481 = vpack.c.bf16 %v418, %v407
    %v482 = vpack.c.bf16 %v419, %v408
    %v483 = vpack.c.bf16 %v417, %v406
    %v484 = vpack.c.bf16 %v440, %v429
    %v485 = vpack.c.bf16 %v441, %v430
    %v486 = vpack.c.bf16 %v439, %v428
    %v487 = vpack.c.bf16 %v462, %v451
    %v488 = vpack.c.bf16 %v463, %v452
    %v489 = vpack.c.bf16 %v461, %v450
    %v490 = vpack.c.bf16 %v473, %v473
    %v491 = vpack.c.bf16 %v474, %v474
    %v492 = vpack.c.bf16 %v472, %v472
    %v493 = vld [vmem:[#allocation9] sm:$0xf]
    %v494 = vld [vmem:[#allocation9 + $0x4] sm:$0xf]
    %v495 = vld [vmem:[%s5] sm:$0xff]
    %v496 = vld [vmem:[%s5 + $0x8] sm:$0xff]
    %498 = vset.pattern.permute.xlu0 0
    %499 = vperm.xlu0 %498, %v495
    %v500 = vpop.permute.xlu0 %499
    %503 = vset.pattern.permute.xlu0 0
    %504 = vperm.xlu0 %503, %v496
    %v505 = vpop.permute.xlu0 %504
    %v509 = vunpack.c.l.b16 %v493
    %v510 = vunpack.c.l.b16 %v494
    %v511 = vpack.c.b16 %v510, %v509
    %v513 = vsel %vm277, %v511, 0
    %v516 = vsel %vm281, %v490, 0
    %v519 = vsel %vm281, %v491, 0
    %v522 = vsel %vm281, %v492, 0
    %524 = vmatpush.bf16.msra.mxu0 0
    %525 = vmatpush.bf16.msra.mxu0 0
    %526 = vmatpush.bf16.msra.mxu0 0
    %527 = vmatpush.bf16.msra.mxu0 %v516
    %528 = vmatpush.bf16.msra.mxu0 %v487
    %529 = vmatpush.bf16.msra.mxu0 %v484
    %530 = vmatpush.bf16.msra.mxu0 %v481
    %531 = vmatpush.bf16.msra.mxu0 %v478
    %532 = vmatmul.bf16.gmra.mxu0 %v513
    %v533 = vpop.f32.mrf.mxu0
    %v534 = vadd.f32 %v500, %v533
    %v535 = vpop.f32.mrf.mxu0
    %v536 = vadd.f32 %v505, %v535
    %537 = vdwg.mxu0
    %538 = vmatpush.bf16.msra.mxu0 0
    %539 = vmatpush.bf16.msra.mxu0 0
    %540 = vmatpush.bf16.msra.mxu0 0
    %541 = vmatpush.bf16.msra.mxu0 %v519
    %542 = vmatpush.bf16.msra.mxu0 %v488
    %543 = vmatpush.bf16.msra.mxu0 %v485
    %544 = vmatpush.bf16.msra.mxu0 %v482
    %545 = vmatpush.bf16.msra.mxu0 %v479
    %546 = vmatmul.bf16.gmra.mxu0 %v513
    %v547 = vpop.f32.mrf.mxu0
    %v548 = vadd.f32 %v500, %v547
    %v549 = vpop.f32.mrf.mxu0
    %v550 = vadd.f32 %v505, %v549
    %551 = vdwg.mxu0
    %552 = vmatpush.bf16.msra.mxu0 0
    %553 = vmatpush.bf16.msra.mxu0 0
    %554 = vmatpush.bf16.msra.mxu0 0
    %555 = vmatpush.bf16.msra.mxu0 %v522
    %556 = vmatpush.bf16.msra.mxu0 %v489
    %557 = vmatpush.bf16.msra.mxu0 %v486
    %558 = vmatpush.bf16.msra.mxu0 %v483
    %559 = vmatpush.bf16.msra.mxu0 %v480
    %560 = vmatmul.bf16.gmra.mxu0 %v513
    %v561 = vpop.f32.mrf.mxu0
    %v562 = vadd.f32 %v500, %v561
    %v563 = vpop.f32.mrf.mxu0
    %v564 = vadd.f32 %v505, %v563
    %565 = vdwg.mxu0
    %v566 = vmin.f32 %v534, 0.0
    %v567 = vmin.f32 %v548, 0.0
    %v568 = vmin.f32 %v562, 0.0
    %v569 = vmin.f32 %v536, 0.0
    %v570 = vmin.f32 %v550, 0.0
    %v571 = vmin.f32 %v564, 0.0
    %v572 = vmul.f32 %v566, 1.442695
    %v573 = vpow.pop %v572
    %v574 = vmul.f32 %v567, 1.442695
    %v575 = vpow.pop %v574
    %v576 = vmul.f32 %v568, 1.442695
    %v577 = vpow.pop %v576
    %v578 = vmul.f32 %v569, 1.442695
    %v579 = vpow.pop %v578
    %v580 = vmul.f32 %v570, 1.442695
    %v581 = vpow.pop %v580
    %v582 = vmul.f32 %v571, 1.442695
    %v583 = vpow.pop %v582
    %v584 = vsub.f32 %v573, 1.0
    %v585 = vsub.f32 %v575, 1.0
    %v586 = vsub.f32 %v577, 1.0
    %v587 = vsub.f32 %v579, 1.0
    %v588 = vsub.f32 %v581, 1.0
    %v589 = vsub.f32 %v583, 1.0
    %v590 = vmul.f32 %v584, 1.6732632
    %v591 = vmul.f32 %v585, 1.6732632
    %v592 = vmul.f32 %v586, 1.6732632
    %v593 = vmul.f32 %v587, 1.6732632
    %v594 = vmul.f32 %v588, 1.6732632
    %v595 = vmul.f32 %v589, 1.6732632
    %vm596 = vcmp.gt.f32.partialorder %v534, 0.0
    %vm597 = vcmp.gt.f32.partialorder %v548, 0.0
    %vm598 = vcmp.gt.f32.partialorder %v562, 0.0
    %vm599 = vcmp.gt.f32.partialorder %v536, 0.0
    %vm600 = vcmp.gt.f32.partialorder %v550, 0.0
    %vm601 = vcmp.gt.f32.partialorder %v564, 0.0
    %v602 = vsel %vm596, %v534, %v590
    %v603 = vsel %vm597, %v548, %v591
    %v604 = vsel %vm598, %v562, %v592
    %v605 = vsel %vm599, %v536, %v593
    %v606 = vsel %vm600, %v550, %v594
    %v607 = vsel %vm601, %v564, %v595
    %v608 = vmul.f32 %v602, 1.050701
    %v609 = vmul.f32 %v603, 1.050701
    %v610 = vmul.f32 %v604, 1.050701
    %v611 = vmul.f32 %v605, 1.050701
    %v612 = vmul.f32 %v606, 1.050701
    %v613 = vmul.f32 %v607, 1.050701
    %v614 = vmul.f32 %v608, %v355
    %v615 = vmul.f32 %v609, %v356
    %v616 = vmul.f32 %v610, %v357
    %v617 = vmul.f32 %v611, %v355
    %v618 = vmul.f32 %v612, %v356
    %v619 = vmul.f32 %v613, %v357
    %626 = vrot.lane.b32.xlu0 %v614, 13
    %v627 = vpop.permute.xlu0 %626
    %628 = vrot.lane.b32.xlu0 %v615, 13
    %v629 = vpop.permute.xlu0 %628
    %630 = vrot.lane.b32.xlu0 %v616, 13
    %v631 = vpop.permute.xlu0 %630
    %632 = vrot.lane.b32.xlu0 %v617, 13
    %v633 = vpop.permute.xlu0 %632
    %634 = vrot.lane.b32.xlu0 %v618, 13
    %v635 = vpop.permute.xlu0 %634
    %636 = vrot.lane.b32.xlu0 %v619, 13
    %v637 = vpop.permute.xlu0 %636
    %v638 = vsel %vm373, %v627, %v629
    %v639 = vsel %vm373, %v629, %v631
    %v640 = vsel %vm373, %v633, %v635
    %v641 = vsel %vm373, %v635, %v637
    %648 = vst.msk [vmem:[#allocation2] sm:$0xff] %vm379, %v627
    %649 = vst [vmem:[#allocation2 + $0x8] sm:$0xff] %v638
    %650 = vst.msk [vmem:[#allocation2 + $0x10] sm:$0xff] %vm382, %v639
    %651 = vst.msk [vmem:[#allocation2 + $0x18] sm:$0xff] %vm379, %v633
    %652 = vst [vmem:[#allocation2 + $0x20] sm:$0xff] %v640
    %653 = vst.msk [vmem:[#allocation2 + $0x28] sm:$0xff] %vm382, %v641
    %v654 = vld [vmem:[#allocation2] sm:$0xff]
    %v655 = vld [vmem:[#allocation2 + $0x8] sm:$0xff]
    %v656 = vld [vmem:[#allocation2 + $0x10] sm:$0xff]
    %v657 = vld [vmem:[#allocation2 + $0x18] sm:$0xff]
    %v658 = vld [vmem:[#allocation2 + $0x20] sm:$0xff]
    %v659 = vld [vmem:[#allocation2 + $0x28] sm:$0xff]
    %666 = vrot.lane.b32.xlu0 %v654, 127
    %v667 = vpop.permute.xlu0 %666
    %668 = vrot.lane.b32.xlu0 %v655, 127
    %v669 = vpop.permute.xlu0 %668
    %670 = vrot.lane.b32.xlu0 %v656, 127
    %v671 = vpop.permute.xlu0 %670
    %672 = vrot.lane.b32.xlu0 %v657, 127
    %v673 = vpop.permute.xlu0 %672
    %674 = vrot.lane.b32.xlu0 %v658, 127
    %v675 = vpop.permute.xlu0 %674
    %676 = vrot.lane.b32.xlu0 %v659, 127
    %v677 = vpop.permute.xlu0 %676
    %v678 = vsel %vm165, %v667, %v669
    %v679 = vsel %vm165, %v669, %v671
    %v680 = vsel %vm165, %v673, %v675
    %v681 = vsel %vm165, %v675, %v677
    %688 = vrot.lane.b32.xlu0 %v654, 126
    %v689 = vpop.permute.xlu0 %688
    %690 = vrot.lane.b32.xlu0 %v655, 126
    %v691 = vpop.permute.xlu0 %690
    %692 = vrot.lane.b32.xlu0 %v656, 126
    %v693 = vpop.permute.xlu0 %692
    %694 = vrot.lane.b32.xlu0 %v657, 126
    %v695 = vpop.permute.xlu0 %694
    %696 = vrot.lane.b32.xlu0 %v658, 126
    %v697 = vpop.permute.xlu0 %696
    %698 = vrot.lane.b32.xlu0 %v659, 126
    %v699 = vpop.permute.xlu0 %698
    %v700 = vsel %vm177, %v689, %v691
    %v701 = vsel %vm177, %v691, %v693
    %v702 = vsel %vm177, %v695, %v697
    %v703 = vsel %vm177, %v697, %v699
    %710 = vrot.lane.b32.xlu0 %v654, 116
    %v711 = vpop.permute.xlu0 %710
    %712 = vrot.lane.b32.xlu0 %v655, 116
    %v713 = vpop.permute.xlu0 %712
    %714 = vrot.lane.b32.xlu0 %v656, 116
    %v715 = vpop.permute.xlu0 %714
    %716 = vrot.lane.b32.xlu0 %v657, 116
    %v717 = vpop.permute.xlu0 %716
    %718 = vrot.lane.b32.xlu0 %v658, 116
    %v719 = vpop.permute.xlu0 %718
    %720 = vrot.lane.b32.xlu0 %v659, 116
    %v721 = vpop.permute.xlu0 %720
    %v722 = vsel %vm189, %v711, %v713
    %v723 = vsel %vm189, %v713, %v715
    %v724 = vsel %vm189, %v717, %v719
    %v725 = vsel %vm189, %v719, %v721
    %732 = vrot.lane.b32.xlu0 %v654, 115
    %v733 = vpop.permute.xlu0 %732
    %734 = vrot.lane.b32.xlu0 %v655, 115
    %v735 = vpop.permute.xlu0 %734
    %736 = vrot.lane.b32.xlu0 %v656, 115
    %v737 = vpop.permute.xlu0 %736
    %738 = vrot.lane.b32.xlu0 %v657, 115
    %v739 = vpop.permute.xlu0 %738
    %740 = vrot.lane.b32.xlu0 %v658, 115
    %v741 = vpop.permute.xlu0 %740
    %742 = vrot.lane.b32.xlu0 %v659, 115
    %v743 = vpop.permute.xlu0 %742
    %v744 = vsel %vm201, %v733, %v735
    %v745 = vsel %vm201, %v735, %v737
    %v746 = vsel %vm201, %v739, %v741
    %v747 = vsel %vm201, %v741, %v743
    %754 = vrot.lane.b32.xlu0 %v654, 114
    %v755 = vpop.permute.xlu0 %754
    %756 = vrot.lane.b32.xlu0 %v655, 114
    %v757 = vpop.permute.xlu0 %756
    %758 = vrot.lane.b32.xlu0 %v656, 114
    %v759 = vpop.permute.xlu0 %758
    %760 = vrot.lane.b32.xlu0 %v657, 114
    %v761 = vpop.permute.xlu0 %760
    %762 = vrot.lane.b32.xlu0 %v658, 114
    %v763 = vpop.permute.xlu0 %762
    %764 = vrot.lane.b32.xlu0 %v659, 114
    %v765 = vpop.permute.xlu0 %764
    %v766 = vsel %vm213, %v755, %v757
    %v767 = vsel %vm213, %v757, %v759
    %v768 = vsel %vm213, %v761, %v763
    %v769 = vsel %vm213, %v763, %v765
    %776 = vrot.lane.b32.xlu0 %v654, 104
    %v777 = vpop.permute.xlu0 %776
    %778 = vrot.lane.b32.xlu0 %v655, 104
    %v779 = vpop.permute.xlu0 %778
    %780 = vrot.lane.b32.xlu0 %v656, 104
    %v781 = vpop.permute.xlu0 %780
    %782 = vrot.lane.b32.xlu0 %v657, 104
    %v783 = vpop.permute.xlu0 %782
    %784 = vrot.lane.b32.xlu0 %v658, 104
    %v785 = vpop.permute.xlu0 %784
    %786 = vrot.lane.b32.xlu0 %v659, 104
    %v787 = vpop.permute.xlu0 %786
    %v788 = vsel %vm225, %v777, %v779
    %v789 = vsel %vm225, %v779, %v781
    %v790 = vsel %vm225, %v783, %v785
    %v791 = vsel %vm225, %v785, %v787
    %798 = vrot.lane.b32.xlu0 %v654, 103
    %v799 = vpop.permute.xlu0 %798
    %800 = vrot.lane.b32.xlu0 %v655, 103
    %v801 = vpop.permute.xlu0 %800
    %802 = vrot.lane.b32.xlu0 %v656, 103
    %v803 = vpop.permute.xlu0 %802
    %804 = vrot.lane.b32.xlu0 %v657, 103
    %v805 = vpop.permute.xlu0 %804
    %806 = vrot.lane.b32.xlu0 %v658, 103
    %v807 = vpop.permute.xlu0 %806
    %808 = vrot.lane.b32.xlu0 %v659, 103
    %v809 = vpop.permute.xlu0 %808
    %v810 = vsel %vm237, %v799, %v801
    %v811 = vsel %vm237, %v801, %v803
    %v812 = vsel %vm237, %v805, %v807
    %v813 = vsel %vm237, %v807, %v809
    %820 = vrot.lane.b32.xlu0 %v654, 102
    %v821 = vpop.permute.xlu0 %820
    %822 = vrot.lane.b32.xlu0 %v655, 102
    %v823 = vpop.permute.xlu0 %822
    %824 = vrot.lane.b32.xlu0 %v656, 102
    %v825 = vpop.permute.xlu0 %824
    %826 = vrot.lane.b32.xlu0 %v657, 102
    %v827 = vpop.permute.xlu0 %826
    %828 = vrot.lane.b32.xlu0 %v658, 102
    %v829 = vpop.permute.xlu0 %828
    %830 = vrot.lane.b32.xlu0 %v659, 102
    %v831 = vpop.permute.xlu0 %830
    %v832 = vsel %vm249, %v821, %v823
    %v833 = vsel %vm249, %v823, %v825
    %v834 = vsel %vm249, %v827, %v829
    %v835 = vsel %vm249, %v829, %v831
    %v842 = vpack.c.bf16 %v657, %v654
    %v843 = vpack.c.bf16 %v658, %v655
    %v844 = vpack.c.bf16 %v659, %v656
    %v845 = vpack.c.bf16 %v680, %v678
    %v846 = vpack.c.bf16 %v681, %v679
    %v847 = vpack.c.bf16 %v677, %v671
    %v848 = vpack.c.bf16 %v702, %v700
    %v849 = vpack.c.bf16 %v703, %v701
    %v850 = vpack.c.bf16 %v699, %v693
    %v851 = vpack.c.bf16 %v724, %v722
    %v852 = vpack.c.bf16 %v725, %v723
    %v853 = vpack.c.bf16 %v721, %v715
    %v854 = vpack.c.bf16 %v746, %v744
    %v855 = vpack.c.bf16 %v747, %v745
    %v856 = vpack.c.bf16 %v743, %v737
    %v857 = vpack.c.bf16 %v768, %v766
    %v858 = vpack.c.bf16 %v769, %v767
    %v859 = vpack.c.bf16 %v765, %v759
    %v860 = vpack.c.bf16 %v790, %v788
    %v861 = vpack.c.bf16 %v791, %v789
    %v862 = vpack.c.bf16 %v787, %v781
    %v863 = vpack.c.bf16 %v812, %v810
    %v864 = vpack.c.bf16 %v813, %v811
    %v865 = vpack.c.bf16 %v809, %v803
    %v866 = vpack.c.bf16 %v834, %v832
    %v867 = vpack.c.bf16 %v835, %v833
    %v868 = vpack.c.bf16 %v831, %v825
    %v869 = vld [vmem:[#allocation10] sm:$0xff]
    %v870 = vld [vmem:[#allocation10 + $0x8] sm:$0xff]
    %v871 = vld [vmem:[#allocation10 + $0x10] sm:$0xff]
    %v872 = vld [vmem:[#allocation10 + $0x18] sm:$0xff]
    %v873 = vld [vmem:[%s7] sm:$0xff]
    %v874 = vld [vmem:[%s7 + $0x8] sm:$0xff]
    %v875 = vld [vmem:[%s7 + $0x10] sm:$0xff]
    %v876 = vld [vmem:[%s7 + $0x18] sm:$0xff]
    %878 = vset.pattern.permute.xlu0 0
    %879 = vperm.xlu0 %878, %v873
    %v880 = vpop.permute.xlu0 %879
    %883 = vset.pattern.permute.xlu0 0
    %884 = vperm.xlu0 %883, %v874
    %v885 = vpop.permute.xlu0 %884
    %888 = vset.pattern.permute.xlu0 0
    %889 = vperm.xlu0 %888, %v875
    %v890 = vpop.permute.xlu0 %889
    %893 = vset.pattern.permute.xlu0 0
    %894 = vperm.xlu0 %893, %v876
    %v895 = vpop.permute.xlu0 %894
    %v901 = vunpack.c.l.b16 %v869
    %v902 = vunpack.c.h.b16 %v869
    %v903 = vunpack.c.l.b16 %v870
    %v904 = vunpack.c.h.b16 %v870
    %v905 = vunpack.c.l.b16 %v871
    %v906 = vunpack.c.h.b16 %v871
    %v907 = vunpack.c.l.b16 %v872
    %v908 = vunpack.c.h.b16 %v872
    %v909 = vpack.c.b16 %v903, %v901
    %v910 = vpack.c.b16 %v904, %v902
    %v911 = vpack.c.b16 %v907, %v905
    %v912 = vpack.c.b16 %v908, %v906
    %vm915 = vcmask 130048
    %v917 = vsel %vm915, %v910, 0
    %v920 = vsel %vm915, %v912, 0
    %922 = vmatpush.bf16.msra.mxu0 %v863
    %923 = vmatpush.bf16.msra.mxu0 %v860
    %924 = vmatpush.bf16.msra.mxu0 %v857
    %925 = vmatpush.bf16.msra.mxu0 %v854
    %926 = vmatpush.bf16.msra.mxu0 %v851
    %927 = vmatpush.bf16.msra.mxu0 %v848
    %928 = vmatpush.bf16.msra.mxu0 %v845
    %929 = vmatpush.bf16.msra.mxu0 %v842
    %930 = vmatmul.bf16.gmra.mxu0 %v909
    %v931 = vpop.f32.mrf.mxu0
    %v932 = vadd.f32 %v880, %v931
    %v933 = vpop.f32.mrf.mxu0
    %v934 = vadd.f32 %v885, %v933
    %935 = vmatmul.bf16.gmra.mxu0 %v911
    %v936 = vpop.f32.mrf.mxu0
    %v937 = vadd.f32 %v890, %v936
    %v938 = vpop.f32.mrf.mxu0
    %v939 = vadd.f32 %v895, %v938
    %940 = vdwg.mxu0
    %941 = vmatpush.bf16.msra.mxu0 0
    %942 = vmatpush.bf16.msra.mxu0 0
    %943 = vmatpush.bf16.msra.mxu0 0
    %944 = vmatpush.bf16.msra.mxu0 0
    %945 = vmatpush.bf16.msra.mxu0 0
    %946 = vmatpush.bf16.msra.mxu0 0
    %947 = vmatpush.bf16.msra.mxu0 0
    %948 = vmatpush.bf16.msra.mxu0 %v866
    %949 = vmatmul.bf16.gmra.mxu0 %v917
    %v950 = vpop.f32.mrf.mxu0
    %v951 = vadd.f32 %v932, %v950
    %v952 = vpop.f32.mrf.mxu0
    %v953 = vadd.f32 %v934, %v952
    %954 = vmatmul.bf16.gmra.mxu0 %v920
    %v955 = vpop.f32.mrf.mxu0
    %v956 = vadd.f32 %v937, %v955
    %v957 = vpop.f32.mrf.mxu0
    %v958 = vadd.f32 %v939, %v957
    %959 = vdwg.mxu0
    %960 = vmatpush.bf16.msra.mxu0 %v864
    %961 = vmatpush.bf16.msra.mxu0 %v861
    %962 = vmatpush.bf16.msra.mxu0 %v858
    %963 = vmatpush.bf16.msra.mxu0 %v855
    %964 = vmatpush.bf16.msra.mxu0 %v852
    %965 = vmatpush.bf16.msra.mxu0 %v849
    %966 = vmatpush.bf16.msra.mxu0 %v846
    %967 = vmatpush.bf16.msra.mxu0 %v843
    %968 = vmatmul.bf16.gmra.mxu0 %v909
    %v969 = vpop.f32.mrf.mxu0
    %v970 = vadd.f32 %v880, %v969
    %v971 = vpop.f32.mrf.mxu0
    %v972 = vadd.f32 %v885, %v971
    %973 = vmatmul.bf16.gmra.mxu0 %v911
    %v974 = vpop.f32.mrf.mxu0
    %v975 = vadd.f32 %v890, %v974
    %v976 = vpop.f32.mrf.mxu0
    %v977 = vadd.f32 %v895, %v976
    %978 = vdwg.mxu0
    %979 = vmatpush.bf16.msra.mxu0 0
    %980 = vmatpush.bf16.msra.mxu0 0
    %981 = vmatpush.bf16.msra.mxu0 0
    %982 = vmatpush.bf16.msra.mxu0 0
    %983 = vmatpush.bf16.msra.mxu0 0
    %984 = vmatpush.bf16.msra.mxu0 0
    %985 = vmatpush.bf16.msra.mxu0 0
    %986 = vmatpush.bf16.msra.mxu0 %v867
    %987 = vmatmul.bf16.gmra.mxu0 %v917
    %v988 = vpop.f32.mrf.mxu0
    %v989 = vadd.f32 %v970, %v988
    %v990 = vpop.f32.mrf.mxu0
    %v991 = vadd.f32 %v972, %v990
    %992 = vmatmul.bf16.gmra.mxu0 %v920
    %v993 = vpop.f32.mrf.mxu0
    %v994 = vadd.f32 %v975, %v993
    %v995 = vpop.f32.mrf.mxu0
    %v996 = vadd.f32 %v977, %v995
    %997 = vdwg.mxu0
    %998 = vmatpush.bf16.msra.mxu0 %v865
    %999 = vmatpush.bf16.msra.mxu0 %v862
    %1000 = vmatpush.bf16.msra.mxu0 %v859
    %1001 = vmatpush.bf16.msra.mxu0 %v856
    %1002 = vmatpush.bf16.msra.mxu0 %v853
    %1003 = vmatpush.bf16.msra.mxu0 %v850
    %1004 = vmatpush.bf16.msra.mxu0 %v847
    %1005 = vmatpush.bf16.msra.mxu0 %v844
    %1006 = vmatmul.bf16.gmra.mxu0 %v909
    %v1007 = vpop.f32.mrf.mxu0
    %v1008 = vadd.f32 %v880, %v1007
    %v1009 = vpop.f32.mrf.mxu0
    %v1010 = vadd.f32 %v885, %v1009
    %1011 = vmatmul.bf16.gmra.mxu0 %v911
    %v1012 = vpop.f32.mrf.mxu0
    %v1013 = vadd.f32 %v890, %v1012
    %v1014 = vpop.f32.mrf.mxu0
    %v1015 = vadd.f32 %v895, %v1014
    %1016 = vdwg.mxu0
    %1017 = vmatpush.bf16.msra.mxu0 0
    %1018 = vmatpush.bf16.msra.mxu0 0
    %1019 = vmatpush.bf16.msra.mxu0 0
    %1020 = vmatpush.bf16.msra.mxu0 0
    %1021 = vmatpush.bf16.msra.mxu0 0
    %1022 = vmatpush.bf16.msra.mxu0 0
    %1023 = vmatpush.bf16.msra.mxu0 0
    %1024 = vmatpush.bf16.msra.mxu0 %v868
    %1025 = vmatmul.bf16.gmra.mxu0 %v917
    %v1026 = vpop.f32.mrf.mxu0
    %v1027 = vadd.f32 %v1008, %v1026
    %v1028 = vpop.f32.mrf.mxu0
    %v1029 = vadd.f32 %v1010, %v1028
    %1030 = vmatmul.bf16.gmra.mxu0 %v920
    %v1031 = vpop.f32.mrf.mxu0
    %v1032 = vadd.f32 %v1013, %v1031
    %v1033 = vpop.f32.mrf.mxu0
    %v1034 = vadd.f32 %v1015, %v1033
    %1035 = vdwg.mxu0
    %v1036 = vmin.f32 %v951, 0.0
    %v1037 = vmin.f32 %v989, 0.0
    %v1038 = vmin.f32 %v1027, 0.0
    %v1039 = vmin.f32 %v953, 0.0
    %v1040 = vmin.f32 %v991, 0.0
    %v1041 = vmin.f32 %v1029, 0.0
    %v1042 = vmin.f32 %v956, 0.0
    %v1043 = vmin.f32 %v994, 0.0
    %v1044 = vmin.f32 %v1032, 0.0
    %v1045 = vmin.f32 %v958, 0.0
    %v1046 = vmin.f32 %v996, 0.0
    %v1047 = vmin.f32 %v1034, 0.0
    %v1048 = vmul.f32 %v1036, 1.442695
    %v1049 = vpow.pop %v1048
    %v1050 = vmul.f32 %v1037, 1.442695
    %v1051 = vpow.pop %v1050
    %v1052 = vmul.f32 %v1038, 1.442695
    %v1053 = vpow.pop %v1052
    %v1054 = vmul.f32 %v1039, 1.442695
    %v1055 = vpow.pop %v1054
    %v1056 = vmul.f32 %v1040, 1.442695
    %v1057 = vpow.pop %v1056
    %v1058 = vmul.f32 %v1041, 1.442695
    %v1059 = vpow.pop %v1058
    %v1060 = vmul.f32 %v1042, 1.442695
    %v1061 = vpow.pop %v1060
    %v1062 = vmul.f32 %v1043, 1.442695
    %v1063 = vpow.pop %v1062
    %v1064 = vmul.f32 %v1044, 1.442695
    %v1065 = vpow.pop %v1064
    %v1066 = vmul.f32 %v1045, 1.442695
    %v1067 = vpow.pop %v1066
    %v1068 = vmul.f32 %v1046, 1.442695
    %v1069 = vpow.pop %v1068
    %v1070 = vmul.f32 %v1047, 1.442695
    %v1071 = vpow.pop %v1070
    %v1072 = vsub.f32 %v1049, 1.0
    %v1073 = vsub.f32 %v1051, 1.0
    %v1074 = vsub.f32 %v1053, 1.0
    %v1075 = vsub.f32 %v1055, 1.0
    %v1076 = vsub.f32 %v1057, 1.0
    %v1077 = vsub.f32 %v1059, 1.0
    %v1078 = vsub.f32 %v1061, 1.0
    %v1079 = vsub.f32 %v1063, 1.0
    %v1080 = vsub.f32 %v1065, 1.0
    %v1081 = vsub.f32 %v1067, 1.0
    %v1082 = vsub.f32 %v1069, 1.0
    %v1083 = vsub.f32 %v1071, 1.0
    %v1084 = vmul.f32 %v1072, 1.6732632
    %v1085 = vmul.f32 %v1073, 1.6732632
    %v1086 = vmul.f32 %v1074, 1.6732632
    %v1087 = vmul.f32 %v1075, 1.6732632
    %v1088 = vmul.f32 %v1076, 1.6732632
    %v1089 = vmul.f32 %v1077, 1.6732632
    %v1090 = vmul.f32 %v1078, 1.6732632
    %v1091 = vmul.f32 %v1079, 1.6732632
    %v1092 = vmul.f32 %v1080, 1.6732632
    %v1093 = vmul.f32 %v1081, 1.6732632
    %v1094 = vmul.f32 %v1082, 1.6732632
    %v1095 = vmul.f32 %v1083, 1.6732632
    %vm1096 = vcmp.gt.f32.partialorder %v951, 0.0
    %vm1097 = vcmp.gt.f32.partialorder %v989, 0.0
    %vm1098 = vcmp.gt.f32.partialorder %v1027, 0.0
    %vm1099 = vcmp.gt.f32.partialorder %v953, 0.0
    %vm1100 = vcmp.gt.f32.partialorder %v991, 0.0
    %vm1101 = vcmp.gt.f32.partialorder %v1029, 0.0
    %vm1102 = vcmp.gt.f32.partialorder %v956, 0.0
    %vm1103 = vcmp.gt.f32.partialorder %v994, 0.0
    %vm1104 = vcmp.gt.f32.partialorder %v1032, 0.0
    %vm1105 = vcmp.gt.f32.partialorder %v958, 0.0
    %vm1106 = vcmp.gt.f32.partialorder %v996, 0.0
    %vm1107 = vcmp.gt.f32.partialorder %v1034, 0.0
    %v1108 = vsel %vm1096, %v951, %v1084
    %v1109 = vsel %vm1097, %v989, %v1085
    %v1110 = vsel %vm1098, %v1027, %v1086
    %v1111 = vsel %vm1099, %v953, %v1087
    %v1112 = vsel %vm1100, %v991, %v1088
    %v1113 = vsel %vm1101, %v1029, %v1089
    %v1114 = vsel %vm1102, %v956, %v1090
    %v1115 = vsel %vm1103, %v994, %v1091
    %v1116 = vsel %vm1104, %v1032, %v1092
    %v1117 = vsel %vm1105, %v958, %v1093
    %v1118 = vsel %vm1106, %v996, %v1094
    %v1119 = vsel %vm1107, %v1034, %v1095
    %v1120 = vmul.f32 %v1108, 1.050701
    %v1121 = vmul.f32 %v1109, 1.050701
    %v1122 = vmul.f32 %v1110, 1.050701
    %v1123 = vmul.f32 %v1111, 1.050701
    %v1124 = vmul.f32 %v1112, 1.050701
    %v1125 = vmul.f32 %v1113, 1.050701
    %v1126 = vmul.f32 %v1114, 1.050701
    %v1127 = vmul.f32 %v1115, 1.050701
    %v1128 = vmul.f32 %v1116, 1.050701
    %v1129 = vmul.f32 %v1117, 1.050701
    %v1130 = vmul.f32 %v1118, 1.050701
    %v1131 = vmul.f32 %v1119, 1.050701
    %v1132 = vmul.f32 %v1120, %v355
    %v1133 = vmul.f32 %v1121, %v356
    %v1134 = vmul.f32 %v1122, %v357
    %v1135 = vmul.f32 %v1123, %v355
    %v1136 = vmul.f32 %v1124, %v356
    %v1137 = vmul.f32 %v1125, %v357
    %v1138 = vmul.f32 %v1126, %v355
    %v1139 = vmul.f32 %v1127, %v356
    %v1140 = vmul.f32 %v1128, %v357
    %v1141 = vmul.f32 %v1129, %v355
    %v1142 = vmul.f32 %v1130, %v356
    %v1143 = vmul.f32 %v1131, %v357
    %v1145 = vrot.slane %v1132, 1
    %1146 = vrot.lane.b32.xlu0 %v1145, 118
    %v1147 = vpop.permute.xlu0 %1146
    %v1149 = vrot.slane %v1132, 2
    %1150 = vrot.lane.b32.xlu0 %v1149, 108
    %v1151 = vpop.permute.xlu0 %1150
    %v1153 = vrot.slane %v1132, 3
    %1154 = vrot.lane.b32.xlu0 %v1153, 98
    %v1155 = vpop.permute.xlu0 %1154
    %v1157 = vrot.slane %v1132, 4
    %1158 = vrot.lane.b32.xlu0 %v1157, 88
    %v1159 = vpop.permute.xlu0 %1158
    %v1161 = vrot.slane %v1132, 5
    %1162 = vrot.lane.b32.xlu0 %v1161, 78
    %v1163 = vpop.permute.xlu0 %1162
    %v1165 = vrot.slane %v1132, 6
    %1166 = vrot.lane.b32.xlu0 %v1165, 68
    %v1167 = vpop.permute.xlu0 %1166
    %v1169 = vrot.slane %v1132, 7
    %1170 = vrot.lane.b32.xlu0 %v1169, 58
    %v1171 = vpop.permute.xlu0 %1170
    %1174 = vrot.lane.b32.xlu0 %v1135, 48
    %v1175 = vpop.permute.xlu0 %1174
    %v1177 = vrot.slane %v1135, 1
    %1178 = vrot.lane.b32.xlu0 %v1177, 38
    %v1179 = vpop.permute.xlu0 %1178
    %v1181 = vrot.slane %v1135, 2
    %1182 = vrot.lane.b32.xlu0 %v1181, 28
    %v1183 = vpop.permute.xlu0 %1182
    %v1185 = vrot.slane %v1135, 3
    %1186 = vrot.lane.b32.xlu0 %v1185, 18
    %v1187 = vpop.permute.xlu0 %1186
    %v1189 = vrot.slane %v1135, 4
    %1190 = vrot.lane.b32.xlu0 %v1189, 8
    %v1191 = vpop.permute.xlu0 %1190
    %v1193 = vrot.slane %v1135, 5
    %1194 = vrot.lane.b32.xlu0 %v1193, 126
    %v1195 = vpop.permute.xlu0 %1194
    %v1197 = vrot.slane %v1135, 6
    %1198 = vrot.lane.b32.xlu0 %v1197, 116
    %v1199 = vpop.permute.xlu0 %1198
    %v1201 = vrot.slane %v1135, 7
    %1202 = vrot.lane.b32.xlu0 %v1201, 106
    %v1203 = vpop.permute.xlu0 %1202
    %vm1205 = vcmask 965632
    %v1206 = vsel %vm1205, %v1132, %v1147
    %vm1207 = vcmask 883712
    %v1208 = vsel %vm1207, %v1147, %v1151
    %vm1209 = vcmask 801792
    %v1210 = vsel %vm1209, %v1151, %v1155
    %vm1211 = vcmask 719872
    %v1212 = vsel %vm1211, %v1155, %v1159
    %vm1213 = vcmask 637952
    %v1214 = vsel %vm1213, %v1159, %v1163
    %vm1215 = vcmask 556032
    %v1216 = vsel %vm1215, %v1163, %v1167
    %vm1217 = vcmask 474112
    %v1218 = vsel %vm1217, %v1167, %v1171
    %vm1219 = vcmask 392192
    %v1220 = vsel %vm1219, %v1171, %v1175
    %vm1221 = vcmask 310272
    %v1222 = vsel %vm1221, %v1175, %v1179
    %vm1223 = vcmask 228352
    %v1224 = vsel %vm1223, %v1179, %v1183
    %vm1225 = vcmask 146432
    %v1226 = vsel %vm1225, %v1183, %v1187
    %vm1227 = vcmask 64512
    %v1228 = vsel %vm1227, %v1187, %v1191
    %v1229 = vsel %vm177, %v1228, %v1195
    %v1230 = vsel %vm189, %v1195, %v1199
    %vm1231 = vcmask 867328
    %v1232 = vsel %vm1231, %v1199, %v1203
    %v1234 = vrot.slane %v1138, 1
    %1235 = vrot.lane.b32.xlu0 %v1234, 118
    %v1236 = vpop.permute.xlu0 %1235
    %v1238 = vrot.slane %v1138, 2
    %1239 = vrot.lane.b32.xlu0 %v1238, 108
    %v1240 = vpop.permute.xlu0 %1239
    %v1242 = vrot.slane %v1138, 3
    %1243 = vrot.lane.b32.xlu0 %v1242, 98
    %v1244 = vpop.permute.xlu0 %1243
    %v1246 = vrot.slane %v1138, 4
    %1247 = vrot.lane.b32.xlu0 %v1246, 88
    %v1248 = vpop.permute.xlu0 %1247
    %v1250 = vrot.slane %v1138, 5
    %1251 = vrot.lane.b32.xlu0 %v1250, 78
    %v1252 = vpop.permute.xlu0 %1251
    %v1254 = vrot.slane %v1138, 6
    %1255 = vrot.lane.b32.xlu0 %v1254, 68
    %v1256 = vpop.permute.xlu0 %1255
    %v1258 = vrot.slane %v1138, 7
    %1259 = vrot.lane.b32.xlu0 %v1258, 58
    %v1260 = vpop.permute.xlu0 %1259
    %1263 = vrot.lane.b32.xlu0 %v1141, 48
    %v1264 = vpop.permute.xlu0 %1263
    %v1266 = vrot.slane %v1141, 1
    %1267 = vrot.lane.b32.xlu0 %v1266, 38
    %v1268 = vpop.permute.xlu0 %1267
    %v1270 = vrot.slane %v1141, 2
    %1271 = vrot.lane.b32.xlu0 %v1270, 28
    %v1272 = vpop.permute.xlu0 %1271
    %v1274 = vrot.slane %v1141, 3
    %1275 = vrot.lane.b32.xlu0 %v1274, 18
    %v1276 = vpop.permute.xlu0 %1275
    %v1278 = vrot.slane %v1141, 4
    %1279 = vrot.lane.b32.xlu0 %v1278, 8
    %v1280 = vpop.permute.xlu0 %1279
    %v1282 = vrot.slane %v1141, 5
    %1283 = vrot.lane.b32.xlu0 %v1282, 126
    %v1284 = vpop.permute.xlu0 %1283
    %v1286 = vrot.slane %v1141, 6
    %1287 = vrot.lane.b32.xlu0 %v1286, 116
    %v1288 = vpop.permute.xlu0 %1287
    %v1290 = vrot.slane %v1141, 7
    %1291 = vrot.lane.b32.xlu0 %v1290, 106
    %v1292 = vpop.permute.xlu0 %1291
    %v1294 = vsel %vm1205, %v1138, %v1236
    %v1295 = vsel %vm1207, %v1236, %v1240
    %v1296 = vsel %vm1209, %v1240, %v1244
    %v1297 = vsel %vm1211, %v1244, %v1248
    %v1298 = vsel %vm1213, %v1248, %v1252
    %v1299 = vsel %vm1215, %v1252, %v1256
    %v1300 = vsel %vm1217, %v1256, %v1260
    %v1301 = vsel %vm1219, %v1260, %v1264
    %v1302 = vsel %vm1221, %v1264, %v1268
    %v1303 = vsel %vm1223, %v1268, %v1272
    %v1304 = vsel %vm1225, %v1272, %v1276
    %v1305 = vsel %vm1227, %v1276, %v1280
    %v1306 = vsel %vm177, %v1305, %v1284
    %v1307 = vsel %vm189, %v1284, %v1288
    %v1308 = vsel %vm1231, %v1288, %v1292
    %1323 = vrot.lane.b32.xlu0 %v1294, 96
    %v1324 = vpop.permute.xlu0 %1323
    %1325 = vrot.lane.b32.xlu0 %v1295, 96
    %v1326 = vpop.permute.xlu0 %1325
    %1327 = vrot.lane.b32.xlu0 %v1296, 96
    %v1328 = vpop.permute.xlu0 %1327
    %1329 = vrot.lane.b32.xlu0 %v1297, 96
    %v1330 = vpop.permute.xlu0 %1329
    %1331 = vrot.lane.b32.xlu0 %v1298, 96
    %v1332 = vpop.permute.xlu0 %1331
    %1333 = vrot.lane.b32.xlu0 %v1299, 96
    %v1334 = vpop.permute.xlu0 %1333
    %1335 = vrot.lane.b32.xlu0 %v1300, 96
    %v1336 = vpop.permute.xlu0 %1335
    %1337 = vrot.lane.b32.xlu0 %v1301, 96
    %v1338 = vpop.permute.xlu0 %1337
    %1339 = vrot.lane.b32.xlu0 %v1302, 96
    %v1340 = vpop.permute.xlu0 %1339
    %1341 = vrot.lane.b32.xlu0 %v1303, 96
    %v1342 = vpop.permute.xlu0 %1341
    %1343 = vrot.lane.b32.xlu0 %v1304, 96
    %v1344 = vpop.permute.xlu0 %1343
    %1345 = vrot.lane.b32.xlu0 %v1306, 96
    %v1346 = vpop.permute.xlu0 %1345
    %1347 = vrot.lane.b32.xlu0 %v1307, 96
    %v1348 = vpop.permute.xlu0 %1347
    %1349 = vrot.lane.b32.xlu0 %v1308, 96
    %v1350 = vpop.permute.xlu0 %1349
    %1351 = vrot.lane.b32.xlu0 %v1292, 96
    %v1352 = vpop.permute.xlu0 %1351
    %vm1353 = vcmask 785408
    %v1354 = vsel %vm1353, %v1324, %v1326
    %v1355 = vsel %vm1353, %v1326, %v1328
    %v1356 = vsel %vm1353, %v1328, %v1330
    %v1357 = vsel %vm1353, %v1330, %v1332
    %v1358 = vsel %vm1353, %v1332, %v1334
    %v1359 = vsel %vm1353, %v1334, %v1336
    %v1360 = vsel %vm1353, %v1336, %v1338
    %v1361 = vsel %vm1353, %v1338, %v1340
    %v1362 = vsel %vm1353, %v1340, %v1342
    %v1363 = vsel %vm1353, %v1342, %v1344
    %v1364 = vsel %vm1353, %v1344, %v1346
    %v1365 = vsel %vm1353, %v1346, %v1348
    %v1366 = vsel %vm1353, %v1348, %v1350
    %v1367 = vsel %vm1353, %v1350, %v1352
    %v1369 = vsel %vm1353, %v1203, %v1324
    %v1385 = vrot.slane %v1208, 7
    %v1386 = vrot.slane %v1210, 6
    %v1387 = vrot.slane %v1212, 5
    %v1388 = vrot.slane %v1214, 4
    %v1389 = vrot.slane %v1216, 3
    %v1390 = vrot.slane %v1218, 2
    %v1391 = vrot.slane %v1220, 1
    %v1392 = vrot.slane %v1224, 7
    %v1393 = vrot.slane %v1226, 6
    %v1394 = vrot.slane %v1229, 5
    %v1395 = vrot.slane %v1230, 4
    %v1396 = vrot.slane %v1232, 3
    %v1397 = vrot.slane %v1369, 2
    %v1398 = vrot.slane %v1354, 1
    %v1399 = vrot.slane %v1356, 7
    %v1400 = vrot.slane %v1357, 6
    %v1401 = vrot.slane %v1358, 5
    %v1402 = vrot.slane %v1359, 4
    %v1403 = vrot.slane %v1360, 3
    %v1404 = vrot.slane %v1361, 2
    %v1405 = vrot.slane %v1362, 1
    %v1406 = vrot.slane %v1364, 7
    %v1407 = vrot.slane %v1365, 6
    %v1408 = vrot.slane %v1366, 5
    %v1409 = vrot.slane %v1367, 4
    %v1410 = vrot.slane %v1352, 3
    %vm1411 = vcmask 1040384
    %v1412 = vsel %vm1411, %v1206, %v1385
    %vm1413 = vcmask 1042434
    %v1414 = vsel %vm1413, %v1386, %v1387
    %vm1415 = vcmask 1041408
    %v1416 = vsel %vm1415, %v1412, %v1414
    %vm1417 = vcmask 1044484
    %v1418 = vsel %vm1417, %v1388, %v1389
    %vm1419 = vcmask 1046534
    %v1420 = vsel %vm1419, %v1390, %v1391
    %vm1421 = vcmask 1045508
    %v1422 = vsel %vm1421, %v1418, %v1420
    %v1423 = vsel %vm281, %v1416, %v1422
    %v1424 = vsel %vm1411, %v1222, %v1392
    %v1425 = vsel %vm1413, %v1393, %v1394
    %v1426 = vsel %vm1415, %v1424, %v1425
    %v1427 = vsel %vm1417, %v1395, %v1396
    %v1428 = vsel %vm1419, %v1397, %v1398
    %v1429 = vsel %vm1421, %v1427, %v1428
    %v1430 = vsel %vm281, %v1426, %v1429
    %v1431 = vsel %vm1411, %v1355, %v1399
    %v1432 = vsel %vm1413, %v1400, %v1401
    %v1433 = vsel %vm1415, %v1431, %v1432
    %v1434 = vsel %vm1417, %v1402, %v1403
    %v1435 = vsel %vm1419, %v1404, %v1405
    %v1436 = vsel %vm1421, %v1434, %v1435
    %v1437 = vsel %vm281, %v1433, %v1436
    %v1438 = vsel %vm1411, %v1363, %v1406
    %v1439 = vsel %vm1415, %v1438, %v1407
    %vm1440 = vcmask 1043459
    %v1441 = vsel %vm1440, %v1408, %v1409
    %vm1442 = vcmask 1044483
    %v1443 = vsel %vm1442, %v1441, %v1410
    %vm1444 = vcmask 1042432
    %v1445 = vsel %vm1444, %v1439, %v1443
    %1450 = vst [vmem:[#allocation3] ss:$2 sm:$0xff] %v1423
    %s1451 = scalar_lea.vmem [#allocation3], 16
    %1452 = vst [vmem:[%s1451] ss:$2 sm:$0xff] %v1430
    %s1453 = scalar_lea.vmem [#allocation3], 32
    %1454 = vst [vmem:[%s1453] ss:$2 sm:$0xff] %v1437
    %v1455 = vlaneseq
    %vm1456 = vcmp.ge.s32.totalorder %v1455, 0
    %vm1457 = vcmp.lt.s32.totalorder %v1455, 704
    %vm1458 = vmand %vm1456, %vm1457
    %s1459 = scalar_lea.vmem [#allocation3], 48
    %1460 = vst.msk [vmem:[%s1459] ss:$2 sm:$0x3f] %vm1458, %v1445
    %1463 = vrot.lane.b32.xlu0 %v1133, 112
    %v1464 = vpop.permute.xlu0 %1463
    %1465 = vrot.lane.b32.xlu0 %v1134, 112
    %v1466 = vpop.permute.xlu0 %1465
    %vm1467 = vcmask 916480
    %v1468 = vsel %vm1467, %v1464, %v1466
    %v1470 = vrot.slane %v1133, 1
    %v1471 = vrot.slane %v1134, 1
    %1472 = vrot.lane.b32.xlu0 %v1470, 102
    %v1473 = vpop.permute.xlu0 %1472
    %1474 = vrot.lane.b32.xlu0 %v1471, 102
    %v1475 = vpop.permute.xlu0 %1474
    %v1476 = vsel %vm249, %v1473, %v1475
    %v1479 = vrot.slane %v1133, 2
    %v1480 = vrot.slane %v1134, 2
    %1481 = vrot.lane.b32.xlu0 %v1479, 92
    %v1482 = vpop.permute.xlu0 %1481
    %1483 = vrot.lane.b32.xlu0 %v1480, 92
    %v1484 = vpop.permute.xlu0 %1483
    %vm1485 = vcmask 752640
    %v1486 = vsel %vm1485, %v1482, %v1484
    %v1489 = vrot.slane %v1133, 3
    %v1490 = vrot.slane %v1134, 3
    %1491 = vrot.lane.b32.xlu0 %v1489, 82
    %v1492 = vpop.permute.xlu0 %1491
    %1493 = vrot.lane.b32.xlu0 %v1490, 82
    %v1494 = vpop.permute.xlu0 %1493
    %vm1495 = vcmask 670720
    %v1496 = vsel %vm1495, %v1492, %v1494
    %v1499 = vrot.slane %v1133, 4
    %v1500 = vrot.slane %v1134, 4
    %1501 = vrot.lane.b32.xlu0 %v1499, 72
    %v1502 = vpop.permute.xlu0 %1501
    %1503 = vrot.lane.b32.xlu0 %v1500, 72
    %v1504 = vpop.permute.xlu0 %1503
    %v1505 = vsel %vm277, %v1502, %v1504
    %v1508 = vrot.slane %v1133, 5
    %v1509 = vrot.slane %v1134, 5
    %1510 = vrot.lane.b32.xlu0 %v1508, 62
    %v1511 = vpop.permute.xlu0 %1510
    %1512 = vrot.lane.b32.xlu0 %v1509, 62
    %v1513 = vpop.permute.xlu0 %1512
    %vm1514 = vcmask 506880
    %v1515 = vsel %vm1514, %v1511, %v1513
    %v1518 = vrot.slane %v1133, 6
    %v1519 = vrot.slane %v1134, 6
    %1520 = vrot.lane.b32.xlu0 %v1518, 52
    %v1521 = vpop.permute.xlu0 %1520
    %1522 = vrot.lane.b32.xlu0 %v1519, 52
    %v1523 = vpop.permute.xlu0 %1522
    %vm1524 = vcmask 424960
    %v1525 = vsel %vm1524, %v1521, %v1523
    %v1528 = vrot.slane %v1133, 7
    %v1529 = vrot.slane %v1134, 7
    %1530 = vrot.lane.b32.xlu0 %v1528, 42
    %v1531 = vpop.permute.xlu0 %1530
    %1532 = vrot.lane.b32.xlu0 %v1529, 42
    %v1533 = vpop.permute.xlu0 %1532
    %vm1534 = vcmask 343040
    %v1535 = vsel %vm1534, %v1531, %v1533
    %1540 = vrot.lane.b32.xlu0 %v1136, 32
    %v1541 = vpop.permute.xlu0 %1540
    %1542 = vrot.lane.b32.xlu0 %v1137, 32
    %v1543 = vpop.permute.xlu0 %1542
    %v1544 = vsel %vm148, %v1541, %v1543
    %v1547 = vrot.slane %v1136, 1
    %v1548 = vrot.slane %v1137, 1
    %1549 = vrot.lane.b32.xlu0 %v1547, 22
    %v1550 = vpop.permute.xlu0 %1549
    %1551 = vrot.lane.b32.xlu0 %v1548, 22
    %v1552 = vpop.permute.xlu0 %1551
    %vm1553 = vcmask 179200
    %v1554 = vsel %vm1553, %v1550, %v1552
    %v1557 = vrot.slane %v1136, 2
    %v1558 = vrot.slane %v1137, 2
    %1559 = vrot.lane.b32.xlu0 %v1557, 12
    %v1560 = vpop.permute.xlu0 %1559
    %1561 = vrot.lane.b32.xlu0 %v1558, 12
    %v1562 = vpop.permute.xlu0 %1561
    %vm1563 = vcmask 97280
    %v1564 = vsel %vm1563, %v1560, %v1562
    %v1567 = vrot.slane %v1136, 3
    %v1568 = vrot.slane %v1137, 3
    %1569 = vrot.lane.b32.xlu0 %v1567, 2
    %v1570 = vpop.permute.xlu0 %1569
    %1571 = vrot.lane.b32.xlu0 %v1568, 2
    %v1572 = vpop.permute.xlu0 %1571
    %vm1573 = vcmask 15360
    %v1574 = vsel %vm1573, %v1570, %v1572
    %v1577 = vrot.slane %v1136, 4
    %v1578 = vrot.slane %v1137, 4
    %1579 = vrot.lane.b32.xlu0 %v1577, 120
    %v1580 = vpop.permute.xlu0 %1579
    %1581 = vrot.lane.b32.xlu0 %v1578, 120
    %v1582 = vpop.permute.xlu0 %1581
    %vm1583 = vcmask 982016
    %v1584 = vsel %vm1583, %v1580, %v1582
    %v1586 = vrot.slane %v1136, 5
    %v1587 = vrot.slane %v1137, 5
    %1588 = vrot.lane.b32.xlu0 %v1586, 110
    %v1589 = vpop.permute.xlu0 %1588
    %1590 = vrot.lane.b32.xlu0 %v1587, 110
    %v1591 = vpop.permute.xlu0 %1590
    %vm1592 = vcmask 900096
    %v1593 = vsel %vm1592, %v1589, %v1591
    %v1596 = vrot.slane %v1136, 6
    %v1597 = vrot.slane %v1137, 6
    %1598 = vrot.lane.b32.xlu0 %v1596, 100
    %v1599 = vpop.permute.xlu0 %1598
    %1600 = vrot.lane.b32.xlu0 %v1597, 100
    %v1601 = vpop.permute.xlu0 %1600
    %vm1602 = vcmask 818176
    %v1603 = vsel %vm1602, %v1599, %v1601
    %v1606 = vrot.slane %v1136, 7
    %v1607 = vrot.slane %v1137, 7
    %1608 = vrot.lane.b32.xlu0 %v1606, 90
    %v1609 = vpop.permute.xlu0 %1608
    %1610 = vrot.lane.b32.xlu0 %v1607, 90
    %v1611 = vpop.permute.xlu0 %1610
    %vm1612 = vcmask 736256
    %v1613 = vsel %vm1612, %v1609, %v1611
    %v1616 = vsel %vm1205, %v1468, %v1473
    %v1617 = vsel %vm1207, %v1476, %v1482
    %v1618 = vsel %vm1209, %v1486, %v1492
    %v1619 = vsel %vm1211, %v1496, %v1502
    %v1620 = vsel %vm1213, %v1505, %v1511
    %v1621 = vsel %vm1215, %v1515, %v1521
    %v1622 = vsel %vm1217, %v1525, %v1531
    %v1623 = vsel %vm1219, %v1535, %v1541
    %v1624 = vsel %vm1221, %v1544, %v1550
    %v1625 = vsel %vm1223, %v1554, %v1560
    %v1626 = vsel %vm1225, %v1564, %v1570
    %v1627 = vsel %vm1227, %v1574, %v1584
    %v1628 = vsel %vm177, %v1627, %v1589
    %v1629 = vsel %vm189, %v1593, %v1599
    %v1630 = vsel %vm1231, %v1603, %v1609
    %1633 = vrot.lane.b32.xlu0 %v1139, 112
    %v1634 = vpop.permute.xlu0 %1633
    %1635 = vrot.lane.b32.xlu0 %v1140, 112
    %v1636 = vpop.permute.xlu0 %1635
    %v1637 = vsel %vm1467, %v1634, %v1636
    %v1639 = vrot.slane %v1139, 1
    %v1640 = vrot.slane %v1140, 1
    %1641 = vrot.lane.b32.xlu0 %v1639, 102
    %v1642 = vpop.permute.xlu0 %1641
    %1643 = vrot.lane.b32.xlu0 %v1640, 102
    %v1644 = vpop.permute.xlu0 %1643
    %v1645 = vsel %vm249, %v1642, %v1644
    %v1648 = vrot.slane %v1139, 2
    %v1649 = vrot.slane %v1140, 2
    %1650 = vrot.lane.b32.xlu0 %v1648, 92
    %v1651 = vpop.permute.xlu0 %1650
    %1652 = vrot.lane.b32.xlu0 %v1649, 92
    %v1653 = vpop.permute.xlu0 %1652
    %v1654 = vsel %vm1485, %v1651, %v1653
    %v1657 = vrot.slane %v1139, 3
    %v1658 = vrot.slane %v1140, 3
    %1659 = vrot.lane.b32.xlu0 %v1657, 82
    %v1660 = vpop.permute.xlu0 %1659
    %1661 = vrot.lane.b32.xlu0 %v1658, 82
    %v1662 = vpop.permute.xlu0 %1661
    %v1663 = vsel %vm1495, %v1660, %v1662
    %v1666 = vrot.slane %v1139, 4
    %v1667 = vrot.slane %v1140, 4
    %1668 = vrot.lane.b32.xlu0 %v1666, 72
    %v1669 = vpop.permute.xlu0 %1668
    %1670 = vrot.lane.b32.xlu0 %v1667, 72
    %v1671 = vpop.permute.xlu0 %1670
    %v1672 = vsel %vm277, %v1669, %v1671
    %v1675 = vrot.slane %v1139, 5
    %v1676 = vrot.slane %v1140, 5
    %1677 = vrot.lane.b32.xlu0 %v1675, 62
    %v1678 = vpop.permute.xlu0 %1677
    %1679 = vrot.lane.b32.xlu0 %v1676, 62
    %v1680 = vpop.permute.xlu0 %1679
    %v1681 = vsel %vm1514, %v1678, %v1680
    %v1684 = vrot.slane %v1139, 6
    %v1685 = vrot.slane %v1140, 6
    %1686 = vrot.lane.b32.xlu0 %v1684, 52
    %v1687 = vpop.permute.xlu0 %1686
    %1688 = vrot.lane.b32.xlu0 %v1685, 52
    %v1689 = vpop.permute.xlu0 %1688
    %v1690 = vsel %vm1524, %v1687, %v1689
    %v1693 = vrot.slane %v1139, 7
    %v1694 = vrot.slane %v1140, 7
    %1695 = vrot.lane.b32.xlu0 %v1693, 42
    %v1696 = vpop.permute.xlu0 %1695
    %1697 = vrot.lane.b32.xlu0 %v1694, 42
    %v1698 = vpop.permute.xlu0 %1697
    %v1699 = vsel %vm1534, %v1696, %v1698
    %1704 = vrot.lane.b32.xlu0 %v1142, 32
    %v1705 = vpop.permute.xlu0 %1704
    %1706 = vrot.lane.b32.xlu0 %v1143, 32
    %v1707 = vpop.permute.xlu0 %1706
    %v1708 = vsel %vm148, %v1705, %v1707
    %v1711 = vrot.slane %v1142, 1
    %v1712 = vrot.slane %v1143, 1
    %1713 = vrot.lane.b32.xlu0 %v1711, 22
    %v1714 = vpop.permute.xlu0 %1713
    %1715 = vrot.lane.b32.xlu0 %v1712, 22
    %v1716 = vpop.permute.xlu0 %1715
    %v1717 = vsel %vm1553, %v1714, %v1716
    %v1720 = vrot.slane %v1142, 2
    %v1721 = vrot.slane %v1143, 2
    %1722 = vrot.lane.b32.xlu0 %v1720, 12
    %v1723 = vpop.permute.xlu0 %1722
    %1724 = vrot.lane.b32.xlu0 %v1721, 12
    %v1725 = vpop.permute.xlu0 %1724
    %v1726 = vsel %vm1563, %v1723, %v1725
    %v1729 = vrot.slane %v1142, 3
    %v1730 = vrot.slane %v1143, 3
    %1731 = vrot.lane.b32.xlu0 %v1729, 2
    %v1732 = vpop.permute.xlu0 %1731
    %1733 = vrot.lane.b32.xlu0 %v1730, 2
    %v1734 = vpop.permute.xlu0 %1733
    %v1735 = vsel %vm1573, %v1732, %v1734
    %v1738 = vrot.slane %v1142, 4
    %v1739 = vrot.slane %v1143, 4
    %1740 = vrot.lane.b32.xlu0 %v1738, 120
    %v1741 = vpop.permute.xlu0 %1740
    %1742 = vrot.lane.b32.xlu0 %v1739, 120
    %v1743 = vpop.permute.xlu0 %1742
    %v1744 = vsel %vm1583, %v1741, %v1743
    %v1746 = vrot.slane %v1142, 5
    %v1747 = vrot.slane %v1143, 5
    %1748 = vrot.lane.b32.xlu0 %v1746, 110
    %v1749 = vpop.permute.xlu0 %1748
    %1750 = vrot.lane.b32.xlu0 %v1747, 110
    %v1751 = vpop.permute.xlu0 %1750
    %v1752 = vsel %vm1592, %v1749, %v1751
    %v1755 = vrot.slane %v1142, 6
    %v1756 = vrot.slane %v1143, 6
    %1757 = vrot.lane.b32.xlu0 %v1755, 100
    %v1758 = vpop.permute.xlu0 %1757
    %1759 = vrot.lane.b32.xlu0 %v1756, 100
    %v1760 = vpop.permute.xlu0 %1759
    %v1761 = vsel %vm1602, %v1758, %v1760
    %v1764 = vrot.slane %v1142, 7
    %v1765 = vrot.slane %v1143, 7
    %1766 = vrot.lane.b32.xlu0 %v1764, 90
    %v1767 = vpop.permute.xlu0 %1766
    %1768 = vrot.lane.b32.xlu0 %v1765, 90
    %v1769 = vpop.permute.xlu0 %1768
    %v1770 = vsel %vm1612, %v1767, %v1769
    %v1772 = vsel %vm1205, %v1637, %v1642
    %v1773 = vsel %vm1207, %v1645, %v1651
    %v1774 = vsel %vm1209, %v1654, %v1660
    %v1775 = vsel %vm1211, %v1663, %v1669
    %v1776 = vsel %vm1213, %v1672, %v1678
    %v1777 = vsel %vm1215, %v1681, %v1687
    %v1778 = vsel %vm1217, %v1690, %v1696
    %v1779 = vsel %vm1219, %v1699, %v1705
    %v1780 = vsel %vm1221, %v1708, %v1714
    %v1781 = vsel %vm1223, %v1717, %v1723
    %v1782 = vsel %vm1225, %v1726, %v1732
    %v1783 = vsel %vm1227, %v1735, %v1744
    %v1784 = vsel %vm177, %v1783, %v1749
    %v1785 = vsel %vm189, %v1752, %v1758
    %v1786 = vsel %vm1231, %v1761, %v1767
    %1801 = vrot.lane.b32.xlu0 %v1772, 96
    %v1802 = vpop.permute.xlu0 %1801
    %1803 = vrot.lane.b32.xlu0 %v1773, 96
    %v1804 = vpop.permute.xlu0 %1803
    %1805 = vrot.lane.b32.xlu0 %v1774, 96
    %v1806 = vpop.permute.xlu0 %1805
    %1807 = vrot.lane.b32.xlu0 %v1775, 96
    %v1808 = vpop.permute.xlu0 %1807
    %1809 = vrot.lane.b32.xlu0 %v1776, 96
    %v1810 = vpop.permute.xlu0 %1809
    %1811 = vrot.lane.b32.xlu0 %v1777, 96
    %v1812 = vpop.permute.xlu0 %1811
    %1813 = vrot.lane.b32.xlu0 %v1778, 96
    %v1814 = vpop.permute.xlu0 %1813
    %1815 = vrot.lane.b32.xlu0 %v1779, 96
    %v1816 = vpop.permute.xlu0 %1815
    %1817 = vrot.lane.b32.xlu0 %v1780, 96
    %v1818 = vpop.permute.xlu0 %1817
    %1819 = vrot.lane.b32.xlu0 %v1781, 96
    %v1820 = vpop.permute.xlu0 %1819
    %1821 = vrot.lane.b32.xlu0 %v1782, 96
    %v1822 = vpop.permute.xlu0 %1821
    %1823 = vrot.lane.b32.xlu0 %v1784, 96
    %v1824 = vpop.permute.xlu0 %1823
    %1825 = vrot.lane.b32.xlu0 %v1785, 96
    %v1826 = vpop.permute.xlu0 %1825
    %1827 = vrot.lane.b32.xlu0 %v1786, 96
    %v1828 = vpop.permute.xlu0 %1827
    %1829 = vrot.lane.b32.xlu0 %v1770, 96
    %v1830 = vpop.permute.xlu0 %1829
    %v1831 = vsel %vm1353, %v1802, %v1804
    %v1832 = vsel %vm1353, %v1804, %v1806
    %v1833 = vsel %vm1353, %v1806, %v1808
    %v1834 = vsel %vm1353, %v1808, %v1810
    %v1835 = vsel %vm1353, %v1810, %v1812
    %v1836 = vsel %vm1353, %v1812, %v1814
    %v1837 = vsel %vm1353, %v1814, %v1816
    %v1838 = vsel %vm1353, %v1816, %v1818
    %v1839 = vsel %vm1353, %v1818, %v1820
    %v1840 = vsel %vm1353, %v1820, %v1822
    %v1841 = vsel %vm1353, %v1822, %v1824
    %v1842 = vsel %vm1353, %v1824, %v1826
    %v1843 = vsel %vm1353, %v1826, %v1828
    %v1844 = vsel %vm1353, %v1828, %v1830
    %v1846 = vsel %vm1353, %v1613, %v1802
    %v1862 = vrot.slane %v1617, 7
    %v1863 = vrot.slane %v1618, 6
    %v1864 = vrot.slane %v1619, 5
    %v1865 = vrot.slane %v1620, 4
    %v1866 = vrot.slane %v1621, 3
    %v1867 = vrot.slane %v1622, 2
    %v1868 = vrot.slane %v1623, 1
    %v1869 = vrot.slane %v1625, 7
    %v1870 = vrot.slane %v1626, 6
    %v1871 = vrot.slane %v1628, 5
    %v1872 = vrot.slane %v1629, 4
    %v1873 = vrot.slane %v1630, 3
    %v1874 = vrot.slane %v1846, 2
    %v1875 = vrot.slane %v1831, 1
    %v1876 = vrot.slane %v1833, 7
    %v1877 = vrot.slane %v1834, 6
    %v1878 = vrot.slane %v1835, 5
    %v1879 = vrot.slane %v1836, 4
    %v1880 = vrot.slane %v1837, 3
    %v1881 = vrot.slane %v1838, 2
    %v1882 = vrot.slane %v1839, 1
    %v1883 = vrot.slane %v1841, 7
    %v1884 = vrot.slane %v1842, 6
    %v1885 = vrot.slane %v1843, 5
    %v1886 = vrot.slane %v1844, 4
    %v1887 = vrot.slane %v1830, 3
    %v1888 = vsel %vm1411, %v1616, %v1862
    %v1889 = vsel %vm1413, %v1863, %v1864
    %v1890 = vsel %vm1415, %v1888, %v1889
    %v1891 = vsel %vm1417, %v1865, %v1866
    %v1892 = vsel %vm1419, %v1867, %v1868
    %v1893 = vsel %vm1421, %v1891, %v1892
    %v1894 = vsel %vm281, %v1890, %v1893
    %v1895 = vsel %vm1411, %v1624, %v1869
    %v1896 = vsel %vm1413, %v1870, %v1871
    %v1897 = vsel %vm1415, %v1895, %v1896
    %v1898 = vsel %vm1417, %v1872, %v1873
    %v1899 = vsel %vm1419, %v1874, %v1875
    %v1900 = vsel %vm1421, %v1898, %v1899
    %v1901 = vsel %vm281, %v1897, %v1900
    %v1902 = vsel %vm1411, %v1832, %v1876
    %v1903 = vsel %vm1413, %v1877, %v1878
    %v1904 = vsel %vm1415, %v1902, %v1903
    %v1905 = vsel %vm1417, %v1879, %v1880
    %v1906 = vsel %vm1419, %v1881, %v1882
    %v1907 = vsel %vm1421, %v1905, %v1906
    %v1908 = vsel %vm281, %v1904, %v1907
    %v1909 = vsel %vm1411, %v1840, %v1883
    %v1910 = vsel %vm1415, %v1909, %v1884
    %v1911 = vsel %vm1440, %v1885, %v1886
    %v1912 = vsel %vm1442, %v1911, %v1887
    %v1913 = vsel %vm1444, %v1910, %v1912
    %s1918 = scalar_lea.vmem [#allocation3], 1
    %1919 = vst [vmem:[%s1918] ss:$2 sm:$0xff] %v1894
    %s1920 = scalar_lea.vmem [#allocation3], 17
    %1921 = vst [vmem:[%s1920] ss:$2 sm:$0xff] %v1901
    %s1922 = scalar_lea.vmem [#allocation3], 33
    %1923 = vst [vmem:[%s1922] ss:$2 sm:$0xff] %v1908
    %s1924 = scalar_lea.vmem [#allocation3], 49
    %1925 = vst.msk [vmem:[%s1924] ss:$2 sm:$0x3f] %vm1458, %v1913
    %v1926 = vld [vmem:[#allocation3] sm:$0xff]
    %v1927 = vld [vmem:[#allocation3 + $0x8] sm:$0xff]
    %v1928 = vld [vmem:[#allocation3 + $0x10] sm:$0xff]
    %v1929 = vld [vmem:[#allocation3 + $0x18] sm:$0xff]
    %v1930 = vld [vmem:[#allocation3 + $0x20] sm:$0xff]
    %v1931 = vld [vmem:[#allocation3 + $0x28] sm:$0xff]
    %v1932 = vld [vmem:[#allocation3 + $0x30] sm:$0xff]
    %v1933 = vld [vmem:[#allocation3 + $0x38] sm:$0xf]
    %1942 = vst [vmem:[#allocation1] ss:$4 sm:$0xff] %v1926
    %s1943 = scalar_lea.vmem [#allocation1], 32
    %1944 = vst [vmem:[%s1943] ss:$4 sm:$0xff] %v1927
    %v1945 = vld.sshfl [vmem:[#allocation1] sm:$0xff pattern:$0x73625140]
    %v1946 = vld.sshfl [vmem:[#allocation1 + $0x8] sm:$0xff pattern:$0x73625140]
    %v1947 = vld.sshfl [vmem:[#allocation1 + $0x10] sm:$0xff pattern:$0x73625140]
    %v1948 = vld.sshfl [vmem:[#allocation1 + $0x18] sm:$0xff pattern:$0x73625140]
    %v1949 = vld.sshfl [vmem:[#allocation1 + $0x20] sm:$0xff pattern:$0x73625140]
    %v1950 = vld.sshfl [vmem:[#allocation1 + $0x28] sm:$0xff pattern:$0x73625140]
    %v1951 = vld.sshfl [vmem:[#allocation1 + $0x30] sm:$0xff pattern:$0x73625140]
    %v1952 = vld.sshfl [vmem:[#allocation1 + $0x38] sm:$0xff pattern:$0x73625140]
    %1953 = vst [vmem:[#allocation1] ss:$4 sm:$0xff] %v1928
    %1954 = vst [vmem:[%s1943] ss:$4 sm:$0xff] %v1929
    %v1955 = vld.sshfl [vmem:[#allocation1] sm:$0xff pattern:$0x73625140]
    %v1956 = vld.sshfl [vmem:[#allocation1 + $0x8] sm:$0xff pattern:$0x73625140]
    %v1957 = vld.sshfl [vmem:[#allocation1 + $0x10] sm:$0xff pattern:$0x73625140]
    %v1958 = vld.sshfl [vmem:[#allocation1 + $0x18] sm:$0xff pattern:$0x73625140]
    %v1959 = vld.sshfl [vmem:[#allocation1 + $0x20] sm:$0xff pattern:$0x73625140]
    %v1960 = vld.sshfl [vmem:[#allocation1 + $0x28] sm:$0xff pattern:$0x73625140]
    %v1961 = vld.sshfl [vmem:[#allocation1 + $0x30] sm:$0xff pattern:$0x73625140]
    %v1962 = vld.sshfl [vmem:[#allocation1 + $0x38] sm:$0xff pattern:$0x73625140]
    %1963 = vst [vmem:[#allocation1] ss:$4 sm:$0xff] %v1930
    %1964 = vst [vmem:[%s1943] ss:$4 sm:$0xff] %v1931
    %v1965 = vld.sshfl [vmem:[#allocation1] sm:$0xff pattern:$0x73625140]
    %v1966 = vld.sshfl [vmem:[#allocation1 + $0x8] sm:$0xff pattern:$0x73625140]
    %v1967 = vld.sshfl [vmem:[#allocation1 + $0x10] sm:$0xff pattern:$0x73625140]
    %v1968 = vld.sshfl [vmem:[#allocation1 + $0x18] sm:$0xff pattern:$0x73625140]
    %v1969 = vld.sshfl [vmem:[#allocation1 + $0x20] sm:$0xff pattern:$0x73625140]
    %v1970 = vld.sshfl [vmem:[#allocation1 + $0x28] sm:$0xff pattern:$0x73625140]
    %v1971 = vld.sshfl [vmem:[#allocation1 + $0x30] sm:$0xff pattern:$0x73625140]
    %v1972 = vld.sshfl [vmem:[#allocation1 + $0x38] sm:$0xff pattern:$0x73625140]
    %1973 = vst [vmem:[#allocation1] ss:$4 sm:$0xff] %v1932
    %1974 = vst [vmem:[%s1943] ss:$4 sm:$0xff] %v1933
    %v1975 = vld.sshfl [vmem:[#allocation1] sm:$0xff pattern:$0x73625140]
    %v1976 = vld.sshfl [vmem:[#allocation1 + $0x8] sm:$0xff pattern:$0x73625140]
    %v1977 = vld.sshfl [vmem:[#allocation1 + $0x10] sm:$0xff pattern:$0x73625140]
    %v1978 = vld.sshfl [vmem:[#allocation1 + $0x18] sm:$0xff pattern:$0x73625140]
    %v1979 = vld.sshfl [vmem:[#allocation1 + $0x20] sm:$0xff pattern:$0x73625140]
    %v1980 = vld.sshfl [vmem:[#allocation1 + $0x28] sm:$0xff pattern:$0x73625140]
    %v2011 = vpack.c.bf16 %v1945, %v1945
    %v2012 = vpack.c.bf16 %v1946, %v1946
    %v2013 = vpack.c.bf16 %v1947, %v1947
    %v2014 = vpack.c.bf16 %v1948, %v1948
    %v2015 = vpack.c.bf16 %v1949, %v1949
    %v2016 = vpack.c.bf16 %v1950, %v1950
    %v2017 = vpack.c.bf16 %v1951, %v1951
    %v2018 = vpack.c.bf16 %v1952, %v1952
    %v2019 = vpack.c.bf16 %v1955, %v1955
    %v2020 = vpack.c.bf16 %v1956, %v1956
    %v2021 = vpack.c.bf16 %v1957, %v1957
    %v2022 = vpack.c.bf16 %v1958, %v1958
    %v2023 = vpack.c.bf16 %v1959, %v1959
    %v2024 = vpack.c.bf16 %v1960, %v1960
    %v2025 = vpack.c.bf16 %v1961, %v1961
    %v2026 = vpack.c.bf16 %v1962, %v1962
    %v2027 = vpack.c.bf16 %v1965, %v1965
    %v2028 = vpack.c.bf16 %v1966, %v1966
    %v2029 = vpack.c.bf16 %v1967, %v1967
    %v2030 = vpack.c.bf16 %v1968, %v1968
    %v2031 = vpack.c.bf16 %v1969, %v1969
    %v2032 = vpack.c.bf16 %v1970, %v1970
    %v2033 = vpack.c.bf16 %v1971, %v1971
    %v2034 = vpack.c.bf16 %v1972, %v1972
    %v2035 = vpack.c.bf16 %v1975, %v1975
    %v2036 = vpack.c.bf16 %v1976, %v1976
    %v2037 = vpack.c.bf16 %v1977, %v1977
    %v2038 = vpack.c.bf16 %v1978, %v1978
    %v2039 = vpack.c.bf16 %v1979, %v1979
    %v2040 = vpack.c.bf16 %v1980, %v1980
    %v2041 = vld [vmem:[#allocation12] sm:$0xff]
    %v2042 = vld [vmem:[#allocation12 + $0x8] sm:$0xff]
    %v2043 = vld [vmem:[#allocation12 + $0x10] sm:$0xff]
    %v2044 = vld [vmem:[#allocation12 + $0x18] sm:$0xff]
    %v2045 = vld [vmem:[#allocation12 + $0x20] sm:$0xff]
    %v2046 = vld [vmem:[#allocation12 + $0x28] sm:$0xff]
    %v2047 = vld [vmem:[#allocation12 + $0x30] sm:$0xff]
    %v2048 = vld [vmem:[#allocation12 + $0x38] sm:$0xff]
    %v2049 = vld [vmem:[#allocation12 + $0x40] sm:$0xff]
    %v2050 = vld [vmem:[#allocation12 + $0x48] sm:$0xff]
    %v2051 = vld [vmem:[#allocation12 + $0x50] sm:$0xff]
    %v2052 = vld [vmem:[#allocation12 + $0x58] sm:$0xff]
    %v2053 = vld [vmem:[#allocation12 + $0x60] sm:$0xff]
    %v2054 = vld [vmem:[#allocation12 + $0x68] sm:$0xff]
    %v2055 = vld [vmem:[#allocation12 + $0x70] sm:$0xff]
    %v2056 = vld [vmem:[#allocation12 + $0x78] sm:$0xff]
    %v2057 = vld [vmem:[#allocation12 + $0x80] sm:$0xff]
    %v2058 = vld [vmem:[#allocation12 + $0x88] sm:$0xff]
    %v2059 = vld [vmem:[#allocation12 + $0x90] sm:$0xff]
    %v2060 = vld [vmem:[#allocation12 + $0x98] sm:$0xff]
    %v2061 = vld [vmem:[#allocation12 + $0xa0] sm:$0xff]
    %v2062 = vld [vmem:[#allocation12 + $0xa8] sm:$0xff]
    %v2063 = vld [vmem:[#allocation12 + $0xb0] sm:$0xff]
    %v2064 = vld [vmem:[#allocation12 + $0xb8] sm:$0xff]
    %v2065 = vld [vmem:[#allocation12 + $0xc0] sm:$0xff]
    %v2066 = vld [vmem:[#allocation12 + $0xc8] sm:$0xff]
    %v2067 = vld [vmem:[#allocation12 + $0xd0] sm:$0xff]
    %v2068 = vld [vmem:[#allocation12 + $0xd8] sm:$0xff]
    %v2069 = vld [vmem:[#allocation12 + $0xe0] sm:$0xff]
    %v2070 = vld [vmem:[#allocation12 + $0xe8] sm:$0xff]
    %v2071 = vld [vmem:[#allocation12 + $0xf0] sm:$0xff]
    %v2072 = vld [vmem:[#allocation12 + $0xf8] sm:$0xff]
    %v2073 = vld [vmem:[#allocation12 + $0x100] sm:$0xff]
    %v2074 = vld [vmem:[#allocation12 + $0x108] sm:$0xff]
    %v2075 = vld [vmem:[#allocation12 + $0x110] sm:$0xff]
    %v2076 = vld [vmem:[#allocation12 + $0x118] sm:$0xff]
    %v2077 = vld [vmem:[#allocation12 + $0x120] sm:$0xff]
    %v2078 = vld [vmem:[#allocation12 + $0x128] sm:$0xff]
    %v2079 = vld [vmem:[#allocation12 + $0x130] sm:$0xff]
    %v2080 = vld [vmem:[#allocation12 + $0x138] sm:$0xff]
    %v2081 = vld [vmem:[#allocation12 + $0x140] sm:$0xff]
    %v2082 = vld [vmem:[#allocation12 + $0x148] sm:$0xff]
    %v2083 = vld [vmem:[#allocation12 + $0x150] sm:$0xff]
    %v2084 = vld [vmem:[#allocation12 + $0x158] sm:$0xff]
    %v2085 = vld [vmem:[#allocation12 + $0x160] sm:$0xff]
    %v2086 = vld [vmem:[#allocation12 + $0x168] sm:$0xff]
    %v2087 = vld [vmem:[#allocation12 + $0x170] sm:$0xff]
    %v2088 = vld [vmem:[#allocation12 + $0x178] sm:$0xff]
    %v2089 = vld [vmem:[#allocation12 + $0x180] sm:$0xff]
    %v2090 = vld [vmem:[#allocation12 + $0x188] sm:$0xff]
    %v2091 = vld [vmem:[#allocation12 + $0x190] sm:$0xff]
    %v2092 = vld [vmem:[#allocation12 + $0x198] sm:$0xff]
    %v2093 = vld [vmem:[#allocation12 + $0x1a0] sm:$0xff]
    %v2094 = vld [vmem:[#allocation12 + $0x1a8] sm:$0xff]
    %v2095 = vld [vmem:[#allocation12 + $0x1b0] sm:$0xff]
    %v2096 = vld [vmem:[#allocation12 + $0x1b8] sm:$0xff]
    %v2097 = vld [vmem:[#allocation12 + $0x1c0] sm:$0xff]
    %v2098 = vld [vmem:[#allocation12 + $0x1c8] sm:$0xff]
    %v2099 = vld [vmem:[#allocation12 + $0x1d0] sm:$0xff]
    %v2100 = vld [vmem:[#allocation12 + $0x1d8] sm:$0xff]
    %v2101 = vld [vmem:[#allocation12 + $0x1e0] sm:$0xff]
    %v2102 = vld [vmem:[#allocation12 + $0x1e8] sm:$0xff]
    %v2103 = vld [vmem:[#allocation12 + $0x1f0] sm:$0xff]
    %v2104 = vld [vmem:[#allocation12 + $0x1f8] sm:$0xff]
    %v2105 = vld [vmem:[#allocation12 + $0x200] sm:$0xff]
    %v2106 = vld [vmem:[#allocation12 + $0x208] sm:$0xff]
    %v2107 = vld [vmem:[#allocation12 + $0x210] sm:$0xff]
    %v2108 = vld [vmem:[#allocation12 + $0x218] sm:$0xff]
    %v2109 = vld [vmem:[#allocation12 + $0x220] sm:$0xff]
    %v2110 = vld [vmem:[#allocation12 + $0x228] sm:$0xff]
    %v2111 = vld [vmem:[#allocation12 + $0x230] sm:$0xff]
    %v2112 = vld [vmem:[#allocation12 + $0x238] sm:$0xff]
    %v2113 = vld [vmem:[#allocation12 + $0x240] sm:$0xff]
    %v2114 = vld [vmem:[#allocation12 + $0x248] sm:$0xff]
    %v2115 = vld [vmem:[#allocation12 + $0x250] sm:$0xff]
    %v2116 = vld [vmem:[#allocation12 + $0x258] sm:$0xff]
    %v2117 = vld [vmem:[#allocation12 + $0x260] sm:$0xff]
    %v2118 = vld [vmem:[#allocation12 + $0x268] sm:$0xff]
    %v2119 = vld [vmem:[#allocation12 + $0x270] sm:$0xff]
    %v2120 = vld [vmem:[#allocation12 + $0x278] sm:$0xff]
    %v2121 = vld [vmem:[#allocation12 + $0x280] sm:$0xff]
    %v2122 = vld [vmem:[#allocation12 + $0x288] sm:$0xff]
    %v2123 = vld [vmem:[#allocation12 + $0x290] sm:$0xff]
    %v2124 = vld [vmem:[#allocation12 + $0x298] sm:$0xff]
    %v2125 = vld [vmem:[#allocation12 + $0x2a0] sm:$0xff]
    %v2126 = vld [vmem:[#allocation12 + $0x2a8] sm:$0xff]
    %v2127 = vld [vmem:[#allocation12 + $0x2b0] sm:$0xff]
    %v2128 = vld [vmem:[#allocation12 + $0x2b8] sm:$0xff]
    %v2129 = vld [vmem:[#allocation12 + $0x2c0] sm:$0xff]
    %v2130 = vld [vmem:[#allocation12 + $0x2c8] sm:$0xff]
    %v2131 = vld [vmem:[#allocation12 + $0x2d0] sm:$0xff]
    %v2132 = vld [vmem:[#allocation12 + $0x2d8] sm:$0xff]
    %v2133 = vld [vmem:[#allocation12 + $0x2e0] sm:$0xff]
    %v2134 = vld [vmem:[#allocation12 + $0x2e8] sm:$0xff]
    %v2135 = vld [vmem:[#allocation12 + $0x2f0] sm:$0xff]
    %v2136 = vld [vmem:[#allocation12 + $0x2f8] sm:$0xff]
    %v2137 = vld [vmem:[#allocation12 + $0x300] sm:$0xff]
    %v2138 = vld [vmem:[#allocation12 + $0x308] sm:$0xff]
    %v2139 = vld [vmem:[#allocation12 + $0x310] sm:$0xff]
    %v2140 = vld [vmem:[#allocation12 + $0x318] sm:$0xff]
    %v2141 = vld [vmem:[#allocation12 + $0x320] sm:$0xff]
    %v2142 = vld [vmem:[#allocation12 + $0x328] sm:$0xff]
    %v2143 = vld [vmem:[#allocation12 + $0x330] sm:$0xff]
    %v2144 = vld [vmem:[#allocation12 + $0x338] sm:$0xff]
    %v2145 = vld [vmem:[#allocation12 + $0x340] sm:$0xff]
    %v2146 = vld [vmem:[#allocation12 + $0x348] sm:$0xff]
    %v2147 = vld [vmem:[#allocation12 + $0x350] sm:$0xff]
    %v2148 = vld [vmem:[#allocation12 + $0x358] sm:$0xff]
    %v2149 = vld [vmem:[#allocation12 + $0x360] sm:$0xff]
    %v2150 = vld [vmem:[#allocation12 + $0x368] sm:$0xff]
    %v2151 = vld [vmem:[#allocation12 + $0x370] sm:$0xff]
    %v2152 = vld [vmem:[#allocation12 + $0x378] sm:$0xff]
    %v2153 = vld [vmem:[#allocation12 + $0x380] sm:$0xff]
    %v2154 = vld [vmem:[#allocation12 + $0x388] sm:$0xff]
    %v2155 = vld [vmem:[#allocation12 + $0x390] sm:$0xff]
    %v2156 = vld [vmem:[#allocation12 + $0x398] sm:$0xff]
    %v2157 = vld [vmem:[#allocation12 + $0x3a0] sm:$0xff]
    %v2158 = vld [vmem:[#allocation12 + $0x3a8] sm:$0xff]
    %v2159 = vld [vmem:[#allocation12 + $0x3b0] sm:$0xff]
    %v2160 = vld [vmem:[#allocation12 + $0x3b8] sm:$0xff]
    %v2161 = vld [vmem:[#allocation12 + $0x3c0] sm:$0xff]
    %v2162 = vld [vmem:[#allocation12 + $0x3c8] sm:$0xff]
    %v2163 = vld [vmem:[#allocation12 + $0x3d0] sm:$0xff]
    %v2164 = vld [vmem:[#allocation12 + $0x3d8] sm:$0xff]
    %v2165 = vld [vmem:[#allocation12 + $0x3e0] sm:$0xff]
    %v2166 = vld [vmem:[#allocation12 + $0x3e8] sm:$0xff]
    %v2167 = vld [vmem:[#allocation12 + $0x3f0] sm:$0xff]
    %v2168 = vld [vmem:[#allocation12 + $0x3f8] sm:$0xff]
    %v2169 = vld [vmem:[#allocation12 + $0x400] sm:$0xff]
    %v2170 = vld [vmem:[#allocation12 + $0x408] sm:$0xff]
    %v2171 = vld [vmem:[#allocation12 + $0x410] sm:$0xff]
    %v2172 = vld [vmem:[#allocation12 + $0x418] sm:$0xff]
    %v2173 = vld [vmem:[#allocation12 + $0x420] sm:$0xff]
    %v2174 = vld [vmem:[#allocation12 + $0x428] sm:$0xff]
    %v2175 = vld [vmem:[#allocation12 + $0x430] sm:$0xff]
    %v2176 = vld [vmem:[#allocation12 + $0x438] sm:$0xff]
    %v2177 = vld [vmem:[#allocation12 + $0x440] sm:$0xff]
    %v2178 = vld [vmem:[#allocation12 + $0x448] sm:$0xff]
    %v2179 = vld [vmem:[#allocation12 + $0x450] sm:$0xff]
    %v2180 = vld [vmem:[#allocation12 + $0x458] sm:$0xff]
    %v2181 = vld [vmem:[#allocation12 + $0x460] sm:$0xff]
    %v2182 = vld [vmem:[#allocation12 + $0x468] sm:$0xff]
    %v2183 = vld [vmem:[#allocation12 + $0x470] sm:$0xff]
    %v2184 = vld [vmem:[#allocation12 + $0x478] sm:$0xff]
    %v2185 = vld [vmem:[#allocation12 + $0x480] sm:$0xff]
    %v2186 = vld [vmem:[#allocation12 + $0x488] sm:$0xff]
    %v2187 = vld [vmem:[#allocation12 + $0x490] sm:$0xff]
    %v2188 = vld [vmem:[#allocation12 + $0x498] sm:$0xff]
    %v2189 = vld [vmem:[#allocation12 + $0x4a0] sm:$0xff]
    %v2190 = vld [vmem:[#allocation12 + $0x4a8] sm:$0xff]
    %v2191 = vld [vmem:[#allocation12 + $0x4b0] sm:$0xff]
    %v2192 = vld [vmem:[#allocation12 + $0x4b8] sm:$0xff]
    %v2193 = vld [vmem:[#allocation12 + $0x4c0] sm:$0xff]
    %v2194 = vld [vmem:[#allocation12 + $0x4c8] sm:$0xff]
    %v2195 = vld [vmem:[#allocation12 + $0x4d0] sm:$0xff]
    %v2196 = vld [vmem:[#allocation12 + $0x4d8] sm:$0xff]
    %v2197 = vld [vmem:[#allocation12 + $0x4e0] sm:$0xff]
    %v2198 = vld [vmem:[#allocation12 + $0x4e8] sm:$0xff]
    %v2199 = vld [vmem:[#allocation12 + $0x4f0] sm:$0xff]
    %v2200 = vld [vmem:[#allocation12 + $0x4f8] sm:$0xff]
    %v2201 = vld [vmem:[#allocation12 + $0x500] sm:$0xff]
    %v2202 = vld [vmem:[#allocation12 + $0x508] sm:$0xff]
    %v2203 = vld [vmem:[#allocation12 + $0x510] sm:$0xff]
    %v2204 = vld [vmem:[#allocation12 + $0x518] sm:$0xff]
    %v2205 = vld [vmem:[#allocation12 + $0x520] sm:$0xff]
    %v2206 = vld [vmem:[#allocation12 + $0x528] sm:$0xff]
    %v2207 = vld [vmem:[#allocation12 + $0x530] sm:$0xff]
    %v2208 = vld [vmem:[#allocation12 + $0x538] sm:$0xff]
    %v2209 = vld [vmem:[#allocation12 + $0x540] sm:$0xff]
    %v2210 = vld [vmem:[#allocation12 + $0x548] sm:$0xff]
    %v2211 = vld [vmem:[#allocation12 + $0x550] sm:$0xff]
    %v2212 = vld [vmem:[#allocation12 + $0x558] sm:$0xff]
    %v2213 = vld [vmem:[#allocation12 + $0x560] sm:$0xff]
    %v2214 = vld [vmem:[#allocation12 + $0x568] sm:$0xff]
    %v2215 = vld [vmem:[#allocation12 + $0x570] sm:$0xff]
    %v2216 = vld [vmem:[#allocation12 + $0x578] sm:$0xff]
    %v2217 = vld [vmem:[#allocation12 + $0x580] sm:$0xff]
    %v2218 = vld [vmem:[#allocation12 + $0x588] sm:$0xff]
    %v2219 = vld [vmem:[#allocation12 + $0x590] sm:$0xff]
    %v2220 = vld [vmem:[#allocation12 + $0x598] sm:$0xff]
    %v2221 = vld [vmem:[#allocation12 + $0x5a0] sm:$0xff]
    %v2222 = vld [vmem:[#allocation12 + $0x5a8] sm:$0xff]
    %v2223 = vld [vmem:[#allocation12 + $0x5b0] sm:$0xff]
    %v2224 = vld [vmem:[#allocation12 + $0x5b8] sm:$0xff]
    %v2225 = vld [vmem:[#allocation12 + $0x5c0] sm:$0xff]
    %v2226 = vld [vmem:[#allocation12 + $0x5c8] sm:$0xff]
    %v2227 = vld [vmem:[#allocation12 + $0x5d0] sm:$0xff]
    %v2228 = vld [vmem:[#allocation12 + $0x5d8] sm:$0xff]
    %v2229 = vld [vmem:[#allocation12 + $0x5e0] sm:$0xff]
    %v2230 = vld [vmem:[#allocation12 + $0x5e8] sm:$0xff]
    %v2231 = vld [vmem:[#allocation12 + $0x5f0] sm:$0xff]
    %v2232 = vld [vmem:[#allocation12 + $0x5f8] sm:$0xff]
    %v2233 = vld [vmem:[#allocation12 + $0x600] sm:$0xff]
    %v2234 = vld [vmem:[#allocation12 + $0x608] sm:$0xff]
    %v2235 = vld [vmem:[#allocation12 + $0x610] sm:$0xff]
    %v2236 = vld [vmem:[#allocation12 + $0x618] sm:$0xff]
    %v2237 = vld [vmem:[#allocation12 + $0x620] sm:$0xff]
    %v2238 = vld [vmem:[#allocation12 + $0x628] sm:$0xff]
    %v2239 = vld [vmem:[#allocation12 + $0x630] sm:$0xff]
    %v2240 = vld [vmem:[#allocation12 + $0x638] sm:$0xff]
    %v2241 = vld [vmem:[#allocation12 + $0x640] sm:$0xff]
    %v2242 = vld [vmem:[#allocation12 + $0x648] sm:$0xff]
    %v2243 = vld [vmem:[#allocation12 + $0x650] sm:$0xff]
    %v2244 = vld [vmem:[#allocation12 + $0x658] sm:$0xff]
    %v2245 = vld [vmem:[#allocation12 + $0x660] sm:$0xff]
    %v2246 = vld [vmem:[#allocation12 + $0x668] sm:$0xff]
    %v2247 = vld [vmem:[#allocation12 + $0x670] sm:$0xff]
    %v2248 = vld [vmem:[#allocation12 + $0x678] sm:$0xff]
    %v2249 = vld [vmem:[#allocation12 + $0x680] sm:$0xff]
    %v2250 = vld [vmem:[#allocation12 + $0x688] sm:$0xff]
    %v2251 = vld [vmem:[#allocation12 + $0x690] sm:$0xff]
    %v2252 = vld [vmem:[#allocation12 + $0x698] sm:$0xff]
    %v2253 = vld [vmem:[#allocation12 + $0x6a0] sm:$0xff]
    %v2254 = vld [vmem:[#allocation12 + $0x6a8] sm:$0xff]
    %v2255 = vld [vmem:[#allocation12 + $0x6b0] sm:$0xff]
    %v2256 = vld [vmem:[#allocation12 + $0x6b8] sm:$0xff]
    %v2257 = vld [vmem:[#allocation12 + $0x6c0] sm:$0xff]
    %v2258 = vld [vmem:[#allocation12 + $0x6c8] sm:$0xff]
    %v2259 = vld [vmem:[#allocation12 + $0x6d0] sm:$0xff]
    %v2260 = vld [vmem:[#allocation12 + $0x6d8] sm:$0xff]
    %v2261 = vld [vmem:[#allocation12 + $0x6e0] sm:$0xff]
    %v2262 = vld [vmem:[#allocation12 + $0x6e8] sm:$0xff]
    %v2263 = vld [vmem:[#allocation12 + $0x6f0] sm:$0xff]
    %v2264 = vld [vmem:[#allocation12 + $0x6f8] sm:$0xff]
    %v2265 = vld [vmem:[#allocation12 + $0x700] sm:$0xff]
    %v2266 = vld [vmem:[#allocation12 + $0x708] sm:$0xff]
    %v2267 = vld [vmem:[#allocation12 + $0x710] sm:$0xff]
    %v2268 = vld [vmem:[#allocation12 + $0x718] sm:$0xff]
    %v2269 = vld [vmem:[#allocation12 + $0x720] sm:$0xff]
    %v2270 = vld [vmem:[#allocation12 + $0x728] sm:$0xff]
    %v2271 = vld [vmem:[#allocation12 + $0x730] sm:$0xff]
    %v2272 = vld [vmem:[#allocation12 + $0x738] sm:$0xff]
    %v2273 = vld [vmem:[#allocation12 + $0x740] sm:$0xff]
    %v2274 = vld [vmem:[#allocation12 + $0x748] sm:$0xff]
    %v2275 = vld [vmem:[#allocation12 + $0x750] sm:$0xff]
    %v2276 = vld [vmem:[#allocation12 + $0x758] sm:$0xff]
    %v2277 = vld [vmem:[#allocation12 + $0x760] sm:$0xff]
    %v2278 = vld [vmem:[#allocation12 + $0x768] sm:$0xff]
    %v2279 = vld [vmem:[#allocation12 + $0x770] sm:$0xff]
    %v2280 = vld [vmem:[#allocation12 + $0x778] sm:$0xff]
    %v2281 = vld [vmem:[#allocation12 + $0x780] sm:$0xff]
    %v2282 = vld [vmem:[#allocation12 + $0x788] sm:$0xff]
    %v2283 = vld [vmem:[#allocation12 + $0x790] sm:$0xff]
    %v2284 = vld [vmem:[#allocation12 + $0x798] sm:$0xff]
    %v2285 = vld [vmem:[#allocation12 + $0x7a0] sm:$0xff]
    %v2286 = vld [vmem:[#allocation12 + $0x7a8] sm:$0xff]
    %v2287 = vld [vmem:[#allocation12 + $0x7b0] sm:$0xff]
    %v2288 = vld [vmem:[#allocation12 + $0x7b8] sm:$0xff]
    %v2289 = vld [vmem:[#allocation12 + $0x7c0] sm:$0xff]
    %v2290 = vld [vmem:[#allocation12 + $0x7c8] sm:$0xff]
    %v2291 = vld [vmem:[#allocation12 + $0x7d0] sm:$0xff]
    %v2292 = vld [vmem:[#allocation12 + $0x7d8] sm:$0xff]
    %v2293 = vld [vmem:[#allocation12 + $0x7e0] sm:$0xff]
    %v2294 = vld [vmem:[#allocation12 + $0x7e8] sm:$0xff]
    %v2295 = vld [vmem:[#allocation12 + $0x7f0] sm:$0xff]
    %v2296 = vld [vmem:[#allocation12 + $0x7f8] sm:$0xff]
    %v2297 = vld [vmem:[#allocation12 + $0x800] sm:$0xff]
    %v2298 = vld [vmem:[#allocation12 + $0x808] sm:$0xff]
    %v2299 = vld [vmem:[#allocation12 + $0x810] sm:$0xff]
    %v2300 = vld [vmem:[#allocation12 + $0x818] sm:$0xff]
    %v2301 = vld [vmem:[#allocation12 + $0x820] sm:$0xff]
    %v2302 = vld [vmem:[#allocation12 + $0x828] sm:$0xff]
    %v2303 = vld [vmem:[#allocation12 + $0x830] sm:$0xff]
    %v2304 = vld [vmem:[#allocation12 + $0x838] sm:$0xff]
    %v2305 = vld [vmem:[#allocation12 + $0x840] sm:$0xff]
    %v2306 = vld [vmem:[#allocation12 + $0x848] sm:$0xff]
    %v2307 = vld [vmem:[#allocation12 + $0x850] sm:$0xff]
    %v2308 = vld [vmem:[#allocation12 + $0x858] sm:$0xff]
    %v2309 = vld [vmem:[#allocation12 + $0x860] sm:$0xff]
    %v2310 = vld [vmem:[#allocation12 + $0x868] sm:$0xff]
    %v2311 = vld [vmem:[#allocation12 + $0x870] sm:$0xff]
    %v2312 = vld [vmem:[#allocation12 + $0x878] sm:$0xff]
    %v2313 = vld [vmem:[#allocation12 + $0x880] sm:$0xff]
    %v2314 = vld [vmem:[#allocation12 + $0x888] sm:$0xff]
    %v2315 = vld [vmem:[#allocation12 + $0x890] sm:$0xff]
    %v2316 = vld [vmem:[#allocation12 + $0x898] sm:$0xff]
    %v2317 = vld [vmem:[#allocation12 + $0x8a0] sm:$0xff]
    %v2318 = vld [vmem:[#allocation12 + $0x8a8] sm:$0xff]
    %v2319 = vld [vmem:[#allocation12 + $0x8b0] sm:$0xff]
    %v2320 = vld [vmem:[#allocation12 + $0x8b8] sm:$0xff]
    %v2321 = vld [vmem:[#allocation12 + $0x8c0] sm:$0xff]
    %v2322 = vld [vmem:[#allocation12 + $0x8c8] sm:$0xff]
    %v2323 = vld [vmem:[#allocation12 + $0x8d0] sm:$0xff]
    %v2324 = vld [vmem:[#allocation12 + $0x8d8] sm:$0xff]
    %v2325 = vld [vmem:[#allocation12 + $0x8e0] sm:$0xff]
    %v2326 = vld [vmem:[#allocation12 + $0x8e8] sm:$0xff]
    %v2327 = vld [vmem:[#allocation12 + $0x8f0] sm:$0xff]
    %v2328 = vld [vmem:[#allocation12 + $0x8f8] sm:$0xff]
    %v2329 = vld [vmem:[#allocation12 + $0x900] sm:$0xff]
    %v2330 = vld [vmem:[#allocation12 + $0x908] sm:$0xff]
    %v2331 = vld [vmem:[#allocation12 + $0x910] sm:$0xff]
    %v2332 = vld [vmem:[#allocation12 + $0x918] sm:$0xff]
    %v2333 = vld [vmem:[#allocation12 + $0x920] sm:$0xff]
    %v2334 = vld [vmem:[#allocation12 + $0x928] sm:$0xff]
    %v2335 = vld [vmem:[#allocation12 + $0x930] sm:$0xff]
    %v2336 = vld [vmem:[#allocation12 + $0x938] sm:$0xff]
    %v2337 = vld [vmem:[#allocation12 + $0x940] sm:$0xff]
    %v2338 = vld [vmem:[#allocation12 + $0x948] sm:$0xff]
    %v2339 = vld [vmem:[#allocation12 + $0x950] sm:$0xff]
    %v2340 = vld [vmem:[#allocation12 + $0x958] sm:$0xff]
    %v2341 = vld [vmem:[#allocation12 + $0x960] sm:$0xff]
    %v2342 = vld [vmem:[#allocation12 + $0x968] sm:$0xff]
    %v2343 = vld [vmem:[#allocation12 + $0x970] sm:$0xff]
    %v2344 = vld [vmem:[#allocation12 + $0x978] sm:$0xff]
    %v2345 = vld [vmem:[#allocation12 + $0x980] sm:$0xff]
    %v2346 = vld [vmem:[#allocation12 + $0x988] sm:$0xff]
    %v2347 = vld [vmem:[#allocation12 + $0x990] sm:$0xff]
    %v2348 = vld [vmem:[#allocation12 + $0x998] sm:$0xff]
    %v2349 = vld [vmem:[#allocation12 + $0x9a0] sm:$0xff]
    %v2350 = vld [vmem:[#allocation12 + $0x9a8] sm:$0xff]
    %v2351 = vld [vmem:[#allocation12 + $0x9b0] sm:$0xff]
    %v2352 = vld [vmem:[#allocation12 + $0x9b8] sm:$0xff]
    %v2353 = vld [vmem:[#allocation12 + $0x9c0] sm:$0xff]
    %v2354 = vld [vmem:[#allocation12 + $0x9c8] sm:$0xff]
    %v2355 = vld [vmem:[#allocation12 + $0x9d0] sm:$0xff]
    %v2356 = vld [vmem:[#allocation12 + $0x9d8] sm:$0xff]
    %v2357 = vld [vmem:[#allocation12 + $0x9e0] sm:$0xff]
    %v2358 = vld [vmem:[#allocation12 + $0x9e8] sm:$0xff]
    %v2359 = vld [vmem:[#allocation12 + $0x9f0] sm:$0xff]
    %v2360 = vld [vmem:[#allocation12 + $0x9f8] sm:$0xff]
    %v2361 = vld [vmem:[#allocation12 + $0xa00] sm:$0xff]
    %v2362 = vld [vmem:[#allocation12 + $0xa08] sm:$0xff]
    %v2363 = vld [vmem:[#allocation12 + $0xa10] sm:$0xff]
    %v2364 = vld [vmem:[#allocation12 + $0xa18] sm:$0xff]
    %v2365 = vld [vmem:[#allocation12 + $0xa20] sm:$0xff]
    %v2366 = vld [vmem:[#allocation12 + $0xa28] sm:$0xff]
    %v2367 = vld [vmem:[#allocation12 + $0xa30] sm:$0xff]
    %v2368 = vld [vmem:[#allocation12 + $0xa38] sm:$0xff]
    %v2369 = vld [vmem:[#allocation12 + $0xa40] sm:$0xff]
    %v2370 = vld [vmem:[#allocation12 + $0xa48] sm:$0xff]
    %v2371 = vld [vmem:[#allocation12 + $0xa50] sm:$0xff]
    %v2372 = vld [vmem:[#allocation12 + $0xa58] sm:$0xff]
    %v2373 = vld [vmem:[#allocation12 + $0xa60] sm:$0xff]
    %v2374 = vld [vmem:[#allocation12 + $0xa68] sm:$0xff]
    %v2375 = vld [vmem:[#allocation12 + $0xa70] sm:$0xff]
    %v2376 = vld [vmem:[#allocation12 + $0xa78] sm:$0xff]
    %v2377 = vld [vmem:[#allocation12 + $0xa80] sm:$0xff]
    %v2378 = vld [vmem:[#allocation12 + $0xa88] sm:$0xff]
    %v2379 = vld [vmem:[#allocation12 + $0xa90] sm:$0xff]
    %v2380 = vld [vmem:[#allocation12 + $0xa98] sm:$0xff]
    %v2381 = vld [vmem:[#allocation12 + $0xaa0] sm:$0xff]
    %v2382 = vld [vmem:[#allocation12 + $0xaa8] sm:$0xff]
    %v2383 = vld [vmem:[#allocation12 + $0xab0] sm:$0xff]
    %v2384 = vld [vmem:[#allocation12 + $0xab8] sm:$0xff]
    %v2385 = vld [vmem:[#allocation12 + $0xac0] sm:$0xff]
    %v2386 = vld [vmem:[#allocation12 + $0xac8] sm:$0xff]
    %v2387 = vld [vmem:[#allocation12 + $0xad0] sm:$0xff]
    %v2388 = vld [vmem:[#allocation12 + $0xad8] sm:$0xff]
    %v2389 = vld [vmem:[#allocation12 + $0xae0] sm:$0xff]
    %v2390 = vld [vmem:[#allocation12 + $0xae8] sm:$0xff]
    %v2391 = vld [vmem:[#allocation12 + $0xaf0] sm:$0xff]
    %v2392 = vld [vmem:[#allocation12 + $0xaf8] sm:$0xff]
    %v2393 = vld [vmem:[#allocation12 + $0xb00] sm:$0xff]
    %v2394 = vld [vmem:[#allocation12 + $0xb08] sm:$0xff]
    %v2395 = vld [vmem:[#allocation12 + $0xb10] sm:$0xff]
    %v2396 = vld [vmem:[#allocation12 + $0xb18] sm:$0xff]
    %v2397 = vld [vmem:[#allocation12 + $0xb20] sm:$0xff]
    %v2398 = vld [vmem:[#allocation12 + $0xb28] sm:$0xff]
    %v2399 = vld [vmem:[#allocation12 + $0xb30] sm:$0xff]
    %v2400 = vld [vmem:[#allocation12 + $0xb38] sm:$0xff]
    %v2401 = vld [vmem:[#allocation12 + $0xb40] sm:$0xff]
    %v2402 = vld [vmem:[#allocation12 + $0xb48] sm:$0xff]
    %v2403 = vld [vmem:[#allocation12 + $0xb50] sm:$0xff]
    %v2404 = vld [vmem:[#allocation12 + $0xb58] sm:$0xff]
    %v2405 = vld [vmem:[#allocation12 + $0xb60] sm:$0xff]
    %v2406 = vld [vmem:[#allocation12 + $0xb68] sm:$0xff]
    %v2407 = vld [vmem:[#allocation12 + $0xb70] sm:$0xff]
    %v2408 = vld [vmem:[#allocation12 + $0xb78] sm:$0xff]
    %v2409 = vld [vmem:[#allocation12 + $0xb80] sm:$0xff]
    %v2410 = vld [vmem:[#allocation12 + $0xb88] sm:$0xff]
    %v2411 = vld [vmem:[#allocation12 + $0xb90] sm:$0xff]
    %v2412 = vld [vmem:[#allocation12 + $0xb98] sm:$0xff]
    %v2413 = vld [vmem:[#allocation12 + $0xba0] sm:$0xff]
    %v2414 = vld [vmem:[#allocation12 + $0xba8] sm:$0xff]
    %v2415 = vld [vmem:[#allocation12 + $0xbb0] sm:$0xff]
    %v2416 = vld [vmem:[#allocation12 + $0xbb8] sm:$0xff]
    %v2417 = vld [vmem:[#allocation12 + $0xbc0] sm:$0xff]
    %v2418 = vld [vmem:[#allocation12 + $0xbc8] sm:$0xff]
    %v2419 = vld [vmem:[#allocation12 + $0xbd0] sm:$0xff]
    %v2420 = vld [vmem:[#allocation12 + $0xbd8] sm:$0xff]
    %v2421 = vld [vmem:[#allocation12 + $0xbe0] sm:$0xff]
    %v2422 = vld [vmem:[#allocation12 + $0xbe8] sm:$0xff]
    %v2423 = vld [vmem:[#allocation12 + $0xbf0] sm:$0xff]
    %v2424 = vld [vmem:[#allocation12 + $0xbf8] sm:$0xff]
    %v2425 = vld [vmem:[#allocation12 + $0xc00] sm:$0xff]
    %v2426 = vld [vmem:[#allocation12 + $0xc08] sm:$0xff]
    %v2427 = vld [vmem:[#allocation12 + $0xc10] sm:$0xff]
    %v2428 = vld [vmem:[#allocation12 + $0xc18] sm:$0xff]
    %v2429 = vld [vmem:[#allocation12 + $0xc20] sm:$0xff]
    %v2430 = vld [vmem:[#allocation12 + $0xc28] sm:$0xff]
    %v2431 = vld [vmem:[#allocation12 + $0xc30] sm:$0xff]
    %v2432 = vld [vmem:[#allocation12 + $0xc38] sm:$0xff]
    %v2433 = vld [vmem:[#allocation12 + $0xc40] sm:$0xff]
    %v2434 = vld [vmem:[#allocation12 + $0xc48] sm:$0xff]
    %v2435 = vld [vmem:[#allocation12 + $0xc50] sm:$0xff]
    %v2436 = vld [vmem:[#allocation12 + $0xc58] sm:$0xff]
    %v2437 = vld [vmem:[#allocation12 + $0xc60] sm:$0xff]
    %v2438 = vld [vmem:[#allocation12 + $0xc68] sm:$0xff]
    %v2439 = vld [vmem:[#allocation12 + $0xc70] sm:$0xff]
    %v2440 = vld [vmem:[#allocation12 + $0xc78] sm:$0xff]
    %v2441 = vld [vmem:[#allocation12 + $0xc80] sm:$0xff]
    %v2442 = vld [vmem:[#allocation12 + $0xc88] sm:$0xff]
    %v2443 = vld [vmem:[#allocation12 + $0xc90] sm:$0xff]
    %v2444 = vld [vmem:[#allocation12 + $0xc98] sm:$0xff]
    %v2445 = vld [vmem:[#allocation12 + $0xca0] sm:$0xff]
    %v2446 = vld [vmem:[#allocation12 + $0xca8] sm:$0xff]
    %v2447 = vld [vmem:[#allocation12 + $0xcb0] sm:$0xff]
    %v2448 = vld [vmem:[#allocation12 + $0xcb8] sm:$0xff]
    %v2449 = vld [vmem:[#allocation12 + $0xcc0] sm:$0xff]
    %v2450 = vld [vmem:[#allocation12 + $0xcc8] sm:$0xff]
    %v2451 = vld [vmem:[#allocation12 + $0xcd0] sm:$0xff]
    %v2452 = vld [vmem:[#allocation12 + $0xcd8] sm:$0xff]
    %v2453 = vld [vmem:[#allocation12 + $0xce0] sm:$0xff]
    %v2454 = vld [vmem:[#allocation12 + $0xce8] sm:$0xff]
    %v2455 = vld [vmem:[#allocation12 + $0xcf0] sm:$0xff]
    %v2456 = vld [vmem:[#allocation12 + $0xcf8] sm:$0xff]
    %v2457 = vld [vmem:[#allocation12 + $0xd00] sm:$0xff]
    %v2458 = vld [vmem:[#allocation12 + $0xd08] sm:$0xff]
    %v2459 = vld [vmem:[#allocation12 + $0xd10] sm:$0xff]
    %v2460 = vld [vmem:[#allocation12 + $0xd18] sm:$0xff]
    %v2461 = vld [vmem:[#allocation12 + $0xd20] sm:$0xff]
    %v2462 = vld [vmem:[#allocation12 + $0xd28] sm:$0xff]
    %v2463 = vld [vmem:[#allocation12 + $0xd30] sm:$0xff]
    %v2464 = vld [vmem:[#allocation12 + $0xd38] sm:$0xff]
    %v2465 = vld [vmem:[#allocation12 + $0xd40] sm:$0xff]
    %v2466 = vld [vmem:[#allocation12 + $0xd48] sm:$0xff]
    %v2467 = vld [vmem:[#allocation12 + $0xd50] sm:$0xff]
    %v2468 = vld [vmem:[#allocation12 + $0xd58] sm:$0xff]
    %v2469 = vld [vmem:[#allocation12 + $0xd60] sm:$0xff]
    %v2470 = vld [vmem:[#allocation12 + $0xd68] sm:$0xff]
    %v2471 = vld [vmem:[#allocation12 + $0xd70] sm:$0xff]
    %v2472 = vld [vmem:[#allocation12 + $0xd78] sm:$0xff]
    %v2473 = vld [vmem:[#allocation12 + $0xd80] sm:$0xff]
    %v2474 = vld [vmem:[#allocation12 + $0xd88] sm:$0xff]
    %v2475 = vld [vmem:[#allocation12 + $0xd90] sm:$0xff]
    %v2476 = vld [vmem:[#allocation12 + $0xd98] sm:$0xff]
    %v2477 = vld [vmem:[#allocation12 + $0xda0] sm:$0xff]
    %v2478 = vld [vmem:[#allocation12 + $0xda8] sm:$0xff]
    %v2479 = vld [vmem:[#allocation12 + $0xdb0] sm:$0xff]
    %v2480 = vld [vmem:[#allocation12 + $0xdb8] sm:$0xff]
    %v2481 = vld [vmem:[#allocation12 + $0xdc0] sm:$0xff]
    %v2482 = vld [vmem:[#allocation12 + $0xdc8] sm:$0xff]
    %v2483 = vld [vmem:[#allocation12 + $0xdd0] sm:$0xff]
    %v2484 = vld [vmem:[#allocation12 + $0xdd8] sm:$0xff]
    %v2485 = vld [vmem:[#allocation12 + $0xde0] sm:$0xff]
    %v2486 = vld [vmem:[#allocation12 + $0xde8] sm:$0xff]
    %v2487 = vld [vmem:[#allocation12 + $0xdf0] sm:$0xff]
    %v2488 = vld [vmem:[#allocation12 + $0xdf8] sm:$0xff]
    %v2489 = vld [vmem:[#allocation12 + $0xe00] sm:$0xff]
    %v2490 = vld [vmem:[#allocation12 + $0xe08] sm:$0xff]
    %v2491 = vld [vmem:[#allocation12 + $0xe10] sm:$0xff]
    %v2492 = vld [vmem:[#allocation12 + $0xe18] sm:$0xff]
    %v2493 = vld [vmem:[#allocation12 + $0xe20] sm:$0xff]
    %v2494 = vld [vmem:[#allocation12 + $0xe28] sm:$0xff]
    %v2495 = vld [vmem:[#allocation12 + $0xe30] sm:$0xff]
    %v2496 = vld [vmem:[#allocation12 + $0xe38] sm:$0xff]
    %v2497 = vld [vmem:[#allocation12 + $0xe40] sm:$0xff]
    %v2498 = vld [vmem:[#allocation12 + $0xe48] sm:$0xff]
    %v2499 = vld [vmem:[#allocation12 + $0xe50] sm:$0xff]
    %v2500 = vld [vmem:[#allocation12 + $0xe58] sm:$0xff]
    %v2501 = vld [vmem:[#allocation12 + $0xe60] sm:$0xff]
    %v2502 = vld [vmem:[#allocation12 + $0xe68] sm:$0xff]
    %v2503 = vld [vmem:[#allocation12 + $0xe70] sm:$0xff]
    %v2504 = vld [vmem:[#allocation12 + $0xe78] sm:$0xff]
    %v2505 = vld [vmem:[#allocation12 + $0xe80] sm:$0xff]
    %v2506 = vld [vmem:[#allocation12 + $0xe88] sm:$0xff]
    %v2507 = vld [vmem:[#allocation12 + $0xe90] sm:$0xff]
    %v2508 = vld [vmem:[#allocation12 + $0xe98] sm:$0xff]
    %v2509 = vld [vmem:[#allocation12 + $0xea0] sm:$0xff]
    %v2510 = vld [vmem:[#allocation12 + $0xea8] sm:$0xff]
    %v2511 = vld [vmem:[#allocation12 + $0xeb0] sm:$0xff]
    %v2512 = vld [vmem:[#allocation12 + $0xeb8] sm:$0xff]
    %v2513 = vld [vmem:[#allocation13] sm:$0x3]
    %v2515 = vperm.slane %v2513, 0
    %v2516 = vperm.slane %v2513, 1
    %v2991 = vunpack.c.l.b16 %v2041
    %v2992 = vunpack.c.h.b16 %v2041
    %v2993 = vunpack.c.l.b16 %v2042
    %v2994 = vunpack.c.h.b16 %v2042
    %v2995 = vunpack.c.l.b16 %v2043
    %v2996 = vunpack.c.h.b16 %v2043
    %v2997 = vunpack.c.l.b16 %v2044
    %v2998 = vunpack.c.h.b16 %v2044
    %v2999 = vunpack.c.l.b16 %v2045
    %v3000 = vunpack.c.h.b16 %v2045
    %v3001 = vunpack.c.l.b16 %v2046
    %v3002 = vunpack.c.h.b16 %v2046
    %v3003 = vunpack.c.l.b16 %v2047
    %v3004 = vunpack.c.h.b16 %v2047
    %v3005 = vunpack.c.l.b16 %v2048
    %v3006 = vunpack.c.h.b16 %v2048
    %v3007 = vunpack.c.l.b16 %v2049
    %v3008 = vunpack.c.h.b16 %v2049
    %v3009 = vunpack.c.l.b16 %v2050
    %v3010 = vunpack.c.h.b16 %v2050
    %v3011 = vunpack.c.l.b16 %v2051
    %v3012 = vunpack.c.h.b16 %v2051
    %v3013 = vunpack.c.l.b16 %v2052
    %v3014 = vunpack.c.h.b16 %v2052
    %v3015 = vunpack.c.l.b16 %v2053
    %v3016 = vunpack.c.h.b16 %v2053
    %v3017 = vunpack.c.l.b16 %v2054
    %v3018 = vunpack.c.h.b16 %v2054
    %v3019 = vunpack.c.l.b16 %v2055
    %v3020 = vunpack.c.h.b16 %v2055
    %v3021 = vunpack.c.l.b16 %v2056
    %v3022 = vunpack.c.h.b16 %v2056
    %v3023 = vunpack.c.l.b16 %v2057
    %v3024 = vunpack.c.h.b16 %v2057
    %v3025 = vunpack.c.l.b16 %v2058
    %v3026 = vunpack.c.h.b16 %v2058
    %v3027 = vunpack.c.l.b16 %v2059
    %v3028 = vunpack.c.h.b16 %v2059
    %v3029 = vunpack.c.l.b16 %v2060
    %v3030 = vunpack.c.h.b16 %v2060
    %v3031 = vunpack.c.l.b16 %v2061
    %v3032 = vunpack.c.h.b16 %v2061
    %v3033 = vunpack.c.l.b16 %v2062
    %v3034 = vunpack.c.h.b16 %v2062
    %v3035 = vunpack.c.l.b16 %v2063
    %v3036 = vunpack.c.h.b16 %v2063
    %v3037 = vunpack.c.l.b16 %v2064
    %v3038 = vunpack.c.h.b16 %v2064
    %v3039 = vunpack.c.l.b16 %v2065
    %v3040 = vunpack.c.h.b16 %v2065
    %v3041 = vunpack.c.l.b16 %v2066
    %v3042 = vunpack.c.h.b16 %v2066
    %v3043 = vunpack.c.l.b16 %v2067
    %v3044 = vunpack.c.h.b16 %v2067
    %v3045 = vunpack.c.l.b16 %v2068
    %v3046 = vunpack.c.h.b16 %v2068
    %v3047 = vunpack.c.l.b16 %v2069
    %v3048 = vunpack.c.h.b16 %v2069
    %v3049 = vunpack.c.l.b16 %v2070
    %v3050 = vunpack.c.h.b16 %v2070
    %v3051 = vunpack.c.l.b16 %v2071
    %v3052 = vunpack.c.h.b16 %v2071
    %v3053 = vunpack.c.l.b16 %v2072
    %v3054 = vunpack.c.h.b16 %v2072
    %v3055 = vunpack.c.l.b16 %v2073
    %v3056 = vunpack.c.h.b16 %v2073
    %v3057 = vunpack.c.l.b16 %v2074
    %v3058 = vunpack.c.h.b16 %v2074
    %v3059 = vunpack.c.l.b16 %v2075
    %v3060 = vunpack.c.h.b16 %v2075
    %v3061 = vunpack.c.l.b16 %v2076
    %v3062 = vunpack.c.h.b16 %v2076
    %v3063 = vunpack.c.l.b16 %v2077
    %v3064 = vunpack.c.h.b16 %v2077
    %v3065 = vunpack.c.l.b16 %v2078
    %v3066 = vunpack.c.h.b16 %v2078
    %v3067 = vunpack.c.l.b16 %v2079
    %v3068 = vunpack.c.h.b16 %v2079
    %v3069 = vunpack.c.l.b16 %v2080
    %v3070 = vunpack.c.h.b16 %v2080
    %v3071 = vunpack.c.l.b16 %v2081
    %v3072 = vunpack.c.h.b16 %v2081
    %v3073 = vunpack.c.l.b16 %v2082
    %v3074 = vunpack.c.h.b16 %v2082
    %v3075 = vunpack.c.l.b16 %v2083
    %v3076 = vunpack.c.h.b16 %v2083
    %v3077 = vunpack.c.l.b16 %v2084
    %v3078 = vunpack.c.h.b16 %v2084
    %v3079 = vunpack.c.l.b16 %v2085
    %v3080 = vunpack.c.h.b16 %v2085
    %v3081 = vunpack.c.l.b16 %v2086
    %v3082 = vunpack.c.h.b16 %v2086
    %v3083 = vunpack.c.l.b16 %v2087
    %v3084 = vunpack.c.h.b16 %v2087
    %v3085 = vunpack.c.l.b16 %v2088
    %v3086 = vunpack.c.h.b16 %v2088
    %v3087 = vunpack.c.l.b16 %v2089
    %v3088 = vunpack.c.h.b16 %v2089
    %v3089 = vunpack.c.l.b16 %v2090
    %v3090 = vunpack.c.h.b16 %v2090
    %v3091 = vunpack.c.l.b16 %v2091
    %v3092 = vunpack.c.h.b16 %v2091
    %v3093 = vunpack.c.l.b16 %v2092
    %v3094 = vunpack.c.h.b16 %v2092
    %v3095 = vunpack.c.l.b16 %v2093
    %v3096 = vunpack.c.h.b16 %v2093
    %v3097 = vunpack.c.l.b16 %v2094
    %v3098 = vunpack.c.h.b16 %v2094
    %v3099 = vunpack.c.l.b16 %v2095
    %v3100 = vunpack.c.h.b16 %v2095
    %v3101 = vunpack.c.l.b16 %v2096
    %v3102 = vunpack.c.h.b16 %v2096
    %v3103 = vunpack.c.l.b16 %v2097
    %v3104 = vunpack.c.h.b16 %v2097
    %v3105 = vunpack.c.l.b16 %v2098
    %v3106 = vunpack.c.h.b16 %v2098
    %v3107 = vunpack.c.l.b16 %v2099
    %v3108 = vunpack.c.h.b16 %v2099
    %v3109 = vunpack.c.l.b16 %v2100
    %v3110 = vunpack.c.h.b16 %v2100
    %v3111 = vunpack.c.l.b16 %v2101
    %v3112 = vunpack.c.h.b16 %v2101
    %v3113 = vunpack.c.l.b16 %v2102
    %v3114 = vunpack.c.h.b16 %v2102
    %v3115 = vunpack.c.l.b16 %v2103
    %v3116 = vunpack.c.h.b16 %v2103
    %v3117 = vunpack.c.l.b16 %v2104
    %v3118 = vunpack.c.h.b16 %v2104
    %v3119 = vunpack.c.l.b16 %v2105
    %v3120 = vunpack.c.h.b16 %v2105
    %v3121 = vunpack.c.l.b16 %v2106
    %v3122 = vunpack.c.h.b16 %v2106
    %v3123 = vunpack.c.l.b16 %v2107
    %v3124 = vunpack.c.h.b16 %v2107
    %v3125 = vunpack.c.l.b16 %v2108
    %v3126 = vunpack.c.h.b16 %v2108
    %v3127 = vunpack.c.l.b16 %v2109
    %v3128 = vunpack.c.h.b16 %v2109
    %v3129 = vunpack.c.l.b16 %v2110
    %v3130 = vunpack.c.h.b16 %v2110
    %v3131 = vunpack.c.l.b16 %v2111
    %v3132 = vunpack.c.h.b16 %v2111
    %v3133 = vunpack.c.l.b16 %v2112
    %v3134 = vunpack.c.h.b16 %v2112
    %v3135 = vunpack.c.l.b16 %v2113
    %v3136 = vunpack.c.h.b16 %v2113
    %v3137 = vunpack.c.l.b16 %v2114
    %v3138 = vunpack.c.h.b16 %v2114
    %v3139 = vunpack.c.l.b16 %v2115
    %v3140 = vunpack.c.h.b16 %v2115
    %v3141 = vunpack.c.l.b16 %v2116
    %v3142 = vunpack.c.h.b16 %v2116
    %v3143 = vunpack.c.l.b16 %v2117
    %v3144 = vunpack.c.h.b16 %v2117
    %v3145 = vunpack.c.l.b16 %v2118
    %v3146 = vunpack.c.h.b16 %v2118
    %v3147 = vunpack.c.l.b16 %v2119
    %v3148 = vunpack.c.h.b16 %v2119
    %v3149 = vunpack.c.l.b16 %v2120
    %v3150 = vunpack.c.h.b16 %v2120
    %v3151 = vunpack.c.l.b16 %v2121
    %v3152 = vunpack.c.h.b16 %v2121
    %v3153 = vunpack.c.l.b16 %v2122
    %v3154 = vunpack.c.h.b16 %v2122
    %v3155 = vunpack.c.l.b16 %v2123
    %v3156 = vunpack.c.h.b16 %v2123
    %v3157 = vunpack.c.l.b16 %v2124
    %v3158 = vunpack.c.h.b16 %v2124
    %v3159 = vunpack.c.l.b16 %v2125
    %v3160 = vunpack.c.h.b16 %v2125
    %v3161 = vunpack.c.l.b16 %v2126
    %v3162 = vunpack.c.h.b16 %v2126
    %v3163 = vunpack.c.l.b16 %v2127
    %v3164 = vunpack.c.h.b16 %v2127
    %v3165 = vunpack.c.l.b16 %v2128
    %v3166 = vunpack.c.h.b16 %v2128
    %v3167 = vunpack.c.l.b16 %v2129
    %v3168 = vunpack.c.h.b16 %v2129
    %v3169 = vunpack.c.l.b16 %v2130
    %v3170 = vunpack.c.h.b16 %v2130
    %v3171 = vunpack.c.l.b16 %v2131
    %v3172 = vunpack.c.h.b16 %v2131
    %v3173 = vunpack.c.l.b16 %v2132
    %v3174 = vunpack.c.h.b16 %v2132
    %v3175 = vunpack.c.l.b16 %v2133
    %v3176 = vunpack.c.h.b16 %v2133
    %v3177 = vunpack.c.l.b16 %v2134
    %v3178 = vunpack.c.h.b16 %v2134
    %v3179 = vunpack.c.l.b16 %v2135
    %v3180 = vunpack.c.h.b16 %v2135
    %v3181 = vunpack.c.l.b16 %v2136
    %v3182 = vunpack.c.h.b16 %v2136
    %v3183 = vunpack.c.l.b16 %v2137
    %v3184 = vunpack.c.h.b16 %v2137
    %v3185 = vunpack.c.l.b16 %v2138
    %v3186 = vunpack.c.h.b16 %v2138
    %v3187 = vunpack.c.l.b16 %v2139
    %v3188 = vunpack.c.h.b16 %v2139
    %v3189 = vunpack.c.l.b16 %v2140
    %v3190 = vunpack.c.h.b16 %v2140
    %v3191 = vunpack.c.l.b16 %v2141
    %v3192 = vunpack.c.h.b16 %v2141
    %v3193 = vunpack.c.l.b16 %v2142
    %v3194 = vunpack.c.h.b16 %v2142
    %v3195 = vunpack.c.l.b16 %v2143
    %v3196 = vunpack.c.h.b16 %v2143
    %v3197 = vunpack.c.l.b16 %v2144
    %v3198 = vunpack.c.h.b16 %v2144
    %v3199 = vunpack.c.l.b16 %v2145
    %v3200 = vunpack.c.h.b16 %v2145
    %v3201 = vunpack.c.l.b16 %v2146
    %v3202 = vunpack.c.h.b16 %v2146
    %v3203 = vunpack.c.l.b16 %v2147
    %v3204 = vunpack.c.h.b16 %v2147
    %v3205 = vunpack.c.l.b16 %v2148
    %v3206 = vunpack.c.h.b16 %v2148
    %v3207 = vunpack.c.l.b16 %v2149
    %v3208 = vunpack.c.h.b16 %v2149
    %v3209 = vunpack.c.l.b16 %v2150
    %v3210 = vunpack.c.h.b16 %v2150
    %v3211 = vunpack.c.l.b16 %v2151
    %v3212 = vunpack.c.h.b16 %v2151
    %v3213 = vunpack.c.l.b16 %v2152
    %v3214 = vunpack.c.h.b16 %v2152
    %v3215 = vunpack.c.l.b16 %v2153
    %v3216 = vunpack.c.h.b16 %v2153
    %v3217 = vunpack.c.l.b16 %v2154
    %v3218 = vunpack.c.h.b16 %v2154
    %v3219 = vunpack.c.l.b16 %v2155
    %v3220 = vunpack.c.h.b16 %v2155
    %v3221 = vunpack.c.l.b16 %v2156
    %v3222 = vunpack.c.h.b16 %v2156
    %v3223 = vunpack.c.l.b16 %v2157
    %v3224 = vunpack.c.h.b16 %v2157
    %v3225 = vunpack.c.l.b16 %v2158
    %v3226 = vunpack.c.h.b16 %v2158
    %v3227 = vunpack.c.l.b16 %v2159
    %v3228 = vunpack.c.h.b16 %v2159
    %v3229 = vunpack.c.l.b16 %v2160
    %v3230 = vunpack.c.h.b16 %v2160
    %v3231 = vunpack.c.l.b16 %v2161
    %v3232 = vunpack.c.h.b16 %v2161
    %v3233 = vunpack.c.l.b16 %v2162
    %v3234 = vunpack.c.h.b16 %v2162
    %v3235 = vunpack.c.l.b16 %v2163
    %v3236 = vunpack.c.h.b16 %v2163
    %v3237 = vunpack.c.l.b16 %v2164
    %v3238 = vunpack.c.h.b16 %v2164
    %v3239 = vunpack.c.l.b16 %v2165
    %v3240 = vunpack.c.h.b16 %v2165
    %v3241 = vunpack.c.l.b16 %v2166
    %v3242 = vunpack.c.h.b16 %v2166
    %v3243 = vunpack.c.l.b16 %v2167
    %v3244 = vunpack.c.h.b16 %v2167
    %v3245 = vunpack.c.l.b16 %v2168
    %v3246 = vunpack.c.h.b16 %v2168
    %v3247 = vunpack.c.l.b16 %v2169
    %v3248 = vunpack.c.h.b16 %v2169
    %v3249 = vunpack.c.l.b16 %v2170
    %v3250 = vunpack.c.h.b16 %v2170
    %v3251 = vunpack.c.l.b16 %v2171
    %v3252 = vunpack.c.h.b16 %v2171
    %v3253 = vunpack.c.l.b16 %v2172
    %v3254 = vunpack.c.h.b16 %v2172
    %v3255 = vunpack.c.l.b16 %v2173
    %v3256 = vunpack.c.h.b16 %v2173
    %v3257 = vunpack.c.l.b16 %v2174
    %v3258 = vunpack.c.h.b16 %v2174
    %v3259 = vunpack.c.l.b16 %v2175
    %v3260 = vunpack.c.h.b16 %v2175
    %v3261 = vunpack.c.l.b16 %v2176
    %v3262 = vunpack.c.h.b16 %v2176
    %v3263 = vunpack.c.l.b16 %v2177
    %v3264 = vunpack.c.h.b16 %v2177
    %v3265 = vunpack.c.l.b16 %v2178
    %v3266 = vunpack.c.h.b16 %v2178
    %v3267 = vunpack.c.l.b16 %v2179
    %v3268 = vunpack.c.h.b16 %v2179
    %v3269 = vunpack.c.l.b16 %v2180
    %v3270 = vunpack.c.h.b16 %v2180
    %v3271 = vunpack.c.l.b16 %v2181
    %v3272 = vunpack.c.h.b16 %v2181
    %v3273 = vunpack.c.l.b16 %v2182
    %v3274 = vunpack.c.h.b16 %v2182
    %v3275 = vunpack.c.l.b16 %v2183
    %v3276 = vunpack.c.h.b16 %v2183
    %v3277 = vunpack.c.l.b16 %v2184
    %v3278 = vunpack.c.h.b16 %v2184
    %v3279 = vunpack.c.l.b16 %v2185
    %v3280 = vunpack.c.h.b16 %v2185
    %v3281 = vunpack.c.l.b16 %v2186
    %v3282 = vunpack.c.h.b16 %v2186
    %v3283 = vunpack.c.l.b16 %v2187
    %v3284 = vunpack.c.h.b16 %v2187
    %v3285 = vunpack.c.l.b16 %v2188
    %v3286 = vunpack.c.h.b16 %v2188
    %v3287 = vunpack.c.l.b16 %v2189
    %v3288 = vunpack.c.h.b16 %v2189
    %v3289 = vunpack.c.l.b16 %v2190
    %v3290 = vunpack.c.h.b16 %v2190
    %v3291 = vunpack.c.l.b16 %v2191
    %v3292 = vunpack.c.h.b16 %v2191
    %v3293 = vunpack.c.l.b16 %v2192
    %v3294 = vunpack.c.h.b16 %v2192
    %v3295 = vunpack.c.l.b16 %v2193
    %v3296 = vunpack.c.h.b16 %v2193
    %v3297 = vunpack.c.l.b16 %v2194
    %v3298 = vunpack.c.h.b16 %v2194
    %v3299 = vunpack.c.l.b16 %v2195
    %v3300 = vunpack.c.h.b16 %v2195
    %v3301 = vunpack.c.l.b16 %v2196
    %v3302 = vunpack.c.h.b16 %v2196
    %v3303 = vunpack.c.l.b16 %v2197
    %v3304 = vunpack.c.h.b16 %v2197
    %v3305 = vunpack.c.l.b16 %v2198
    %v3306 = vunpack.c.h.b16 %v2198
    %v3307 = vunpack.c.l.b16 %v2199
    %v3308 = vunpack.c.h.b16 %v2199
    %v3309 = vunpack.c.l.b16 %v2200
    %v3310 = vunpack.c.h.b16 %v2200
    %v3311 = vunpack.c.l.b16 %v2201
    %v3312 = vunpack.c.h.b16 %v2201
    %v3313 = vunpack.c.l.b16 %v2202
    %v3314 = vunpack.c.h.b16 %v2202
    %v3315 = vunpack.c.l.b16 %v2203
    %v3316 = vunpack.c.h.b16 %v2203
    %v3317 = vunpack.c.l.b16 %v2204
    %v3318 = vunpack.c.h.b16 %v2204
    %v3319 = vunpack.c.l.b16 %v2205
    %v3320 = vunpack.c.h.b16 %v2205
    %v3321 = vunpack.c.l.b16 %v2206
    %v3322 = vunpack.c.h.b16 %v2206
    %v3323 = vunpack.c.l.b16 %v2207
    %v3324 = vunpack.c.h.b16 %v2207
    %v3325 = vunpack.c.l.b16 %v2208
    %v3326 = vunpack.c.h.b16 %v2208
    %v3327 = vunpack.c.l.b16 %v2209
    %v3328 = vunpack.c.h.b16 %v2209
    %v3329 = vunpack.c.l.b16 %v2210
    %v3330 = vunpack.c.h.b16 %v2210
    %v3331 = vunpack.c.l.b16 %v2211
    %v3332 = vunpack.c.h.b16 %v2211
    %v3333 = vunpack.c.l.b16 %v2212
    %v3334 = vunpack.c.h.b16 %v2212
    %v3335 = vunpack.c.l.b16 %v2213
    %v3336 = vunpack.c.h.b16 %v2213
    %v3337 = vunpack.c.l.b16 %v2214
    %v3338 = vunpack.c.h.b16 %v2214
    %v3339 = vunpack.c.l.b16 %v2215
    %v3340 = vunpack.c.h.b16 %v2215
    %v3341 = vunpack.c.l.b16 %v2216
    %v3342 = vunpack.c.h.b16 %v2216
    %v3343 = vunpack.c.l.b16 %v2217
    %v3344 = vunpack.c.h.b16 %v2217
    %v3345 = vunpack.c.l.b16 %v2218
    %v3346 = vunpack.c.h.b16 %v2218
    %v3347 = vunpack.c.l.b16 %v2219
    %v3348 = vunpack.c.h.b16 %v2219
    %v3349 = vunpack.c.l.b16 %v2220
    %v3350 = vunpack.c.h.b16 %v2220
    %v3351 = vunpack.c.l.b16 %v2221
    %v3352 = vunpack.c.h.b16 %v2221
    %v3353 = vunpack.c.l.b16 %v2222
    %v3354 = vunpack.c.h.b16 %v2222
    %v3355 = vunpack.c.l.b16 %v2223
    %v3356 = vunpack.c.h.b16 %v2223
    %v3357 = vunpack.c.l.b16 %v2224
    %v3358 = vunpack.c.h.b16 %v2224
    %v3359 = vunpack.c.l.b16 %v2225
    %v3360 = vunpack.c.h.b16 %v2225
    %v3361 = vunpack.c.l.b16 %v2226
    %v3362 = vunpack.c.h.b16 %v2226
    %v3363 = vunpack.c.l.b16 %v2227
    %v3364 = vunpack.c.h.b16 %v2227
    %v3365 = vunpack.c.l.b16 %v2228
    %v3366 = vunpack.c.h.b16 %v2228
    %v3367 = vunpack.c.l.b16 %v2229
    %v3368 = vunpack.c.h.b16 %v2229
    %v3369 = vunpack.c.l.b16 %v2230
    %v3370 = vunpack.c.h.b16 %v2230
    %v3371 = vunpack.c.l.b16 %v2231
    %v3372 = vunpack.c.h.b16 %v2231
    %v3373 = vunpack.c.l.b16 %v2232
    %v3374 = vunpack.c.h.b16 %v2232
    %v3375 = vunpack.c.l.b16 %v2233
    %v3376 = vunpack.c.h.b16 %v2233
    %v3377 = vunpack.c.l.b16 %v2234
    %v3378 = vunpack.c.h.b16 %v2234
    %v3379 = vunpack.c.l.b16 %v2235
    %v3380 = vunpack.c.h.b16 %v2235
    %v3381 = vunpack.c.l.b16 %v2236
    %v3382 = vunpack.c.h.b16 %v2236
    %v3383 = vunpack.c.l.b16 %v2237
    %v3384 = vunpack.c.h.b16 %v2237
    %v3385 = vunpack.c.l.b16 %v2238
    %v3386 = vunpack.c.h.b16 %v2238
    %v3387 = vunpack.c.l.b16 %v2239
    %v3388 = vunpack.c.h.b16 %v2239
    %v3389 = vunpack.c.l.b16 %v2240
    %v3390 = vunpack.c.h.b16 %v2240
    %v3391 = vunpack.c.l.b16 %v2241
    %v3392 = vunpack.c.h.b16 %v2241
    %v3393 = vunpack.c.l.b16 %v2242
    %v3394 = vunpack.c.h.b16 %v2242
    %v3395 = vunpack.c.l.b16 %v2243
    %v3396 = vunpack.c.h.b16 %v2243
    %v3397 = vunpack.c.l.b16 %v2244
    %v3398 = vunpack.c.h.b16 %v2244
    %v3399 = vunpack.c.l.b16 %v2245
    %v3400 = vunpack.c.h.b16 %v2245
    %v3401 = vunpack.c.l.b16 %v2246
    %v3402 = vunpack.c.h.b16 %v2246
    %v3403 = vunpack.c.l.b16 %v2247
    %v3404 = vunpack.c.h.b16 %v2247
    %v3405 = vunpack.c.l.b16 %v2248
    %v3406 = vunpack.c.h.b16 %v2248
    %v3407 = vunpack.c.l.b16 %v2249
    %v3408 = vunpack.c.h.b16 %v2249
    %v3409 = vunpack.c.l.b16 %v2250
    %v3410 = vunpack.c.h.b16 %v2250
    %v3411 = vunpack.c.l.b16 %v2251
    %v3412 = vunpack.c.h.b16 %v2251
    %v3413 = vunpack.c.l.b16 %v2252
    %v3414 = vunpack.c.h.b16 %v2252
    %v3415 = vunpack.c.l.b16 %v2253
    %v3416 = vunpack.c.h.b16 %v2253
    %v3417 = vunpack.c.l.b16 %v2254
    %v3418 = vunpack.c.h.b16 %v2254
    %v3419 = vunpack.c.l.b16 %v2255
    %v3420 = vunpack.c.h.b16 %v2255
    %v3421 = vunpack.c.l.b16 %v2256
    %v3422 = vunpack.c.h.b16 %v2256
    %v3423 = vunpack.c.l.b16 %v2257
    %v3424 = vunpack.c.h.b16 %v2257
    %v3425 = vunpack.c.l.b16 %v2258
    %v3426 = vunpack.c.h.b16 %v2258
    %v3427 = vunpack.c.l.b16 %v2259
    %v3428 = vunpack.c.h.b16 %v2259
    %v3429 = vunpack.c.l.b16 %v2260
    %v3430 = vunpack.c.h.b16 %v2260
    %v3431 = vunpack.c.l.b16 %v2261
    %v3432 = vunpack.c.h.b16 %v2261
    %v3433 = vunpack.c.l.b16 %v2262
    %v3434 = vunpack.c.h.b16 %v2262
    %v3435 = vunpack.c.l.b16 %v2263
    %v3436 = vunpack.c.h.b16 %v2263
    %v3437 = vunpack.c.l.b16 %v2264
    %v3438 = vunpack.c.h.b16 %v2264
    %v3439 = vunpack.c.l.b16 %v2265
    %v3440 = vunpack.c.h.b16 %v2265
    %v3441 = vunpack.c.l.b16 %v2266
    %v3442 = vunpack.c.h.b16 %v2266
    %v3443 = vunpack.c.l.b16 %v2267
    %v3444 = vunpack.c.h.b16 %v2267
    %v3445 = vunpack.c.l.b16 %v2268
    %v3446 = vunpack.c.h.b16 %v2268
    %v3447 = vunpack.c.l.b16 %v2269
    %v3448 = vunpack.c.h.b16 %v2269
    %v3449 = vunpack.c.l.b16 %v2270
    %v3450 = vunpack.c.h.b16 %v2270
    %v3451 = vunpack.c.l.b16 %v2271
    %v3452 = vunpack.c.h.b16 %v2271
    %v3453 = vunpack.c.l.b16 %v2272
    %v3454 = vunpack.c.h.b16 %v2272
    %v3455 = vunpack.c.l.b16 %v2273
    %v3456 = vunpack.c.h.b16 %v2273
    %v3457 = vunpack.c.l.b16 %v2274
    %v3458 = vunpack.c.h.b16 %v2274
    %v3459 = vunpack.c.l.b16 %v2275
    %v3460 = vunpack.c.h.b16 %v2275
    %v3461 = vunpack.c.l.b16 %v2276
    %v3462 = vunpack.c.h.b16 %v2276
    %v3463 = vunpack.c.l.b16 %v2277
    %v3464 = vunpack.c.h.b16 %v2277
    %v3465 = vunpack.c.l.b16 %v2278
    %v3466 = vunpack.c.h.b16 %v2278
    %v3467 = vunpack.c.l.b16 %v2279
    %v3468 = vunpack.c.h.b16 %v2279
    %v3469 = vunpack.c.l.b16 %v2280
    %v3470 = vunpack.c.h.b16 %v2280
    %v3471 = vunpack.c.l.b16 %v2281
    %v3472 = vunpack.c.h.b16 %v2281
    %v3473 = vunpack.c.l.b16 %v2282
    %v3474 = vunpack.c.h.b16 %v2282
    %v3475 = vunpack.c.l.b16 %v2283
    %v3476 = vunpack.c.h.b16 %v2283
    %v3477 = vunpack.c.l.b16 %v2284
    %v3478 = vunpack.c.h.b16 %v2284
    %v3479 = vunpack.c.l.b16 %v2285
    %v3480 = vunpack.c.h.b16 %v2285
    %v3481 = vunpack.c.l.b16 %v2286
    %v3482 = vunpack.c.h.b16 %v2286
    %v3483 = vunpack.c.l.b16 %v2287
    %v3484 = vunpack.c.h.b16 %v2287
    %v3485 = vunpack.c.l.b16 %v2288
    %v3486 = vunpack.c.h.b16 %v2288
    %v3487 = vunpack.c.l.b16 %v2289
    %v3488 = vunpack.c.h.b16 %v2289
    %v3489 = vunpack.c.l.b16 %v2290
    %v3490 = vunpack.c.h.b16 %v2290
    %v3491 = vunpack.c.l.b16 %v2291
    %v3492 = vunpack.c.h.b16 %v2291
    %v3493 = vunpack.c.l.b16 %v2292
    %v3494 = vunpack.c.h.b16 %v2292
    %v3495 = vunpack.c.l.b16 %v2293
    %v3496 = vunpack.c.h.b16 %v2293
    %v3497 = vunpack.c.l.b16 %v2294
    %v3498 = vunpack.c.h.b16 %v2294
    %v3499 = vunpack.c.l.b16 %v2295
    %v3500 = vunpack.c.h.b16 %v2295
    %v3501 = vunpack.c.l.b16 %v2296
    %v3502 = vunpack.c.h.b16 %v2296
    %v3503 = vunpack.c.l.b16 %v2297
    %v3504 = vunpack.c.h.b16 %v2297
    %v3505 = vunpack.c.l.b16 %v2298
    %v3506 = vunpack.c.h.b16 %v2298
    %v3507 = vunpack.c.l.b16 %v2299
    %v3508 = vunpack.c.h.b16 %v2299
    %v3509 = vunpack.c.l.b16 %v2300
    %v3510 = vunpack.c.h.b16 %v2300
    %v3511 = vunpack.c.l.b16 %v2301
    %v3512 = vunpack.c.h.b16 %v2301
    %v3513 = vunpack.c.l.b16 %v2302
    %v3514 = vunpack.c.h.b16 %v2302
    %v3515 = vunpack.c.l.b16 %v2303
    %v3516 = vunpack.c.h.b16 %v2303
    %v3517 = vunpack.c.l.b16 %v2304
    %v3518 = vunpack.c.h.b16 %v2304
    %v3519 = vunpack.c.l.b16 %v2305
    %v3520 = vunpack.c.h.b16 %v2305
    %v3521 = vunpack.c.l.b16 %v2306
    %v3522 = vunpack.c.h.b16 %v2306
    %v3523 = vunpack.c.l.b16 %v2307
    %v3524 = vunpack.c.h.b16 %v2307
    %v3525 = vunpack.c.l.b16 %v2308
    %v3526 = vunpack.c.h.b16 %v2308
    %v3527 = vunpack.c.l.b16 %v2309
    %v3528 = vunpack.c.h.b16 %v2309
    %v3529 = vunpack.c.l.b16 %v2310
    %v3530 = vunpack.c.h.b16 %v2310
    %v3531 = vunpack.c.l.b16 %v2311
    %v3532 = vunpack.c.h.b16 %v2311
    %v3533 = vunpack.c.l.b16 %v2312
    %v3534 = vunpack.c.h.b16 %v2312
    %v3535 = vunpack.c.l.b16 %v2313
    %v3536 = vunpack.c.h.b16 %v2313
    %v3537 = vunpack.c.l.b16 %v2314
    %v3538 = vunpack.c.h.b16 %v2314
    %v3539 = vunpack.c.l.b16 %v2315
    %v3540 = vunpack.c.h.b16 %v2315
    %v3541 = vunpack.c.l.b16 %v2316
    %v3542 = vunpack.c.h.b16 %v2316
    %v3543 = vunpack.c.l.b16 %v2317
    %v3544 = vunpack.c.h.b16 %v2317
    %v3545 = vunpack.c.l.b16 %v2318
    %v3546 = vunpack.c.h.b16 %v2318
    %v3547 = vunpack.c.l.b16 %v2319
    %v3548 = vunpack.c.h.b16 %v2319
    %v3549 = vunpack.c.l.b16 %v2320
    %v3550 = vunpack.c.h.b16 %v2320
    %v3551 = vunpack.c.l.b16 %v2321
    %v3552 = vunpack.c.h.b16 %v2321
    %v3553 = vunpack.c.l.b16 %v2322
    %v3554 = vunpack.c.h.b16 %v2322
    %v3555 = vunpack.c.l.b16 %v2323
    %v3556 = vunpack.c.h.b16 %v2323
    %v3557 = vunpack.c.l.b16 %v2324
    %v3558 = vunpack.c.h.b16 %v2324
    %v3559 = vunpack.c.l.b16 %v2325
    %v3560 = vunpack.c.h.b16 %v2325
    %v3561 = vunpack.c.l.b16 %v2326
    %v3562 = vunpack.c.h.b16 %v2326
    %v3563 = vunpack.c.l.b16 %v2327
    %v3564 = vunpack.c.h.b16 %v2327
    %v3565 = vunpack.c.l.b16 %v2328
    %v3566 = vunpack.c.h.b16 %v2328
    %v3567 = vunpack.c.l.b16 %v2329
    %v3568 = vunpack.c.h.b16 %v2329
    %v3569 = vunpack.c.l.b16 %v2330
    %v3570 = vunpack.c.h.b16 %v2330
    %v3571 = vunpack.c.l.b16 %v2331
    %v3572 = vunpack.c.h.b16 %v2331
    %v3573 = vunpack.c.l.b16 %v2332
    %v3574 = vunpack.c.h.b16 %v2332
    %v3575 = vunpack.c.l.b16 %v2333
    %v3576 = vunpack.c.h.b16 %v2333
    %v3577 = vunpack.c.l.b16 %v2334
    %v3578 = vunpack.c.h.b16 %v2334
    %v3579 = vunpack.c.l.b16 %v2335
    %v3580 = vunpack.c.h.b16 %v2335
    %v3581 = vunpack.c.l.b16 %v2336
    %v3582 = vunpack.c.h.b16 %v2336
    %v3583 = vunpack.c.l.b16 %v2337
    %v3584 = vunpack.c.h.b16 %v2337
    %v3585 = vunpack.c.l.b16 %v2338
    %v3586 = vunpack.c.h.b16 %v2338
    %v3587 = vunpack.c.l.b16 %v2339
    %v3588 = vunpack.c.h.b16 %v2339
    %v3589 = vunpack.c.l.b16 %v2340
    %v3590 = vunpack.c.h.b16 %v2340
    %v3591 = vunpack.c.l.b16 %v2341
    %v3592 = vunpack.c.h.b16 %v2341
    %v3593 = vunpack.c.l.b16 %v2342
    %v3594 = vunpack.c.h.b16 %v2342
    %v3595 = vunpack.c.l.b16 %v2343
    %v3596 = vunpack.c.h.b16 %v2343
    %v3597 = vunpack.c.l.b16 %v2344
    %v3598 = vunpack.c.h.b16 %v2344
    %v3599 = vunpack.c.l.b16 %v2345
    %v3600 = vunpack.c.h.b16 %v2345
    %v3601 = vunpack.c.l.b16 %v2346
    %v3602 = vunpack.c.h.b16 %v2346
    %v3603 = vunpack.c.l.b16 %v2347
    %v3604 = vunpack.c.h.b16 %v2347
    %v3605 = vunpack.c.l.b16 %v2348
    %v3606 = vunpack.c.h.b16 %v2348
    %v3607 = vunpack.c.l.b16 %v2349
    %v3608 = vunpack.c.h.b16 %v2349
    %v3609 = vunpack.c.l.b16 %v2350
    %v3610 = vunpack.c.h.b16 %v2350
    %v3611 = vunpack.c.l.b16 %v2351
    %v3612 = vunpack.c.h.b16 %v2351
    %v3613 = vunpack.c.l.b16 %v2352
    %v3614 = vunpack.c.h.b16 %v2352
    %v3615 = vunpack.c.l.b16 %v2353
    %v3616 = vunpack.c.h.b16 %v2353
    %v3617 = vunpack.c.l.b16 %v2354
    %v3618 = vunpack.c.h.b16 %v2354
    %v3619 = vunpack.c.l.b16 %v2355
    %v3620 = vunpack.c.h.b16 %v2355
    %v3621 = vunpack.c.l.b16 %v2356
    %v3622 = vunpack.c.h.b16 %v2356
    %v3623 = vunpack.c.l.b16 %v2357
    %v3624 = vunpack.c.h.b16 %v2357
    %v3625 = vunpack.c.l.b16 %v2358
    %v3626 = vunpack.c.h.b16 %v2358
    %v3627 = vunpack.c.l.b16 %v2359
    %v3628 = vunpack.c.h.b16 %v2359
    %v3629 = vunpack.c.l.b16 %v2360
    %v3630 = vunpack.c.h.b16 %v2360
    %v3631 = vunpack.c.l.b16 %v2361
    %v3632 = vunpack.c.h.b16 %v2361
    %v3633 = vunpack.c.l.b16 %v2362
    %v3634 = vunpack.c.h.b16 %v2362
    %v3635 = vunpack.c.l.b16 %v2363
    %v3636 = vunpack.c.h.b16 %v2363
    %v3637 = vunpack.c.l.b16 %v2364
    %v3638 = vunpack.c.h.b16 %v2364
    %v3639 = vunpack.c.l.b16 %v2365
    %v3640 = vunpack.c.h.b16 %v2365
    %v3641 = vunpack.c.l.b16 %v2366
    %v3642 = vunpack.c.h.b16 %v2366
    %v3643 = vunpack.c.l.b16 %v2367
    %v3644 = vunpack.c.h.b16 %v2367
    %v3645 = vunpack.c.l.b16 %v2368
    %v3646 = vunpack.c.h.b16 %v2368
    %v3647 = vunpack.c.l.b16 %v2369
    %v3648 = vunpack.c.h.b16 %v2369
    %v3649 = vunpack.c.l.b16 %v2370
    %v3650 = vunpack.c.h.b16 %v2370
    %v3651 = vunpack.c.l.b16 %v2371
    %v3652 = vunpack.c.h.b16 %v2371
    %v3653 = vunpack.c.l.b16 %v2372
    %v3654 = vunpack.c.h.b16 %v2372
    %v3655 = vunpack.c.l.b16 %v2373
    %v3656 = vunpack.c.h.b16 %v2373
    %v3657 = vunpack.c.l.b16 %v2374
    %v3658 = vunpack.c.h.b16 %v2374
    %v3659 = vunpack.c.l.b16 %v2375
    %v3660 = vunpack.c.h.b16 %v2375
    %v3661 = vunpack.c.l.b16 %v2376
    %v3662 = vunpack.c.h.b16 %v2376
    %v3663 = vunpack.c.l.b16 %v2377
    %v3664 = vunpack.c.h.b16 %v2377
    %v3665 = vunpack.c.l.b16 %v2378
    %v3666 = vunpack.c.h.b16 %v2378
    %v3667 = vunpack.c.l.b16 %v2379
    %v3668 = vunpack.c.h.b16 %v2379
    %v3669 = vunpack.c.l.b16 %v2380
    %v3670 = vunpack.c.h.b16 %v2380
    %v3671 = vunpack.c.l.b16 %v2381
    %v3672 = vunpack.c.h.b16 %v2381
    %v3673 = vunpack.c.l.b16 %v2382
    %v3674 = vunpack.c.h.b16 %v2382
    %v3675 = vunpack.c.l.b16 %v2383
    %v3676 = vunpack.c.h.b16 %v2383
    %v3677 = vunpack.c.l.b16 %v2384
    %v3678 = vunpack.c.h.b16 %v2384
    %v3679 = vunpack.c.l.b16 %v2385
    %v3680 = vunpack.c.h.b16 %v2385
    %v3681 = vunpack.c.l.b16 %v2386
    %v3682 = vunpack.c.h.b16 %v2386
    %v3683 = vunpack.c.l.b16 %v2387
    %v3684 = vunpack.c.h.b16 %v2387
    %v3685 = vunpack.c.l.b16 %v2388
    %v3686 = vunpack.c.h.b16 %v2388
    %v3687 = vunpack.c.l.b16 %v2389
    %v3688 = vunpack.c.h.b16 %v2389
    %v3689 = vunpack.c.l.b16 %v2390
    %v3690 = vunpack.c.h.b16 %v2390
    %v3691 = vunpack.c.l.b16 %v2391
    %v3692 = vunpack.c.h.b16 %v2391
    %v3693 = vunpack.c.l.b16 %v2392
    %v3694 = vunpack.c.h.b16 %v2392
    %v3695 = vunpack.c.l.b16 %v2393
    %v3696 = vunpack.c.h.b16 %v2393
    %v3697 = vunpack.c.l.b16 %v2394
    %v3698 = vunpack.c.h.b16 %v2394
    %v3699 = vunpack.c.l.b16 %v2395
    %v3700 = vunpack.c.h.b16 %v2395
    %v3701 = vunpack.c.l.b16 %v2396
    %v3702 = vunpack.c.h.b16 %v2396
    %v3703 = vunpack.c.l.b16 %v2397
    %v3704 = vunpack.c.h.b16 %v2397
    %v3705 = vunpack.c.l.b16 %v2398
    %v3706 = vunpack.c.h.b16 %v2398
    %v3707 = vunpack.c.l.b16 %v2399
    %v3708 = vunpack.c.h.b16 %v2399
    %v3709 = vunpack.c.l.b16 %v2400
    %v3710 = vunpack.c.h.b16 %v2400
    %v3711 = vunpack.c.l.b16 %v2401
    %v3712 = vunpack.c.h.b16 %v2401
    %v3713 = vunpack.c.l.b16 %v2402
    %v3714 = vunpack.c.h.b16 %v2402
    %v3715 = vunpack.c.l.b16 %v2403
    %v3716 = vunpack.c.h.b16 %v2403
    %v3717 = vunpack.c.l.b16 %v2404
    %v3718 = vunpack.c.h.b16 %v2404
    %v3719 = vunpack.c.l.b16 %v2405
    %v3720 = vunpack.c.h.b16 %v2405
    %v3721 = vunpack.c.l.b16 %v2406
    %v3722 = vunpack.c.h.b16 %v2406
    %v3723 = vunpack.c.l.b16 %v2407
    %v3724 = vunpack.c.h.b16 %v2407
    %v3725 = vunpack.c.l.b16 %v2408
    %v3726 = vunpack.c.h.b16 %v2408
    %v3727 = vunpack.c.l.b16 %v2409
    %v3728 = vunpack.c.h.b16 %v2409
    %v3729 = vunpack.c.l.b16 %v2410
    %v3730 = vunpack.c.h.b16 %v2410
    %v3731 = vunpack.c.l.b16 %v2411
    %v3732 = vunpack.c.h.b16 %v2411
    %v3733 = vunpack.c.l.b16 %v2412
    %v3734 = vunpack.c.h.b16 %v2412
    %v3735 = vunpack.c.l.b16 %v2413
    %v3736 = vunpack.c.h.b16 %v2413
    %v3737 = vunpack.c.l.b16 %v2414
    %v3738 = vunpack.c.h.b16 %v2414
    %v3739 = vunpack.c.l.b16 %v2415
    %v3740 = vunpack.c.h.b16 %v2415
    %v3741 = vunpack.c.l.b16 %v2416
    %v3742 = vunpack.c.h.b16 %v2416
    %v3743 = vunpack.c.l.b16 %v2417
    %v3744 = vunpack.c.h.b16 %v2417
    %v3745 = vunpack.c.l.b16 %v2418
    %v3746 = vunpack.c.h.b16 %v2418
    %v3747 = vunpack.c.l.b16 %v2419
    %v3748 = vunpack.c.h.b16 %v2419
    %v3749 = vunpack.c.l.b16 %v2420
    %v3750 = vunpack.c.h.b16 %v2420
    %v3751 = vunpack.c.l.b16 %v2421
    %v3752 = vunpack.c.h.b16 %v2421
    %v3753 = vunpack.c.l.b16 %v2422
    %v3754 = vunpack.c.h.b16 %v2422
    %v3755 = vunpack.c.l.b16 %v2423
    %v3756 = vunpack.c.h.b16 %v2423
    %v3757 = vunpack.c.l.b16 %v2424
    %v3758 = vunpack.c.h.b16 %v2424
    %v3759 = vunpack.c.l.b16 %v2425
    %v3760 = vunpack.c.h.b16 %v2425
    %v3761 = vunpack.c.l.b16 %v2426
    %v3762 = vunpack.c.h.b16 %v2426
    %v3763 = vunpack.c.l.b16 %v2427
    %v3764 = vunpack.c.h.b16 %v2427
    %v3765 = vunpack.c.l.b16 %v2428
    %v3766 = vunpack.c.h.b16 %v2428
    %v3767 = vunpack.c.l.b16 %v2429
    %v3768 = vunpack.c.h.b16 %v2429
    %v3769 = vunpack.c.l.b16 %v2430
    %v3770 = vunpack.c.h.b16 %v2430
    %v3771 = vunpack.c.l.b16 %v2431
    %v3772 = vunpack.c.h.b16 %v2431
    %v3773 = vunpack.c.l.b16 %v2432
    %v3774 = vunpack.c.h.b16 %v2432
    %v3775 = vunpack.c.l.b16 %v2433
    %v3776 = vunpack.c.h.b16 %v2433
    %v3777 = vunpack.c.l.b16 %v2434
    %v3778 = vunpack.c.h.b16 %v2434
    %v3779 = vunpack.c.l.b16 %v2435
    %v3780 = vunpack.c.h.b16 %v2435
    %v3781 = vunpack.c.l.b16 %v2436
    %v3782 = vunpack.c.h.b16 %v2436
    %v3783 = vunpack.c.l.b16 %v2437
    %v3784 = vunpack.c.h.b16 %v2437
    %v3785 = vunpack.c.l.b16 %v2438
    %v3786 = vunpack.c.h.b16 %v2438
    %v3787 = vunpack.c.l.b16 %v2439
    %v3788 = vunpack.c.h.b16 %v2439
    %v3789 = vunpack.c.l.b16 %v2440
    %v3790 = vunpack.c.h.b16 %v2440
    %v3791 = vunpack.c.l.b16 %v2441
    %v3792 = vunpack.c.h.b16 %v2441
    %v3793 = vunpack.c.l.b16 %v2442
    %v3794 = vunpack.c.h.b16 %v2442
    %v3795 = vunpack.c.l.b16 %v2443
    %v3796 = vunpack.c.h.b16 %v2443
    %v3797 = vunpack.c.l.b16 %v2444
    %v3798 = vunpack.c.h.b16 %v2444
    %v3799 = vunpack.c.l.b16 %v2445
    %v3800 = vunpack.c.h.b16 %v2445
    %v3801 = vunpack.c.l.b16 %v2446
    %v3802 = vunpack.c.h.b16 %v2446
    %v3803 = vunpack.c.l.b16 %v2447
    %v3804 = vunpack.c.h.b16 %v2447
    %v3805 = vunpack.c.l.b16 %v2448
    %v3806 = vunpack.c.h.b16 %v2448
    %v3807 = vunpack.c.l.b16 %v2449
    %v3808 = vunpack.c.h.b16 %v2449
    %v3809 = vunpack.c.l.b16 %v2450
    %v3810 = vunpack.c.h.b16 %v2450
    %v3811 = vunpack.c.l.b16 %v2451
    %v3812 = vunpack.c.h.b16 %v2451
    %v3813 = vunpack.c.l.b16 %v2452
    %v3814 = vunpack.c.h.b16 %v2452
    %v3815 = vunpack.c.l.b16 %v2453
    %v3816 = vunpack.c.h.b16 %v2453
    %v3817 = vunpack.c.l.b16 %v2454
    %v3818 = vunpack.c.h.b16 %v2454
    %v3819 = vunpack.c.l.b16 %v2455
    %v3820 = vunpack.c.h.b16 %v2455
    %v3821 = vunpack.c.l.b16 %v2456
    %v3822 = vunpack.c.h.b16 %v2456
    %v3823 = vunpack.c.l.b16 %v2457
    %v3824 = vunpack.c.h.b16 %v2457
    %v3825 = vunpack.c.l.b16 %v2458
    %v3826 = vunpack.c.h.b16 %v2458
    %v3827 = vunpack.c.l.b16 %v2459
    %v3828 = vunpack.c.h.b16 %v2459
    %v3829 = vunpack.c.l.b16 %v2460
    %v3830 = vunpack.c.h.b16 %v2460
    %v3831 = vunpack.c.l.b16 %v2461
    %v3832 = vunpack.c.h.b16 %v2461
    %v3833 = vunpack.c.l.b16 %v2462
    %v3834 = vunpack.c.h.b16 %v2462
    %v3835 = vunpack.c.l.b16 %v2463
    %v3836 = vunpack.c.h.b16 %v2463
    %v3837 = vunpack.c.l.b16 %v2464
    %v3838 = vunpack.c.h.b16 %v2464
    %v3839 = vunpack.c.l.b16 %v2465
    %v3840 = vunpack.c.h.b16 %v2465
    %v3841 = vunpack.c.l.b16 %v2466
    %v3842 = vunpack.c.h.b16 %v2466
    %v3843 = vunpack.c.l.b16 %v2467
    %v3844 = vunpack.c.h.b16 %v2467
    %v3845 = vunpack.c.l.b16 %v2468
    %v3846 = vunpack.c.h.b16 %v2468
    %v3847 = vunpack.c.l.b16 %v2469
    %v3848 = vunpack.c.h.b16 %v2469
    %v3849 = vunpack.c.l.b16 %v2470
    %v3850 = vunpack.c.h.b16 %v2470
    %v3851 = vunpack.c.l.b16 %v2471
    %v3852 = vunpack.c.h.b16 %v2471
    %v3853 = vunpack.c.l.b16 %v2472
    %v3854 = vunpack.c.h.b16 %v2472
    %v3855 = vunpack.c.l.b16 %v2473
    %v3856 = vunpack.c.h.b16 %v2473
    %v3857 = vunpack.c.l.b16 %v2474
    %v3858 = vunpack.c.h.b16 %v2474
    %v3859 = vunpack.c.l.b16 %v2475
    %v3860 = vunpack.c.h.b16 %v2475
    %v3861 = vunpack.c.l.b16 %v2476
    %v3862 = vunpack.c.h.b16 %v2476
    %v3863 = vunpack.c.l.b16 %v2477
    %v3864 = vunpack.c.h.b16 %v2477
    %v3865 = vunpack.c.l.b16 %v2478
    %v3866 = vunpack.c.h.b16 %v2478
    %v3867 = vunpack.c.l.b16 %v2479
    %v3868 = vunpack.c.h.b16 %v2479
    %v3869 = vunpack.c.l.b16 %v2480
    %v3870 = vunpack.c.h.b16 %v2480
    %v3871 = vunpack.c.l.b16 %v2481
    %v3872 = vunpack.c.h.b16 %v2481
    %v3873 = vunpack.c.l.b16 %v2482
    %v3874 = vunpack.c.h.b16 %v2482
    %v3875 = vunpack.c.l.b16 %v2483
    %v3876 = vunpack.c.h.b16 %v2483
    %v3877 = vunpack.c.l.b16 %v2484
    %v3878 = vunpack.c.h.b16 %v2484
    %v3879 = vunpack.c.l.b16 %v2485
    %v3880 = vunpack.c.h.b16 %v2485
    %v3881 = vunpack.c.l.b16 %v2486
    %v3882 = vunpack.c.h.b16 %v2486
    %v3883 = vunpack.c.l.b16 %v2487
    %v3884 = vunpack.c.h.b16 %v2487
    %v3885 = vunpack.c.l.b16 %v2488
    %v3886 = vunpack.c.h.b16 %v2488
    %v3887 = vunpack.c.l.b16 %v2489
    %v3888 = vunpack.c.h.b16 %v2489
    %v3889 = vunpack.c.l.b16 %v2490
    %v3890 = vunpack.c.h.b16 %v2490
    %v3891 = vunpack.c.l.b16 %v2491
    %v3892 = vunpack.c.h.b16 %v2491
    %v3893 = vunpack.c.l.b16 %v2492
    %v3894 = vunpack.c.h.b16 %v2492
    %v3895 = vunpack.c.l.b16 %v2493
    %v3896 = vunpack.c.h.b16 %v2493
    %v3897 = vunpack.c.l.b16 %v2494
    %v3898 = vunpack.c.h.b16 %v2494
    %v3899 = vunpack.c.l.b16 %v2495
    %v3900 = vunpack.c.h.b16 %v2495
    %v3901 = vunpack.c.l.b16 %v2496
    %v3902 = vunpack.c.h.b16 %v2496
    %v3903 = vunpack.c.l.b16 %v2497
    %v3904 = vunpack.c.h.b16 %v2497
    %v3905 = vunpack.c.l.b16 %v2498
    %v3906 = vunpack.c.h.b16 %v2498
    %v3907 = vunpack.c.l.b16 %v2499
    %v3908 = vunpack.c.h.b16 %v2499
    %v3909 = vunpack.c.l.b16 %v2500
    %v3910 = vunpack.c.h.b16 %v2500
    %v3911 = vunpack.c.l.b16 %v2501
    %v3912 = vunpack.c.h.b16 %v2501
    %v3913 = vunpack.c.l.b16 %v2502
    %v3914 = vunpack.c.h.b16 %v2502
    %v3915 = vunpack.c.l.b16 %v2503
    %v3916 = vunpack.c.h.b16 %v2503
    %v3917 = vunpack.c.l.b16 %v2504
    %v3918 = vunpack.c.h.b16 %v2504
    %v3919 = vunpack.c.l.b16 %v2505
    %v3920 = vunpack.c.h.b16 %v2505
    %v3921 = vunpack.c.l.b16 %v2506
    %v3922 = vunpack.c.h.b16 %v2506
    %v3923 = vunpack.c.l.b16 %v2507
    %v3924 = vunpack.c.h.b16 %v2507
    %v3925 = vunpack.c.l.b16 %v2508
    %v3926 = vunpack.c.h.b16 %v2508
    %v3927 = vunpack.c.l.b16 %v2509
    %v3928 = vunpack.c.h.b16 %v2509
    %v3929 = vunpack.c.l.b16 %v2510
    %v3930 = vunpack.c.h.b16 %v2510
    %v3931 = vunpack.c.l.b16 %v2511
    %v3932 = vunpack.c.h.b16 %v2511
    %v3933 = vunpack.c.l.b16 %v2512
    %v3934 = vunpack.c.h.b16 %v2512
    %v3935 = vpack.c.b16 %v2993, %v2991
    %v3936 = vpack.c.b16 %v2994, %v2992
    %v3937 = vpack.c.b16 %v2997, %v2995
    %v3938 = vpack.c.b16 %v2998, %v2996
    %v3939 = vpack.c.b16 %v3001, %v2999
    %v3940 = vpack.c.b16 %v3002, %v3000
    %v3941 = vpack.c.b16 %v3005, %v3003
    %v3942 = vpack.c.b16 %v3006, %v3004
    %v3943 = vpack.c.b16 %v3009, %v3007
    %v3944 = vpack.c.b16 %v3010, %v3008
    %v3945 = vpack.c.b16 %v3013, %v3011
    %v3946 = vpack.c.b16 %v3014, %v3012
    %v3947 = vpack.c.b16 %v3017, %v3015
    %v3948 = vpack.c.b16 %v3018, %v3016
    %v3949 = vpack.c.b16 %v3021, %v3019
    %v3950 = vpack.c.b16 %v3022, %v3020
    %v3951 = vpack.c.b16 %v3025, %v3023
    %v3952 = vpack.c.b16 %v3026, %v3024
    %v3953 = vpack.c.b16 %v3029, %v3027
    %v3954 = vpack.c.b16 %v3030, %v3028
    %v3955 = vpack.c.b16 %v3033, %v3031
    %v3956 = vpack.c.b16 %v3034, %v3032
    %v3957 = vpack.c.b16 %v3037, %v3035
    %v3958 = vpack.c.b16 %v3038, %v3036
    %v3959 = vpack.c.b16 %v3041, %v3039
    %v3960 = vpack.c.b16 %v3042, %v3040
    %v3961 = vpack.c.b16 %v3045, %v3043
    %v3962 = vpack.c.b16 %v3046, %v3044
    %v3963 = vpack.c.b16 %v3049, %v3047
    %v3964 = vpack.c.b16 %v3050, %v3048
    %v3965 = vpack.c.b16 %v3053, %v3051
    %v3966 = vpack.c.b16 %v3054, %v3052
    %v3967 = vpack.c.b16 %v3057, %v3055
    %v3968 = vpack.c.b16 %v3058, %v3056
    %v3969 = vpack.c.b16 %v3061, %v3059
    %v3970 = vpack.c.b16 %v3062, %v3060
    %v3971 = vpack.c.b16 %v3065, %v3063
    %v3972 = vpack.c.b16 %v3066, %v3064
    %v3973 = vpack.c.b16 %v3069, %v3067
    %v3974 = vpack.c.b16 %v3070, %v3068
    %v3975 = vpack.c.b16 %v3073, %v3071
    %v3976 = vpack.c.b16 %v3074, %v3072
    %v3977 = vpack.c.b16 %v3077, %v3075
    %v3978 = vpack.c.b16 %v3078, %v3076
    %v3979 = vpack.c.b16 %v3081, %v3079
    %v3980 = vpack.c.b16 %v3082, %v3080
    %v3981 = vpack.c.b16 %v3085, %v3083
    %v3982 = vpack.c.b16 %v3086, %v3084
    %v3983 = vpack.c.b16 %v3089, %v3087
    %v3984 = vpack.c.b16 %v3090, %v3088
    %v3985 = vpack.c.b16 %v3093, %v3091
    %v3986 = vpack.c.b16 %v3094, %v3092
    %v3987 = vpack.c.b16 %v3097, %v3095
    %v3988 = vpack.c.b16 %v3098, %v3096
    %v3989 = vpack.c.b16 %v3101, %v3099
    %v3990 = vpack.c.b16 %v3102, %v3100
    %v3991 = vpack.c.b16 %v3105, %v3103
    %v3992 = vpack.c.b16 %v3106, %v3104
    %v3993 = vpack.c.b16 %v3109, %v3107
    %v3994 = vpack.c.b16 %v3110, %v3108
    %v3995 = vpack.c.b16 %v3113, %v3111
    %v3996 = vpack.c.b16 %v3114, %v3112
    %v3997 = vpack.c.b16 %v3117, %v3115
    %v3998 = vpack.c.b16 %v3118, %v3116
    %v3999 = vpack.c.b16 %v3121, %v3119
    %v4000 = vpack.c.b16 %v3122, %v3120
    %v4001 = vpack.c.b16 %v3125, %v3123
    %v4002 = vpack.c.b16 %v3126, %v3124
    %v4003 = vpack.c.b16 %v3129, %v3127
    %v4004 = vpack.c.b16 %v3130, %v3128
    %v4005 = vpack.c.b16 %v3133, %v3131
    %v4006 = vpack.c.b16 %v3134, %v3132
    %v4007 = vpack.c.b16 %v3137, %v3135
    %v4008 = vpack.c.b16 %v3138, %v3136
    %v4009 = vpack.c.b16 %v3141, %v3139
    %v4010 = vpack.c.b16 %v3142, %v3140
    %v4011 = vpack.c.b16 %v3145, %v3143
    %v4012 = vpack.c.b16 %v3146, %v3144
    %v4013 = vpack.c.b16 %v3149, %v3147
    %v4014 = vpack.c.b16 %v3150, %v3148
    %v4015 = vpack.c.b16 %v3153, %v3151
    %v4016 = vpack.c.b16 %v3154, %v3152
    %v4017 = vpack.c.b16 %v3157, %v3155
    %v4018 = vpack.c.b16 %v3158, %v3156
    %v4019 = vpack.c.b16 %v3161, %v3159
    %v4020 = vpack.c.b16 %v3162, %v3160
    %v4021 = vpack.c.b16 %v3165, %v3163
    %v4022 = vpack.c.b16 %v3166, %v3164
    %v4023 = vpack.c.b16 %v3169, %v3167
    %v4024 = vpack.c.b16 %v3170, %v3168
    %v4025 = vpack.c.b16 %v3173, %v3171
    %v4026 = vpack.c.b16 %v3174, %v3172
    %v4027 = vpack.c.b16 %v3177, %v3175
    %v4028 = vpack.c.b16 %v3178, %v3176
    %v4029 = vpack.c.b16 %v3181, %v3179
    %v4030 = vpack.c.b16 %v3182, %v3180
    %v4031 = vpack.c.b16 %v3185, %v3183
    %v4032 = vpack.c.b16 %v3186, %v3184
    %v4033 = vpack.c.b16 %v3189, %v3187
    %v4034 = vpack.c.b16 %v3190, %v3188
    %v4035 = vpack.c.b16 %v3193, %v3191
    %v4036 = vpack.c.b16 %v3194, %v3192
    %v4037 = vpack.c.b16 %v3197, %v3195
    %v4038 = vpack.c.b16 %v3198, %v3196
    %v4039 = vpack.c.b16 %v3201, %v3199
    %v4040 = vpack.c.b16 %v3202, %v3200
    %v4041 = vpack.c.b16 %v3205, %v3203
    %v4042 = vpack.c.b16 %v3206, %v3204
    %v4043 = vpack.c.b16 %v3209, %v3207
    %v4044 = vpack.c.b16 %v3210, %v3208
    %v4045 = vpack.c.b16 %v3213, %v3211
    %v4046 = vpack.c.b16 %v3214, %v3212
    %v4047 = vpack.c.b16 %v3217, %v3215
    %v4048 = vpack.c.b16 %v3218, %v3216
    %v4049 = vpack.c.b16 %v3221, %v3219
    %v4050 = vpack.c.b16 %v3222, %v3220
    %v4051 = vpack.c.b16 %v3225, %v3223
    %v4052 = vpack.c.b16 %v3226, %v3224
    %v4053 = vpack.c.b16 %v3229, %v3227
    %v4054 = vpack.c.b16 %v3230, %v3228
    %v4055 = vpack.c.b16 %v3233, %v3231
    %v4056 = vpack.c.b16 %v3234, %v3232
    %v4057 = vpack.c.b16 %v3237, %v3235
    %v4058 = vpack.c.b16 %v3238, %v3236
    %v4059 = vpack.c.b16 %v3241, %v3239
    %v4060 = vpack.c.b16 %v3242, %v3240
    %v4061 = vpack.c.b16 %v3245, %v3243
    %v4062 = vpack.c.b16 %v3246, %v3244
    %v4063 = vpack.c.b16 %v3249, %v3247
    %v4064 = vpack.c.b16 %v3250, %v3248
    %v4065 = vpack.c.b16 %v3253, %v3251
    %v4066 = vpack.c.b16 %v3254, %v3252
    %v4067 = vpack.c.b16 %v3257, %v3255
    %v4068 = vpack.c.b16 %v3258, %v3256
    %v4069 = vpack.c.b16 %v3261, %v3259
    %v4070 = vpack.c.b16 %v3262, %v3260
    %v4071 = vpack.c.b16 %v3265, %v3263
    %v4072 = vpack.c.b16 %v3266, %v3264
    %v4073 = vpack.c.b16 %v3269, %v3267
    %v4074 = vpack.c.b16 %v3270, %v3268
    %v4075 = vpack.c.b16 %v3273, %v3271
    %v4076 = vpack.c.b16 %v3274, %v3272
    %v4077 = vpack.c.b16 %v3277, %v3275
    %v4078 = vpack.c.b16 %v3278, %v3276
    %v4079 = vpack.c.b16 %v3281, %v3279
    %v4080 = vpack.c.b16 %v3282, %v3280
    %v4081 = vpack.c.b16 %v3285, %v3283
    %v4082 = vpack.c.b16 %v3286, %v3284
    %v4083 = vpack.c.b16 %v3289, %v3287
    %v4084 = vpack.c.b16 %v3290, %v3288
    %v4085 = vpack.c.b16 %v3293, %v3291
    %v4086 = vpack.c.b16 %v3294, %v3292
    %v4087 = vpack.c.b16 %v3297, %v3295
    %v4088 = vpack.c.b16 %v3298, %v3296
    %v4089 = vpack.c.b16 %v3301, %v3299
    %v4090 = vpack.c.b16 %v3302, %v3300
    %v4091 = vpack.c.b16 %v3305, %v3303
    %v4092 = vpack.c.b16 %v3306, %v3304
    %v4093 = vpack.c.b16 %v3309, %v3307
    %v4094 = vpack.c.b16 %v3310, %v3308
    %v4095 = vpack.c.b16 %v3313, %v3311
    %v4096 = vpack.c.b16 %v3314, %v3312
    %v4097 = vpack.c.b16 %v3317, %v3315
    %v4098 = vpack.c.b16 %v3318, %v3316
    %v4099 = vpack.c.b16 %v3321, %v3319
    %v4100 = vpack.c.b16 %v3322, %v3320
    %v4101 = vpack.c.b16 %v3325, %v3323
    %v4102 = vpack.c.b16 %v3326, %v3324
    %v4103 = vpack.c.b16 %v3329, %v3327
    %v4104 = vpack.c.b16 %v3330, %v3328
    %v4105 = vpack.c.b16 %v3333, %v3331
    %v4106 = vpack.c.b16 %v3334, %v3332
    %v4107 = vpack.c.b16 %v3337, %v3335
    %v4108 = vpack.c.b16 %v3338, %v3336
    %v4109 = vpack.c.b16 %v3341, %v3339
    %v4110 = vpack.c.b16 %v3342, %v3340
    %v4111 = vpack.c.b16 %v3345, %v3343
    %v4112 = vpack.c.b16 %v3346, %v3344
    %v4113 = vpack.c.b16 %v3349, %v3347
    %v4114 = vpack.c.b16 %v3350, %v3348
    %v4115 = vpack.c.b16 %v3353, %v3351
    %v4116 = vpack.c.b16 %v3354, %v3352
    %v4117 = vpack.c.b16 %v3357, %v3355
    %v4118 = vpack.c.b16 %v3358, %v3356
    %v4119 = vpack.c.b16 %v3361, %v3359
    %v4120 = vpack.c.b16 %v3362, %v3360
    %v4121 = vpack.c.b16 %v3365, %v3363
    %v4122 = vpack.c.b16 %v3366, %v3364
    %v4123 = vpack.c.b16 %v3369, %v3367
    %v4124 = vpack.c.b16 %v3370, %v3368
    %v4125 = vpack.c.b16 %v3373, %v3371
    %v4126 = vpack.c.b16 %v3374, %v3372
    %v4127 = vpack.c.b16 %v3377, %v3375
    %v4128 = vpack.c.b16 %v3378, %v3376
    %v4129 = vpack.c.b16 %v3381, %v3379
    %v4130 = vpack.c.b16 %v3382, %v3380
    %v4131 = vpack.c.b16 %v3385, %v3383
    %v4132 = vpack.c.b16 %v3386, %v3384
    %v4133 = vpack.c.b16 %v3389, %v3387
    %v4134 = vpack.c.b16 %v3390, %v3388
    %v4135 = vpack.c.b16 %v3393, %v3391
    %v4136 = vpack.c.b16 %v3394, %v3392
    %v4137 = vpack.c.b16 %v3397, %v3395
    %v4138 = vpack.c.b16 %v3398, %v3396
    %v4139 = vpack.c.b16 %v3401, %v3399
    %v4140 = vpack.c.b16 %v3402, %v3400
    %v4141 = vpack.c.b16 %v3405, %v3403
    %v4142 = vpack.c.b16 %v3406, %v3404
    %v4143 = vpack.c.b16 %v3409, %v3407
    %v4144 = vpack.c.b16 %v3410, %v3408
    %v4145 = vpack.c.b16 %v3413, %v3411
    %v4146 = vpack.c.b16 %v3414, %v3412
    %v4147 = vpack.c.b16 %v3417, %v3415
    %v4148 = vpack.c.b16 %v3418, %v3416
    %v4149 = vpack.c.b16 %v3421, %v3419
    %v4150 = vpack.c.b16 %v3422, %v3420
    %v4151 = vpack.c.b16 %v3425, %v3423
    %v4152 = vpack.c.b16 %v3426, %v3424
    %v4153 = vpack.c.b16 %v3429, %v3427
    %v4154 = vpack.c.b16 %v3430, %v3428
    %v4155 = vpack.c.b16 %v3433, %v3431
    %v4156 = vpack.c.b16 %v3434, %v3432
    %v4157 = vpack.c.b16 %v3437, %v3435
    %v4158 = vpack.c.b16 %v3438, %v3436
    %v4159 = vpack.c.b16 %v3441, %v3439
    %v4160 = vpack.c.b16 %v3442, %v3440
    %v4161 = vpack.c.b16 %v3445, %v3443
    %v4162 = vpack.c.b16 %v3446, %v3444
    %v4163 = vpack.c.b16 %v3449, %v3447
    %v4164 = vpack.c.b16 %v3450, %v3448
    %v4165 = vpack.c.b16 %v3453, %v3451
    %v4166 = vpack.c.b16 %v3454, %v3452
    %v4167 = vpack.c.b16 %v3457, %v3455
    %v4168 = vpack.c.b16 %v3458, %v3456
    %v4169 = vpack.c.b16 %v3461, %v3459
    %v4170 = vpack.c.b16 %v3462, %v3460
    %v4171 = vpack.c.b16 %v3465, %v3463
    %v4172 = vpack.c.b16 %v3466, %v3464
    %v4173 = vpack.c.b16 %v3469, %v3467
    %v4174 = vpack.c.b16 %v3470, %v3468
    %v4175 = vpack.c.b16 %v3473, %v3471
    %v4176 = vpack.c.b16 %v3474, %v3472
    %v4177 = vpack.c.b16 %v3477, %v3475
    %v4178 = vpack.c.b16 %v3478, %v3476
    %v4179 = vpack.c.b16 %v3481, %v3479
    %v4180 = vpack.c.b16 %v3482, %v3480
    %v4181 = vpack.c.b16 %v3485, %v3483
    %v4182 = vpack.c.b16 %v3486, %v3484
    %v4183 = vpack.c.b16 %v3489, %v3487
    %v4184 = vpack.c.b16 %v3490, %v3488
    %v4185 = vpack.c.b16 %v3493, %v3491
    %v4186 = vpack.c.b16 %v3494, %v3492
    %v4187 = vpack.c.b16 %v3497, %v3495
    %v4188 = vpack.c.b16 %v3498, %v3496
    %v4189 = vpack.c.b16 %v3501, %v3499
    %v4190 = vpack.c.b16 %v3502, %v3500
    %v4191 = vpack.c.b16 %v3505, %v3503
    %v4192 = vpack.c.b16 %v3506, %v3504
    %v4193 = vpack.c.b16 %v3509, %v3507
    %v4194 = vpack.c.b16 %v3510, %v3508
    %v4195 = vpack.c.b16 %v3513, %v3511
    %v4196 = vpack.c.b16 %v3514, %v3512
    %v4197 = vpack.c.b16 %v3517, %v3515
    %v4198 = vpack.c.b16 %v3518, %v3516
    %v4199 = vpack.c.b16 %v3521, %v3519
    %v4200 = vpack.c.b16 %v3522, %v3520
    %v4201 = vpack.c.b16 %v3525, %v3523
    %v4202 = vpack.c.b16 %v3526, %v3524
    %v4203 = vpack.c.b16 %v3529, %v3527
    %v4204 = vpack.c.b16 %v3530, %v3528
    %v4205 = vpack.c.b16 %v3533, %v3531
    %v4206 = vpack.c.b16 %v3534, %v3532
    %v4207 = vpack.c.b16 %v3537, %v3535
    %v4208 = vpack.c.b16 %v3538, %v3536
    %v4209 = vpack.c.b16 %v3541, %v3539
    %v4210 = vpack.c.b16 %v3542, %v3540
    %v4211 = vpack.c.b16 %v3545, %v3543
    %v4212 = vpack.c.b16 %v3546, %v3544
    %v4213 = vpack.c.b16 %v3549, %v3547
    %v4214 = vpack.c.b16 %v3550, %v3548
    %v4215 = vpack.c.b16 %v3553, %v3551
    %v4216 = vpack.c.b16 %v3554, %v3552
    %v4217 = vpack.c.b16 %v3557, %v3555
    %v4218 = vpack.c.b16 %v3558, %v3556
    %v4219 = vpack.c.b16 %v3561, %v3559
    %v4220 = vpack.c.b16 %v3562, %v3560
    %v4221 = vpack.c.b16 %v3565, %v3563
    %v4222 = vpack.c.b16 %v3566, %v3564
    %v4223 = vpack.c.b16 %v3569, %v3567
    %v4224 = vpack.c.b16 %v3570, %v3568
    %v4225 = vpack.c.b16 %v3573, %v3571
    %v4226 = vpack.c.b16 %v3574, %v3572
    %v4227 = vpack.c.b16 %v3577, %v3575
    %v4228 = vpack.c.b16 %v3578, %v3576
    %v4229 = vpack.c.b16 %v3581, %v3579
    %v4230 = vpack.c.b16 %v3582, %v3580
    %v4231 = vpack.c.b16 %v3585, %v3583
    %v4232 = vpack.c.b16 %v3586, %v3584
    %v4233 = vpack.c.b16 %v3589, %v3587
    %v4234 = vpack.c.b16 %v3590, %v3588
    %v4235 = vpack.c.b16 %v3593, %v3591
    %v4236 = vpack.c.b16 %v3594, %v3592
    %v4237 = vpack.c.b16 %v3597, %v3595
    %v4238 = vpack.c.b16 %v3598, %v3596
    %v4239 = vpack.c.b16 %v3601, %v3599
    %v4240 = vpack.c.b16 %v3602, %v3600
    %v4241 = vpack.c.b16 %v3605, %v3603
    %v4242 = vpack.c.b16 %v3606, %v3604
    %v4243 = vpack.c.b16 %v3609, %v3607
    %v4244 = vpack.c.b16 %v3610, %v3608
    %v4245 = vpack.c.b16 %v3613, %v3611
    %v4246 = vpack.c.b16 %v3614, %v3612
    %v4247 = vpack.c.b16 %v3617, %v3615
    %v4248 = vpack.c.b16 %v3618, %v3616
    %v4249 = vpack.c.b16 %v3621, %v3619
    %v4250 = vpack.c.b16 %v3622, %v3620
    %v4251 = vpack.c.b16 %v3625, %v3623
    %v4252 = vpack.c.b16 %v3626, %v3624
    %v4253 = vpack.c.b16 %v3629, %v3627
    %v4254 = vpack.c.b16 %v3630, %v3628
    %v4255 = vpack.c.b16 %v3633, %v3631
    %v4256 = vpack.c.b16 %v3634, %v3632
    %v4257 = vpack.c.b16 %v3637, %v3635
    %v4258 = vpack.c.b16 %v3638, %v3636
    %v4259 = vpack.c.b16 %v3641, %v3639
    %v4260 = vpack.c.b16 %v3642, %v3640
    %v4261 = vpack.c.b16 %v3645, %v3643
    %v4262 = vpack.c.b16 %v3646, %v3644
    %v4263 = vpack.c.b16 %v3649, %v3647
    %v4264 = vpack.c.b16 %v3650, %v3648
    %v4265 = vpack.c.b16 %v3653, %v3651
    %v4266 = vpack.c.b16 %v3654, %v3652
    %v4267 = vpack.c.b16 %v3657, %v3655
    %v4268 = vpack.c.b16 %v3658, %v3656
    %v4269 = vpack.c.b16 %v3661, %v3659
    %v4270 = vpack.c.b16 %v3662, %v3660
    %v4271 = vpack.c.b16 %v3665, %v3663
    %v4272 = vpack.c.b16 %v3666, %v3664
    %v4273 = vpack.c.b16 %v3669, %v3667
    %v4274 = vpack.c.b16 %v3670, %v3668
    %v4275 = vpack.c.b16 %v3673, %v3671
    %v4276 = vpack.c.b16 %v3674, %v3672
    %v4277 = vpack.c.b16 %v3677, %v3675
    %v4278 = vpack.c.b16 %v3678, %v3676
    %v4279 = vpack.c.b16 %v3681, %v3679
    %v4280 = vpack.c.b16 %v3682, %v3680
    %v4281 = vpack.c.b16 %v3685, %v3683
    %v4282 = vpack.c.b16 %v3686, %v3684
    %v4283 = vpack.c.b16 %v3689, %v3687
    %v4284 = vpack.c.b16 %v3690, %v3688
    %v4285 = vpack.c.b16 %v3693, %v3691
    %v4286 = vpack.c.b16 %v3694, %v3692
    %v4287 = vpack.c.b16 %v3697, %v3695
    %v4288 = vpack.c.b16 %v3698, %v3696
    %v4289 = vpack.c.b16 %v3701, %v3699
    %v4290 = vpack.c.b16 %v3702, %v3700
    %v4291 = vpack.c.b16 %v3705, %v3703
    %v4292 = vpack.c.b16 %v3706, %v3704
    %v4293 = vpack.c.b16 %v3709, %v3707
    %v4294 = vpack.c.b16 %v3710, %v3708
    %v4295 = vpack.c.b16 %v3713, %v3711
    %v4296 = vpack.c.b16 %v3714, %v3712
    %v4297 = vpack.c.b16 %v3717, %v3715
    %v4298 = vpack.c.b16 %v3718, %v3716
    %v4299 = vpack.c.b16 %v3721, %v3719
    %v4300 = vpack.c.b16 %v3722, %v3720
    %v4301 = vpack.c.b16 %v3725, %v3723
    %v4302 = vpack.c.b16 %v3726, %v3724
    %v4303 = vpack.c.b16 %v3729, %v3727
    %v4304 = vpack.c.b16 %v3730, %v3728
    %v4305 = vpack.c.b16 %v3733, %v3731
    %v4306 = vpack.c.b16 %v3734, %v3732
    %v4307 = vpack.c.b16 %v3737, %v3735
    %v4308 = vpack.c.b16 %v3738, %v3736
    %v4309 = vpack.c.b16 %v3741, %v3739
    %v4310 = vpack.c.b16 %v3742, %v3740
    %v4311 = vpack.c.b16 %v3745, %v3743
    %v4312 = vpack.c.b16 %v3746, %v3744
    %v4313 = vpack.c.b16 %v3749, %v3747
    %v4314 = vpack.c.b16 %v3750, %v3748
    %v4315 = vpack.c.b16 %v3753, %v3751
    %v4316 = vpack.c.b16 %v3754, %v3752
    %v4317 = vpack.c.b16 %v3757, %v3755
    %v4318 = vpack.c.b16 %v3758, %v3756
    %v4319 = vpack.c.b16 %v3761, %v3759
    %v4320 = vpack.c.b16 %v3762, %v3760
    %v4321 = vpack.c.b16 %v3765, %v3763
    %v4322 = vpack.c.b16 %v3766, %v3764
    %v4323 = vpack.c.b16 %v3769, %v3767
    %v4324 = vpack.c.b16 %v3770, %v3768
    %v4325 = vpack.c.b16 %v3773, %v3771
    %v4326 = vpack.c.b16 %v3774, %v3772
    %v4327 = vpack.c.b16 %v3777, %v3775
    %v4328 = vpack.c.b16 %v3778, %v3776
    %v4329 = vpack.c.b16 %v3781, %v3779
    %v4330 = vpack.c.b16 %v3782, %v3780
    %v4331 = vpack.c.b16 %v3785, %v3783
    %v4332 = vpack.c.b16 %v3786, %v3784
    %v4333 = vpack.c.b16 %v3789, %v3787
    %v4334 = vpack.c.b16 %v3790, %v3788
    %v4335 = vpack.c.b16 %v3793, %v3791
    %v4336 = vpack.c.b16 %v3794, %v3792
    %v4337 = vpack.c.b16 %v3797, %v3795
    %v4338 = vpack.c.b16 %v3798, %v3796
    %v4339 = vpack.c.b16 %v3801, %v3799
    %v4340 = vpack.c.b16 %v3802, %v3800
    %v4341 = vpack.c.b16 %v3805, %v3803
    %v4342 = vpack.c.b16 %v3806, %v3804
    %v4343 = vpack.c.b16 %v3809, %v3807
    %v4344 = vpack.c.b16 %v3810, %v3808
    %v4345 = vpack.c.b16 %v3813, %v3811
    %v4346 = vpack.c.b16 %v3814, %v3812
    %v4347 = vpack.c.b16 %v3817, %v3815
    %v4348 = vpack.c.b16 %v3818, %v3816
    %v4349 = vpack.c.b16 %v3821, %v3819
    %v4350 = vpack.c.b16 %v3822, %v3820
    %v4351 = vpack.c.b16 %v3825, %v3823
    %v4352 = vpack.c.b16 %v3826, %v3824
    %v4353 = vpack.c.b16 %v3829, %v3827
    %v4354 = vpack.c.b16 %v3830, %v3828
    %v4355 = vpack.c.b16 %v3833, %v3831
    %v4356 = vpack.c.b16 %v3834, %v3832
    %v4357 = vpack.c.b16 %v3837, %v3835
    %v4358 = vpack.c.b16 %v3838, %v3836
    %v4359 = vpack.c.b16 %v3841, %v3839
    %v4360 = vpack.c.b16 %v3842, %v3840
    %v4361 = vpack.c.b16 %v3845, %v3843
    %v4362 = vpack.c.b16 %v3846, %v3844
    %v4363 = vpack.c.b16 %v3849, %v3847
    %v4364 = vpack.c.b16 %v3850, %v3848
    %v4365 = vpack.c.b16 %v3853, %v3851
    %v4366 = vpack.c.b16 %v3854, %v3852
    %v4367 = vpack.c.b16 %v3857, %v3855
    %v4368 = vpack.c.b16 %v3858, %v3856
    %v4369 = vpack.c.b16 %v3861, %v3859
    %v4370 = vpack.c.b16 %v3862, %v3860
    %v4371 = vpack.c.b16 %v3865, %v3863
    %v4372 = vpack.c.b16 %v3866, %v3864
    %v4373 = vpack.c.b16 %v3869, %v3867
    %v4374 = vpack.c.b16 %v3870, %v3868
    %v4375 = vpack.c.b16 %v3873, %v3871
    %v4376 = vpack.c.b16 %v3874, %v3872
    %v4377 = vpack.c.b16 %v3877, %v3875
    %v4378 = vpack.c.b16 %v3878, %v3876
    %v4379 = vpack.c.b16 %v3881, %v3879
    %v4380 = vpack.c.b16 %v3882, %v3880
    %v4381 = vpack.c.b16 %v3885, %v3883
    %v4382 = vpack.c.b16 %v3886, %v3884
    %v4383 = vpack.c.b16 %v3889, %v3887
    %v4384 = vpack.c.b16 %v3890, %v3888
    %v4385 = vpack.c.b16 %v3893, %v3891
    %v4386 = vpack.c.b16 %v3894, %v3892
    %v4387 = vpack.c.b16 %v3897, %v3895
    %v4388 = vpack.c.b16 %v3898, %v3896
    %v4389 = vpack.c.b16 %v3901, %v3899
    %v4390 = vpack.c.b16 %v3902, %v3900
    %v4391 = vpack.c.b16 %v3905, %v3903
    %v4392 = vpack.c.b16 %v3906, %v3904
    %v4393 = vpack.c.b16 %v3909, %v3907
    %v4394 = vpack.c.b16 %v3910, %v3908
    %v4395 = vpack.c.b16 %v3913, %v3911
    %v4396 = vpack.c.b16 %v3914, %v3912
    %v4397 = vpack.c.b16 %v3917, %v3915
    %v4398 = vpack.c.b16 %v3918, %v3916
    %v4399 = vpack.c.b16 %v3921, %v3919
    %v4400 = vpack.c.b16 %v3922, %v3920
    %v4401 = vpack.c.b16 %v3925, %v3923
    %v4402 = vpack.c.b16 %v3926, %v3924
    %v4403 = vpack.c.b16 %v3929, %v3927
    %v4404 = vpack.c.b16 %v3930, %v3928
    %v4405 = vpack.c.b16 %v3933, %v3931
    %v4406 = vpack.c.b16 %v3934, %v3932
    %vm4879 = vcmask 523264
    %v4881 = vsel %vm4879, %v2040, 0
    %4883 = vmatpush.bf16.msra.mxu0 %v3949
    %4884 = vmatpush.bf16.msra.mxu0 %v3947
    %4885 = vmatpush.bf16.msra.mxu0 %v3945
    %4886 = vmatpush.bf16.msra.mxu0 %v3943
    %4887 = vmatpush.bf16.msra.mxu0 %v3941
    %4888 = vmatpush.bf16.msra.mxu0 %v3939
    %4889 = vmatpush.bf16.msra.mxu0 %v3937
    %4890 = vmatpush.bf16.msra.mxu0 %v3935
    %4891 = vmatmul.bf16.gmra.mxu0 %v2011
    %v4892 = vpop.f32.mrf.mxu0
    %v4893 = vadd.f32 %v2515, %v4892
    %v4894 = vpop.f32.mrf.mxu0
    %4895 = vdwg.mxu0
    %4896 = vmatpush.bf16.msra.mxu0 %v3965
    %4897 = vmatpush.bf16.msra.mxu0 %v3963
    %4898 = vmatpush.bf16.msra.mxu0 %v3961
    %4899 = vmatpush.bf16.msra.mxu0 %v3959
    %4900 = vmatpush.bf16.msra.mxu0 %v3957
    %4901 = vmatpush.bf16.msra.mxu0 %v3955
    %4902 = vmatpush.bf16.msra.mxu0 %v3953
    %4903 = vmatpush.bf16.msra.mxu0 %v3951
    %4904 = vmatmul.bf16.gmra.mxu0 %v2012
    %v4905 = vpop.f32.mrf.mxu0
    %v4906 = vadd.f32 %v4893, %v4905
    %v4907 = vpop.f32.mrf.mxu0
    %4908 = vdwg.mxu0
    %4909 = vmatpush.bf16.msra.mxu0 %v3981
    %4910 = vmatpush.bf16.msra.mxu0 %v3979
    %4911 = vmatpush.bf16.msra.mxu0 %v3977
    %4912 = vmatpush.bf16.msra.mxu0 %v3975
    %4913 = vmatpush.bf16.msra.mxu0 %v3973
    %4914 = vmatpush.bf16.msra.mxu0 %v3971
    %4915 = vmatpush.bf16.msra.mxu0 %v3969
    %4916 = vmatpush.bf16.msra.mxu0 %v3967
    %4917 = vmatmul.bf16.gmra.mxu0 %v2013
    %v4918 = vpop.f32.mrf.mxu0
    %v4919 = vadd.f32 %v4906, %v4918
    %v4920 = vpop.f32.mrf.mxu0
    %4921 = vdwg.mxu0
    %4922 = vmatpush.bf16.msra.mxu0 %v3997
    %4923 = vmatpush.bf16.msra.mxu0 %v3995
    %4924 = vmatpush.bf16.msra.mxu0 %v3993
    %4925 = vmatpush.bf16.msra.mxu0 %v3991
    %4926 = vmatpush.bf16.msra.mxu0 %v3989
    %4927 = vmatpush.bf16.msra.mxu0 %v3987
    %4928 = vmatpush.bf16.msra.mxu0 %v3985
    %4929 = vmatpush.bf16.msra.mxu0 %v3983
    %4930 = vmatmul.bf16.gmra.mxu0 %v2014
    %v4931 = vpop.f32.mrf.mxu0
    %v4932 = vadd.f32 %v4919, %v4931
    %v4933 = vpop.f32.mrf.mxu0
    %4934 = vdwg.mxu0
    %4935 = vmatpush.bf16.msra.mxu0 %v4013
    %4936 = vmatpush.bf16.msra.mxu0 %v4011
    %4937 = vmatpush.bf16.msra.mxu0 %v4009
    %4938 = vmatpush.bf16.msra.mxu0 %v4007
    %4939 = vmatpush.bf16.msra.mxu0 %v4005
    %4940 = vmatpush.bf16.msra.mxu0 %v4003
    %4941 = vmatpush.bf16.msra.mxu0 %v4001
    %4942 = vmatpush.bf16.msra.mxu0 %v3999
    %4943 = vmatmul.bf16.gmra.mxu0 %v2015
    %v4944 = vpop.f32.mrf.mxu0
    %v4945 = vadd.f32 %v4932, %v4944
    %v4946 = vpop.f32.mrf.mxu0
    %4947 = vdwg.mxu0
    %4948 = vmatpush.bf16.msra.mxu0 %v4029
    %4949 = vmatpush.bf16.msra.mxu0 %v4027
    %4950 = vmatpush.bf16.msra.mxu0 %v4025
    %4951 = vmatpush.bf16.msra.mxu0 %v4023
    %4952 = vmatpush.bf16.msra.mxu0 %v4021
    %4953 = vmatpush.bf16.msra.mxu0 %v4019
    %4954 = vmatpush.bf16.msra.mxu0 %v4017
    %4955 = vmatpush.bf16.msra.mxu0 %v4015
    %4956 = vmatmul.bf16.gmra.mxu0 %v2016
    %v4957 = vpop.f32.mrf.mxu0
    %v4958 = vadd.f32 %v4945, %v4957
    %v4959 = vpop.f32.mrf.mxu0
    %4960 = vdwg.mxu0
    %4961 = vmatpush.bf16.msra.mxu0 %v4045
    %4962 = vmatpush.bf16.msra.mxu0 %v4043
    %4963 = vmatpush.bf16.msra.mxu0 %v4041
    %4964 = vmatpush.bf16.msra.mxu0 %v4039
    %4965 = vmatpush.bf16.msra.mxu0 %v4037
    %4966 = vmatpush.bf16.msra.mxu0 %v4035
    %4967 = vmatpush.bf16.msra.mxu0 %v4033
    %4968 = vmatpush.bf16.msra.mxu0 %v4031
    %4969 = vmatmul.bf16.gmra.mxu0 %v2017
    %v4970 = vpop.f32.mrf.mxu0
    %v4971 = vadd.f32 %v4958, %v4970
    %v4972 = vpop.f32.mrf.mxu0
    %4973 = vdwg.mxu0
    %4974 = vmatpush.bf16.msra.mxu0 %v4061
    %4975 = vmatpush.bf16.msra.mxu0 %v4059
    %4976 = vmatpush.bf16.msra.mxu0 %v4057
    %4977 = vmatpush.bf16.msra.mxu0 %v4055
    %4978 = vmatpush.bf16.msra.mxu0 %v4053
    %4979 = vmatpush.bf16.msra.mxu0 %v4051
    %4980 = vmatpush.bf16.msra.mxu0 %v4049
    %4981 = vmatpush.bf16.msra.mxu0 %v4047
    %4982 = vmatmul.bf16.gmra.mxu0 %v2018
    %v4983 = vpop.f32.mrf.mxu0
    %v4984 = vadd.f32 %v4971, %v4983
    %v4985 = vpop.f32.mrf.mxu0
    %4986 = vdwg.mxu0
    %4987 = vmatpush.bf16.msra.mxu0 %v4077
    %4988 = vmatpush.bf16.msra.mxu0 %v4075
    %4989 = vmatpush.bf16.msra.mxu0 %v4073
    %4990 = vmatpush.bf16.msra.mxu0 %v4071
    %4991 = vmatpush.bf16.msra.mxu0 %v4069
    %4992 = vmatpush.bf16.msra.mxu0 %v4067
    %4993 = vmatpush.bf16.msra.mxu0 %v4065
    %4994 = vmatpush.bf16.msra.mxu0 %v4063
    %4995 = vmatmul.bf16.gmra.mxu0 %v2019
    %v4996 = vpop.f32.mrf.mxu0
    %v4997 = vadd.f32 %v4984, %v4996
    %v4998 = vpop.f32.mrf.mxu0
    %4999 = vdwg.mxu0
    %5000 = vmatpush.bf16.msra.mxu0 %v4093
    %5001 = vmatpush.bf16.msra.mxu0 %v4091
    %5002 = vmatpush.bf16.msra.mxu0 %v4089
    %5003 = vmatpush.bf16.msra.mxu0 %v4087
    %5004 = vmatpush.bf16.msra.mxu0 %v4085
    %5005 = vmatpush.bf16.msra.mxu0 %v4083
    %5006 = vmatpush.bf16.msra.mxu0 %v4081
    %5007 = vmatpush.bf16.msra.mxu0 %v4079
    %5008 = vmatmul.bf16.gmra.mxu0 %v2020
    %v5009 = vpop.f32.mrf.mxu0
    %v5010 = vadd.f32 %v4997, %v5009
    %v5011 = vpop.f32.mrf.mxu0
    %5012 = vdwg.mxu0
    %5013 = vmatpush.bf16.msra.mxu0 %v4109
    %5014 = vmatpush.bf16.msra.mxu0 %v4107
    %5015 = vmatpush.bf16.msra.mxu0 %v4105
    %5016 = vmatpush.bf16.msra.mxu0 %v4103
    %5017 = vmatpush.bf16.msra.mxu0 %v4101
    %5018 = vmatpush.bf16.msra.mxu0 %v4099
    %5019 = vmatpush.bf16.msra.mxu0 %v4097
    %5020 = vmatpush.bf16.msra.mxu0 %v4095
    %5021 = vmatmul.bf16.gmra.mxu0 %v2021
    %v5022 = vpop.f32.mrf.mxu0
    %v5023 = vadd.f32 %v5010, %v5022
    %v5024 = vpop.f32.mrf.mxu0
    %5025 = vdwg.mxu0
    %5026 = vmatpush.bf16.msra.mxu0 %v4125
    %5027 = vmatpush.bf16.msra.mxu0 %v4123
    %5028 = vmatpush.bf16.msra.mxu0 %v4121
    %5029 = vmatpush.bf16.msra.mxu0 %v4119
    %5030 = vmatpush.bf16.msra.mxu0 %v4117
    %5031 = vmatpush.bf16.msra.mxu0 %v4115
    %5032 = vmatpush.bf16.msra.mxu0 %v4113
    %5033 = vmatpush.bf16.msra.mxu0 %v4111
    %5034 = vmatmul.bf16.gmra.mxu0 %v2022
    %v5035 = vpop.f32.mrf.mxu0
    %v5036 = vadd.f32 %v5023, %v5035
    %v5037 = vpop.f32.mrf.mxu0
    %5038 = vdwg.mxu0
    %5039 = vmatpush.bf16.msra.mxu0 %v4141
    %5040 = vmatpush.bf16.msra.mxu0 %v4139
    %5041 = vmatpush.bf16.msra.mxu0 %v4137
    %5042 = vmatpush.bf16.msra.mxu0 %v4135
    %5043 = vmatpush.bf16.msra.mxu0 %v4133
    %5044 = vmatpush.bf16.msra.mxu0 %v4131
    %5045 = vmatpush.bf16.msra.mxu0 %v4129
    %5046 = vmatpush.bf16.msra.mxu0 %v4127
    %5047 = vmatmul.bf16.gmra.mxu0 %v2023
    %v5048 = vpop.f32.mrf.mxu0
    %v5049 = vadd.f32 %v5036, %v5048
    %v5050 = vpop.f32.mrf.mxu0
    %5051 = vdwg.mxu0
    %5052 = vmatpush.bf16.msra.mxu0 %v4157
    %5053 = vmatpush.bf16.msra.mxu0 %v4155
    %5054 = vmatpush.bf16.msra.mxu0 %v4153
    %5055 = vmatpush.bf16.msra.mxu0 %v4151
    %5056 = vmatpush.bf16.msra.mxu0 %v4149
    %5057 = vmatpush.bf16.msra.mxu0 %v4147
    %5058 = vmatpush.bf16.msra.mxu0 %v4145
    %5059 = vmatpush.bf16.msra.mxu0 %v4143
    %5060 = vmatmul.bf16.gmra.mxu0 %v2024
    %v5061 = vpop.f32.mrf.mxu0
    %v5062 = vadd.f32 %v5049, %v5061
    %v5063 = vpop.f32.mrf.mxu0
    %5064 = vdwg.mxu0
    %5065 = vmatpush.bf16.msra.mxu0 %v4173
    %5066 = vmatpush.bf16.msra.mxu0 %v4171
    %5067 = vmatpush.bf16.msra.mxu0 %v4169
    %5068 = vmatpush.bf16.msra.mxu0 %v4167
    %5069 = vmatpush.bf16.msra.mxu0 %v4165
    %5070 = vmatpush.bf16.msra.mxu0 %v4163
    %5071 = vmatpush.bf16.msra.mxu0 %v4161
    %5072 = vmatpush.bf16.msra.mxu0 %v4159
    %5073 = vmatmul.bf16.gmra.mxu0 %v2025
    %v5074 = vpop.f32.mrf.mxu0
    %v5075 = vadd.f32 %v5062, %v5074
    %v5076 = vpop.f32.mrf.mxu0
    %5077 = vdwg.mxu0
    %5078 = vmatpush.bf16.msra.mxu0 %v4189
    %5079 = vmatpush.bf16.msra.mxu0 %v4187
    %5080 = vmatpush.bf16.msra.mxu0 %v4185
    %5081 = vmatpush.bf16.msra.mxu0 %v4183
    %5082 = vmatpush.bf16.msra.mxu0 %v4181
    %5083 = vmatpush.bf16.msra.mxu0 %v4179
    %5084 = vmatpush.bf16.msra.mxu0 %v4177
    %5085 = vmatpush.bf16.msra.mxu0 %v4175
    %5086 = vmatmul.bf16.gmra.mxu0 %v2026
    %v5087 = vpop.f32.mrf.mxu0
    %v5088 = vadd.f32 %v5075, %v5087
    %v5089 = vpop.f32.mrf.mxu0
    %5090 = vdwg.mxu0
    %5091 = vmatpush.bf16.msra.mxu0 %v4205
    %5092 = vmatpush.bf16.msra.mxu0 %v4203
    %5093 = vmatpush.bf16.msra.mxu0 %v4201
    %5094 = vmatpush.bf16.msra.mxu0 %v4199
    %5095 = vmatpush.bf16.msra.mxu0 %v4197
    %5096 = vmatpush.bf16.msra.mxu0 %v4195
    %5097 = vmatpush.bf16.msra.mxu0 %v4193
    %5098 = vmatpush.bf16.msra.mxu0 %v4191
    %5099 = vmatmul.bf16.gmra.mxu0 %v2027
    %v5100 = vpop.f32.mrf.mxu0
    %v5101 = vadd.f32 %v5088, %v5100
    %v5102 = vpop.f32.mrf.mxu0
    %5103 = vdwg.mxu0
    %5104 = vmatpush.bf16.msra.mxu0 %v4221
    %5105 = vmatpush.bf16.msra.mxu0 %v4219
    %5106 = vmatpush.bf16.msra.mxu0 %v4217
    %5107 = vmatpush.bf16.msra.mxu0 %v4215
    %5108 = vmatpush.bf16.msra.mxu0 %v4213
    %5109 = vmatpush.bf16.msra.mxu0 %v4211
    %5110 = vmatpush.bf16.msra.mxu0 %v4209
    %5111 = vmatpush.bf16.msra.mxu0 %v4207
    %5112 = vmatmul.bf16.gmra.mxu0 %v2028
    %v5113 = vpop.f32.mrf.mxu0
    %v5114 = vadd.f32 %v5101, %v5113
    %v5115 = vpop.f32.mrf.mxu0
    %5116 = vdwg.mxu0
    %5117 = vmatpush.bf16.msra.mxu0 %v4237
    %5118 = vmatpush.bf16.msra.mxu0 %v4235
    %5119 = vmatpush.bf16.msra.mxu0 %v4233
    %5120 = vmatpush.bf16.msra.mxu0 %v4231
    %5121 = vmatpush.bf16.msra.mxu0 %v4229
    %5122 = vmatpush.bf16.msra.mxu0 %v4227
    %5123 = vmatpush.bf16.msra.mxu0 %v4225
    %5124 = vmatpush.bf16.msra.mxu0 %v4223
    %5125 = vmatmul.bf16.gmra.mxu0 %v2029
    %v5126 = vpop.f32.mrf.mxu0
    %v5127 = vadd.f32 %v5114, %v5126
    %v5128 = vpop.f32.mrf.mxu0
    %5129 = vdwg.mxu0
    %5130 = vmatpush.bf16.msra.mxu0 %v4253
    %5131 = vmatpush.bf16.msra.mxu0 %v4251
    %5132 = vmatpush.bf16.msra.mxu0 %v4249
    %5133 = vmatpush.bf16.msra.mxu0 %v4247
    %5134 = vmatpush.bf16.msra.mxu0 %v4245
    %5135 = vmatpush.bf16.msra.mxu0 %v4243
    %5136 = vmatpush.bf16.msra.mxu0 %v4241
    %5137 = vmatpush.bf16.msra.mxu0 %v4239
    %5138 = vmatmul.bf16.gmra.mxu0 %v2030
    %v5139 = vpop.f32.mrf.mxu0
    %v5140 = vadd.f32 %v5127, %v5139
    %v5141 = vpop.f32.mrf.mxu0
    %5142 = vdwg.mxu0
    %5143 = vmatpush.bf16.msra.mxu0 %v4269
    %5144 = vmatpush.bf16.msra.mxu0 %v4267
    %5145 = vmatpush.bf16.msra.mxu0 %v4265
    %5146 = vmatpush.bf16.msra.mxu0 %v4263
    %5147 = vmatpush.bf16.msra.mxu0 %v4261
    %5148 = vmatpush.bf16.msra.mxu0 %v4259
    %5149 = vmatpush.bf16.msra.mxu0 %v4257
    %5150 = vmatpush.bf16.msra.mxu0 %v4255
    %5151 = vmatmul.bf16.gmra.mxu0 %v2031
    %v5152 = vpop.f32.mrf.mxu0
    %v5153 = vadd.f32 %v5140, %v5152
    %v5154 = vpop.f32.mrf.mxu0
    %5155 = vdwg.mxu0
    %5156 = vmatpush.bf16.msra.mxu0 %v4285
    %5157 = vmatpush.bf16.msra.mxu0 %v4283
    %5158 = vmatpush.bf16.msra.mxu0 %v4281
    %5159 = vmatpush.bf16.msra.mxu0 %v4279
    %5160 = vmatpush.bf16.msra.mxu0 %v4277
    %5161 = vmatpush.bf16.msra.mxu0 %v4275
    %5162 = vmatpush.bf16.msra.mxu0 %v4273
    %5163 = vmatpush.bf16.msra.mxu0 %v4271
    %5164 = vmatmul.bf16.gmra.mxu0 %v2032
    %v5165 = vpop.f32.mrf.mxu0
    %v5166 = vadd.f32 %v5153, %v5165
    %v5167 = vpop.f32.mrf.mxu0
    %5168 = vdwg.mxu0
    %5169 = vmatpush.bf16.msra.mxu0 %v4301
    %5170 = vmatpush.bf16.msra.mxu0 %v4299
    %5171 = vmatpush.bf16.msra.mxu0 %v4297
    %5172 = vmatpush.bf16.msra.mxu0 %v4295
    %5173 = vmatpush.bf16.msra.mxu0 %v4293
    %5174 = vmatpush.bf16.msra.mxu0 %v4291
    %5175 = vmatpush.bf16.msra.mxu0 %v4289
    %5176 = vmatpush.bf16.msra.mxu0 %v4287
    %5177 = vmatmul.bf16.gmra.mxu0 %v2033
    %v5178 = vpop.f32.mrf.mxu0
    %v5179 = vadd.f32 %v5166, %v5178
    %v5180 = vpop.f32.mrf.mxu0
    %5181 = vdwg.mxu0
    %5182 = vmatpush.bf16.msra.mxu0 %v4317
    %5183 = vmatpush.bf16.msra.mxu0 %v4315
    %5184 = vmatpush.bf16.msra.mxu0 %v4313
    %5185 = vmatpush.bf16.msra.mxu0 %v4311
    %5186 = vmatpush.bf16.msra.mxu0 %v4309
    %5187 = vmatpush.bf16.msra.mxu0 %v4307
    %5188 = vmatpush.bf16.msra.mxu0 %v4305
    %5189 = vmatpush.bf16.msra.mxu0 %v4303
    %5190 = vmatmul.bf16.gmra.mxu0 %v2034
    %v5191 = vpop.f32.mrf.mxu0
    %v5192 = vadd.f32 %v5179, %v5191
    %v5193 = vpop.f32.mrf.mxu0
    %5194 = vdwg.mxu0
    %5195 = vmatpush.bf16.msra.mxu0 %v4333
    %5196 = vmatpush.bf16.msra.mxu0 %v4331
    %5197 = vmatpush.bf16.msra.mxu0 %v4329
    %5198 = vmatpush.bf16.msra.mxu0 %v4327
    %5199 = vmatpush.bf16.msra.mxu0 %v4325
    %5200 = vmatpush.bf16.msra.mxu0 %v4323
    %5201 = vmatpush.bf16.msra.mxu0 %v4321
    %5202 = vmatpush.bf16.msra.mxu0 %v4319
    %5203 = vmatmul.bf16.gmra.mxu0 %v2035
    %v5204 = vpop.f32.mrf.mxu0
    %v5205 = vadd.f32 %v5192, %v5204
    %v5206 = vpop.f32.mrf.mxu0
    %5207 = vdwg.mxu0
    %5208 = vmatpush.bf16.msra.mxu0 %v4349
    %5209 = vmatpush.bf16.msra.mxu0 %v4347
    %5210 = vmatpush.bf16.msra.mxu0 %v4345
    %5211 = vmatpush.bf16.msra.mxu0 %v4343
    %5212 = vmatpush.bf16.msra.mxu0 %v4341
    %5213 = vmatpush.bf16.msra.mxu0 %v4339
    %5214 = vmatpush.bf16.msra.mxu0 %v4337
    %5215 = vmatpush.bf16.msra.mxu0 %v4335
    %5216 = vmatmul.bf16.gmra.mxu0 %v2036
    %v5217 = vpop.f32.mrf.mxu0
    %v5218 = vadd.f32 %v5205, %v5217
    %v5219 = vpop.f32.mrf.mxu0
    %5220 = vdwg.mxu0
    %5221 = vmatpush.bf16.msra.mxu0 %v4365
    %5222 = vmatpush.bf16.msra.mxu0 %v4363
    %5223 = vmatpush.bf16.msra.mxu0 %v4361
    %5224 = vmatpush.bf16.msra.mxu0 %v4359
    %5225 = vmatpush.bf16.msra.mxu0 %v4357
    %5226 = vmatpush.bf16.msra.mxu0 %v4355
    %5227 = vmatpush.bf16.msra.mxu0 %v4353
    %5228 = vmatpush.bf16.msra.mxu0 %v4351
    %5229 = vmatmul.bf16.gmra.mxu0 %v2037
    %v5230 = vpop.f32.mrf.mxu0
    %v5231 = vadd.f32 %v5218, %v5230
    %v5232 = vpop.f32.mrf.mxu0
    %5233 = vdwg.mxu0
    %5234 = vmatpush.bf16.msra.mxu0 %v4381
    %5235 = vmatpush.bf16.msra.mxu0 %v4379
    %5236 = vmatpush.bf16.msra.mxu0 %v4377
    %5237 = vmatpush.bf16.msra.mxu0 %v4375
    %5238 = vmatpush.bf16.msra.mxu0 %v4373
    %5239 = vmatpush.bf16.msra.mxu0 %v4371
    %5240 = vmatpush.bf16.msra.mxu0 %v4369
    %5241 = vmatpush.bf16.msra.mxu0 %v4367
    %5242 = vmatmul.bf16.gmra.mxu0 %v2038
    %v5243 = vpop.f32.mrf.mxu0
    %v5244 = vadd.f32 %v5231, %v5243
    %v5245 = vpop.f32.mrf.mxu0
    %5246 = vdwg.mxu0
    %5247 = vmatpush.bf16.msra.mxu0 %v4397
    %5248 = vmatpush.bf16.msra.mxu0 %v4395
    %5249 = vmatpush.bf16.msra.mxu0 %v4393
    %5250 = vmatpush.bf16.msra.mxu0 %v4391
    %5251 = vmatpush.bf16.msra.mxu0 %v4389
    %5252 = vmatpush.bf16.msra.mxu0 %v4387
    %5253 = vmatpush.bf16.msra.mxu0 %v4385
    %5254 = vmatpush.bf16.msra.mxu0 %v4383
    %5255 = vmatmul.bf16.gmra.mxu0 %v2039
    %v5256 = vpop.f32.mrf.mxu0
    %v5257 = vadd.f32 %v5244, %v5256
    %v5258 = vpop.f32.mrf.mxu0
    %5259 = vdwg.mxu0
    %5260 = vmatpush.bf16.msra.mxu0 0
    %5261 = vmatpush.bf16.msra.mxu0 0
    %5262 = vmatpush.bf16.msra.mxu0 0
    %5263 = vmatpush.bf16.msra.mxu0 0
    %5264 = vmatpush.bf16.msra.mxu0 %v4405
    %5265 = vmatpush.bf16.msra.mxu0 %v4403
    %5266 = vmatpush.bf16.msra.mxu0 %v4401
    %5267 = vmatpush.bf16.msra.mxu0 %v4399
    %5268 = vmatmul.bf16.gmra.mxu0 %v4881
    %v5269 = vpop.f32.mrf.mxu0
    %v5270 = vadd.f32 %v5257, %v5269
    %v5271 = vpop.f32.mrf.mxu0
    %5272 = vdwg.mxu0
    %5273 = vmatpush.bf16.msra.mxu0 %v3950
    %5274 = vmatpush.bf16.msra.mxu0 %v3948
    %5275 = vmatpush.bf16.msra.mxu0 %v3946
    %5276 = vmatpush.bf16.msra.mxu0 %v3944
    %5277 = vmatpush.bf16.msra.mxu0 %v3942
    %5278 = vmatpush.bf16.msra.mxu0 %v3940
    %5279 = vmatpush.bf16.msra.mxu0 %v3938
    %5280 = vmatpush.bf16.msra.mxu0 %v3936
    %5281 = vmatmul.bf16.gmra.mxu0 %v2011
    %v5282 = vpop.f32.mrf.mxu0
    %v5283 = vadd.f32 %v2516, %v5282
    %v5284 = vpop.f32.mrf.mxu0
    %5285 = vdwg.mxu0
    %5286 = vmatpush.bf16.msra.mxu0 %v3966
    %5287 = vmatpush.bf16.msra.mxu0 %v3964
    %5288 = vmatpush.bf16.msra.mxu0 %v3962
    %5289 = vmatpush.bf16.msra.mxu0 %v3960
    %5290 = vmatpush.bf16.msra.mxu0 %v3958
    %5291 = vmatpush.bf16.msra.mxu0 %v3956
    %5292 = vmatpush.bf16.msra.mxu0 %v3954
    %5293 = vmatpush.bf16.msra.mxu0 %v3952
    %5294 = vmatmul.bf16.gmra.mxu0 %v2012
    %v5295 = vpop.f32.mrf.mxu0
    %v5296 = vadd.f32 %v5283, %v5295
    %v5297 = vpop.f32.mrf.mxu0
    %5298 = vdwg.mxu0
    %5299 = vmatpush.bf16.msra.mxu0 %v3982
    %5300 = vmatpush.bf16.msra.mxu0 %v3980
    %5301 = vmatpush.bf16.msra.mxu0 %v3978
    %5302 = vmatpush.bf16.msra.mxu0 %v3976
    %5303 = vmatpush.bf16.msra.mxu0 %v3974
    %5304 = vmatpush.bf16.msra.mxu0 %v3972
    %5305 = vmatpush.bf16.msra.mxu0 %v3970
    %5306 = vmatpush.bf16.msra.mxu0 %v3968
    %5307 = vmatmul.bf16.gmra.mxu0 %v2013
    %v5308 = vpop.f32.mrf.mxu0
    %v5309 = vadd.f32 %v5296, %v5308
    %v5310 = vpop.f32.mrf.mxu0
    %5311 = vdwg.mxu0
    %5312 = vmatpush.bf16.msra.mxu0 %v3998
    %5313 = vmatpush.bf16.msra.mxu0 %v3996
    %5314 = vmatpush.bf16.msra.mxu0 %v3994
    %5315 = vmatpush.bf16.msra.mxu0 %v3992
    %5316 = vmatpush.bf16.msra.mxu0 %v3990
    %5317 = vmatpush.bf16.msra.mxu0 %v3988
    %5318 = vmatpush.bf16.msra.mxu0 %v3986
    %5319 = vmatpush.bf16.msra.mxu0 %v3984
    %5320 = vmatmul.bf16.gmra.mxu0 %v2014
    %v5321 = vpop.f32.mrf.mxu0
    %v5322 = vadd.f32 %v5309, %v5321
    %v5323 = vpop.f32.mrf.mxu0
    %5324 = vdwg.mxu0
    %5325 = vmatpush.bf16.msra.mxu0 %v4014
    %5326 = vmatpush.bf16.msra.mxu0 %v4012
    %5327 = vmatpush.bf16.msra.mxu0 %v4010
    %5328 = vmatpush.bf16.msra.mxu0 %v4008
    %5329 = vmatpush.bf16.msra.mxu0 %v4006
    %5330 = vmatpush.bf16.msra.mxu0 %v4004
    %5331 = vmatpush.bf16.msra.mxu0 %v4002
    %5332 = vmatpush.bf16.msra.mxu0 %v4000
    %5333 = vmatmul.bf16.gmra.mxu0 %v2015
    %v5334 = vpop.f32.mrf.mxu0
    %v5335 = vadd.f32 %v5322, %v5334
    %v5336 = vpop.f32.mrf.mxu0
    %5337 = vdwg.mxu0
    %5338 = vmatpush.bf16.msra.mxu0 %v4030
    %5339 = vmatpush.bf16.msra.mxu0 %v4028
    %5340 = vmatpush.bf16.msra.mxu0 %v4026
    %5341 = vmatpush.bf16.msra.mxu0 %v4024
    %5342 = vmatpush.bf16.msra.mxu0 %v4022
    %5343 = vmatpush.bf16.msra.mxu0 %v4020
    %5344 = vmatpush.bf16.msra.mxu0 %v4018
    %5345 = vmatpush.bf16.msra.mxu0 %v4016
    %5346 = vmatmul.bf16.gmra.mxu0 %v2016
    %v5347 = vpop.f32.mrf.mxu0
    %v5348 = vadd.f32 %v5335, %v5347
    %v5349 = vpop.f32.mrf.mxu0
    %5350 = vdwg.mxu0
    %5351 = vmatpush.bf16.msra.mxu0 %v4046
    %5352 = vmatpush.bf16.msra.mxu0 %v4044
    %5353 = vmatpush.bf16.msra.mxu0 %v4042
    %5354 = vmatpush.bf16.msra.mxu0 %v4040
    %5355 = vmatpush.bf16.msra.mxu0 %v4038
    %5356 = vmatpush.bf16.msra.mxu0 %v4036
    %5357 = vmatpush.bf16.msra.mxu0 %v4034
    %5358 = vmatpush.bf16.msra.mxu0 %v4032
    %5359 = vmatmul.bf16.gmra.mxu0 %v2017
    %v5360 = vpop.f32.mrf.mxu0
    %v5361 = vadd.f32 %v5348, %v5360
    %v5362 = vpop.f32.mrf.mxu0
    %5363 = vdwg.mxu0
    %5364 = vmatpush.bf16.msra.mxu0 %v4062
    %5365 = vmatpush.bf16.msra.mxu0 %v4060
    %5366 = vmatpush.bf16.msra.mxu0 %v4058
    %5367 = vmatpush.bf16.msra.mxu0 %v4056
    %5368 = vmatpush.bf16.msra.mxu0 %v4054
    %5369 = vmatpush.bf16.msra.mxu0 %v4052
    %5370 = vmatpush.bf16.msra.mxu0 %v4050
    %5371 = vmatpush.bf16.msra.mxu0 %v4048
    %5372 = vmatmul.bf16.gmra.mxu0 %v2018
    %v5373 = vpop.f32.mrf.mxu0
    %v5374 = vadd.f32 %v5361, %v5373
    %v5375 = vpop.f32.mrf.mxu0
    %5376 = vdwg.mxu0
    %5377 = vmatpush.bf16.msra.mxu0 %v4078
    %5378 = vmatpush.bf16.msra.mxu0 %v4076
    %5379 = vmatpush.bf16.msra.mxu0 %v4074
    %5380 = vmatpush.bf16.msra.mxu0 %v4072
    %5381 = vmatpush.bf16.msra.mxu0 %v4070
    %5382 = vmatpush.bf16.msra.mxu0 %v4068
    %5383 = vmatpush.bf16.msra.mxu0 %v4066
    %5384 = vmatpush.bf16.msra.mxu0 %v4064
    %5385 = vmatmul.bf16.gmra.mxu0 %v2019
    %v5386 = vpop.f32.mrf.mxu0
    %v5387 = vadd.f32 %v5374, %v5386
    %v5388 = vpop.f32.mrf.mxu0
    %5389 = vdwg.mxu0
    %5390 = vmatpush.bf16.msra.mxu0 %v4094
    %5391 = vmatpush.bf16.msra.mxu0 %v4092
    %5392 = vmatpush.bf16.msra.mxu0 %v4090
    %5393 = vmatpush.bf16.msra.mxu0 %v4088
    %5394 = vmatpush.bf16.msra.mxu0 %v4086
    %5395 = vmatpush.bf16.msra.mxu0 %v4084
    %5396 = vmatpush.bf16.msra.mxu0 %v4082
    %5397 = vmatpush.bf16.msra.mxu0 %v4080
    %5398 = vmatmul.bf16.gmra.mxu0 %v2020
    %v5399 = vpop.f32.mrf.mxu0
    %v5400 = vadd.f32 %v5387, %v5399
    %v5401 = vpop.f32.mrf.mxu0
    %5402 = vdwg.mxu0
    %5403 = vmatpush.bf16.msra.mxu0 %v4110
    %5404 = vmatpush.bf16.msra.mxu0 %v4108
    %5405 = vmatpush.bf16.msra.mxu0 %v4106
    %5406 = vmatpush.bf16.msra.mxu0 %v4104
    %5407 = vmatpush.bf16.msra.mxu0 %v4102
    %5408 = vmatpush.bf16.msra.mxu0 %v4100
    %5409 = vmatpush.bf16.msra.mxu0 %v4098
    %5410 = vmatpush.bf16.msra.mxu0 %v4096
    %5411 = vmatmul.bf16.gmra.mxu0 %v2021
    %v5412 = vpop.f32.mrf.mxu0
    %v5413 = vadd.f32 %v5400, %v5412
    %v5414 = vpop.f32.mrf.mxu0
    %5415 = vdwg.mxu0
    %5416 = vmatpush.bf16.msra.mxu0 %v4126
    %5417 = vmatpush.bf16.msra.mxu0 %v4124
    %5418 = vmatpush.bf16.msra.mxu0 %v4122
    %5419 = vmatpush.bf16.msra.mxu0 %v4120
    %5420 = vmatpush.bf16.msra.mxu0 %v4118
    %5421 = vmatpush.bf16.msra.mxu0 %v4116
    %5422 = vmatpush.bf16.msra.mxu0 %v4114
    %5423 = vmatpush.bf16.msra.mxu0 %v4112
    %5424 = vmatmul.bf16.gmra.mxu0 %v2022
    %v5425 = vpop.f32.mrf.mxu0
    %v5426 = vadd.f32 %v5413, %v5425
    %v5427 = vpop.f32.mrf.mxu0
    %5428 = vdwg.mxu0
    %5429 = vmatpush.bf16.msra.mxu0 %v4142
    %5430 = vmatpush.bf16.msra.mxu0 %v4140
    %5431 = vmatpush.bf16.msra.mxu0 %v4138
    %5432 = vmatpush.bf16.msra.mxu0 %v4136
    %5433 = vmatpush.bf16.msra.mxu0 %v4134
    %5434 = vmatpush.bf16.msra.mxu0 %v4132
    %5435 = vmatpush.bf16.msra.mxu0 %v4130
    %5436 = vmatpush.bf16.msra.mxu0 %v4128
    %5437 = vmatmul.bf16.gmra.mxu0 %v2023
    %v5438 = vpop.f32.mrf.mxu0
    %v5439 = vadd.f32 %v5426, %v5438
    %v5440 = vpop.f32.mrf.mxu0
    %5441 = vdwg.mxu0
    %5442 = vmatpush.bf16.msra.mxu0 %v4158
    %5443 = vmatpush.bf16.msra.mxu0 %v4156
    %5444 = vmatpush.bf16.msra.mxu0 %v4154
    %5445 = vmatpush.bf16.msra.mxu0 %v4152
    %5446 = vmatpush.bf16.msra.mxu0 %v4150
    %5447 = vmatpush.bf16.msra.mxu0 %v4148
    %5448 = vmatpush.bf16.msra.mxu0 %v4146
    %5449 = vmatpush.bf16.msra.mxu0 %v4144
    %5450 = vmatmul.bf16.gmra.mxu0 %v2024
    %v5451 = vpop.f32.mrf.mxu0
    %v5452 = vadd.f32 %v5439, %v5451
    %v5453 = vpop.f32.mrf.mxu0
    %5454 = vdwg.mxu0
    %5455 = vmatpush.bf16.msra.mxu0 %v4174
    %5456 = vmatpush.bf16.msra.mxu0 %v4172
    %5457 = vmatpush.bf16.msra.mxu0 %v4170
    %5458 = vmatpush.bf16.msra.mxu0 %v4168
    %5459 = vmatpush.bf16.msra.mxu0 %v4166
    %5460 = vmatpush.bf16.msra.mxu0 %v4164
    %5461 = vmatpush.bf16.msra.mxu0 %v4162
    %5462 = vmatpush.bf16.msra.mxu0 %v4160
    %5463 = vmatmul.bf16.gmra.mxu0 %v2025
    %v5464 = vpop.f32.mrf.mxu0
    %v5465 = vadd.f32 %v5452, %v5464
    %v5466 = vpop.f32.mrf.mxu0
    %5467 = vdwg.mxu0
    %5468 = vmatpush.bf16.msra.mxu0 %v4190
    %5469 = vmatpush.bf16.msra.mxu0 %v4188
    %5470 = vmatpush.bf16.msra.mxu0 %v4186
    %5471 = vmatpush.bf16.msra.mxu0 %v4184
    %5472 = vmatpush.bf16.msra.mxu0 %v4182
    %5473 = vmatpush.bf16.msra.mxu0 %v4180
    %5474 = vmatpush.bf16.msra.mxu0 %v4178
    %5475 = vmatpush.bf16.msra.mxu0 %v4176
    %5476 = vmatmul.bf16.gmra.mxu0 %v2026
    %v5477 = vpop.f32.mrf.mxu0
    %v5478 = vadd.f32 %v5465, %v5477
    %v5479 = vpop.f32.mrf.mxu0
    %5480 = vdwg.mxu0
    %5481 = vmatpush.bf16.msra.mxu0 %v4206
    %5482 = vmatpush.bf16.msra.mxu0 %v4204
    %5483 = vmatpush.bf16.msra.mxu0 %v4202
    %5484 = vmatpush.bf16.msra.mxu0 %v4200
    %5485 = vmatpush.bf16.msra.mxu0 %v4198
    %5486 = vmatpush.bf16.msra.mxu0 %v4196
    %5487 = vmatpush.bf16.msra.mxu0 %v4194
    %5488 = vmatpush.bf16.msra.mxu0 %v4192
    %5489 = vmatmul.bf16.gmra.mxu0 %v2027
    %v5490 = vpop.f32.mrf.mxu0
    %v5491 = vadd.f32 %v5478, %v5490
    %v5492 = vpop.f32.mrf.mxu0
    %5493 = vdwg.mxu0
    %5494 = vmatpush.bf16.msra.mxu0 %v4222
    %5495 = vmatpush.bf16.msra.mxu0 %v4220
    %5496 = vmatpush.bf16.msra.mxu0 %v4218
    %5497 = vmatpush.bf16.msra.mxu0 %v4216
    %5498 = vmatpush.bf16.msra.mxu0 %v4214
    %5499 = vmatpush.bf16.msra.mxu0 %v4212
    %5500 = vmatpush.bf16.msra.mxu0 %v4210
    %5501 = vmatpush.bf16.msra.mxu0 %v4208
    %5502 = vmatmul.bf16.gmra.mxu0 %v2028
    %v5503 = vpop.f32.mrf.mxu0
    %v5504 = vadd.f32 %v5491, %v5503
    %v5505 = vpop.f32.mrf.mxu0
    %5506 = vdwg.mxu0
    %5507 = vmatpush.bf16.msra.mxu0 %v4238
    %5508 = vmatpush.bf16.msra.mxu0 %v4236
    %5509 = vmatpush.bf16.msra.mxu0 %v4234
    %5510 = vmatpush.bf16.msra.mxu0 %v4232
    %5511 = vmatpush.bf16.msra.mxu0 %v4230
    %5512 = vmatpush.bf16.msra.mxu0 %v4228
    %5513 = vmatpush.bf16.msra.mxu0 %v4226
    %5514 = vmatpush.bf16.msra.mxu0 %v4224
    %5515 = vmatmul.bf16.gmra.mxu0 %v2029
    %v5516 = vpop.f32.mrf.mxu0
    %v5517 = vadd.f32 %v5504, %v5516
    %v5518 = vpop.f32.mrf.mxu0
    %5519 = vdwg.mxu0
    %5520 = vmatpush.bf16.msra.mxu0 %v4254
    %5521 = vmatpush.bf16.msra.mxu0 %v4252
    %5522 = vmatpush.bf16.msra.mxu0 %v4250
    %5523 = vmatpush.bf16.msra.mxu0 %v4248
    %5524 = vmatpush.bf16.msra.mxu0 %v4246
    %5525 = vmatpush.bf16.msra.mxu0 %v4244
    %5526 = vmatpush.bf16.msra.mxu0 %v4242
    %5527 = vmatpush.bf16.msra.mxu0 %v4240
    %5528 = vmatmul.bf16.gmra.mxu0 %v2030
    %v5529 = vpop.f32.mrf.mxu0
    %v5530 = vadd.f32 %v5517, %v5529
    %v5531 = vpop.f32.mrf.mxu0
    %5532 = vdwg.mxu0
    %5533 = vmatpush.bf16.msra.mxu0 %v4270
    %5534 = vmatpush.bf16.msra.mxu0 %v4268
    %5535 = vmatpush.bf16.msra.mxu0 %v4266
    %5536 = vmatpush.bf16.msra.mxu0 %v4264
    %5537 = vmatpush.bf16.msra.mxu0 %v4262
    %5538 = vmatpush.bf16.msra.mxu0 %v4260
    %5539 = vmatpush.bf16.msra.mxu0 %v4258
    %5540 = vmatpush.bf16.msra.mxu0 %v4256
    %5541 = vmatmul.bf16.gmra.mxu0 %v2031
    %v5542 = vpop.f32.mrf.mxu0
    %v5543 = vadd.f32 %v5530, %v5542
    %v5544 = vpop.f32.mrf.mxu0
    %5545 = vdwg.mxu0
    %5546 = vmatpush.bf16.msra.mxu0 %v4286
    %5547 = vmatpush.bf16.msra.mxu0 %v4284
    %5548 = vmatpush.bf16.msra.mxu0 %v4282
    %5549 = vmatpush.bf16.msra.mxu0 %v4280
    %5550 = vmatpush.bf16.msra.mxu0 %v4278
    %5551 = vmatpush.bf16.msra.mxu0 %v4276
    %5552 = vmatpush.bf16.msra.mxu0 %v4274
    %5553 = vmatpush.bf16.msra.mxu0 %v4272
    %5554 = vmatmul.bf16.gmra.mxu0 %v2032
    %v5555 = vpop.f32.mrf.mxu0
    %v5556 = vadd.f32 %v5543, %v5555
    %v5557 = vpop.f32.mrf.mxu0
    %5558 = vdwg.mxu0
    %5559 = vmatpush.bf16.msra.mxu0 %v4302
    %5560 = vmatpush.bf16.msra.mxu0 %v4300
    %5561 = vmatpush.bf16.msra.mxu0 %v4298
    %5562 = vmatpush.bf16.msra.mxu0 %v4296
    %5563 = vmatpush.bf16.msra.mxu0 %v4294
    %5564 = vmatpush.bf16.msra.mxu0 %v4292
    %5565 = vmatpush.bf16.msra.mxu0 %v4290
    %5566 = vmatpush.bf16.msra.mxu0 %v4288
    %5567 = vmatmul.bf16.gmra.mxu0 %v2033
    %v5568 = vpop.f32.mrf.mxu0
    %v5569 = vadd.f32 %v5556, %v5568
    %v5570 = vpop.f32.mrf.mxu0
    %5571 = vdwg.mxu0
    %5572 = vmatpush.bf16.msra.mxu0 %v4318
    %5573 = vmatpush.bf16.msra.mxu0 %v4316
    %5574 = vmatpush.bf16.msra.mxu0 %v4314
    %5575 = vmatpush.bf16.msra.mxu0 %v4312
    %5576 = vmatpush.bf16.msra.mxu0 %v4310
    %5577 = vmatpush.bf16.msra.mxu0 %v4308
    %5578 = vmatpush.bf16.msra.mxu0 %v4306
    %5579 = vmatpush.bf16.msra.mxu0 %v4304
    %5580 = vmatmul.bf16.gmra.mxu0 %v2034
    %v5581 = vpop.f32.mrf.mxu0
    %v5582 = vadd.f32 %v5569, %v5581
    %v5583 = vpop.f32.mrf.mxu0
    %5584 = vdwg.mxu0
    %5585 = vmatpush.bf16.msra.mxu0 %v4334
    %5586 = vmatpush.bf16.msra.mxu0 %v4332
    %5587 = vmatpush.bf16.msra.mxu0 %v4330
    %5588 = vmatpush.bf16.msra.mxu0 %v4328
    %5589 = vmatpush.bf16.msra.mxu0 %v4326
    %5590 = vmatpush.bf16.msra.mxu0 %v4324
    %5591 = vmatpush.bf16.msra.mxu0 %v4322
    %5592 = vmatpush.bf16.msra.mxu0 %v4320
    %5593 = vmatmul.bf16.gmra.mxu0 %v2035
    %v5594 = vpop.f32.mrf.mxu0
    %v5595 = vadd.f32 %v5582, %v5594
    %v5596 = vpop.f32.mrf.mxu0
    %5597 = vdwg.mxu0
    %5598 = vmatpush.bf16.msra.mxu0 %v4350
    %5599 = vmatpush.bf16.msra.mxu0 %v4348
    %5600 = vmatpush.bf16.msra.mxu0 %v4346
    %5601 = vmatpush.bf16.msra.mxu0 %v4344
    %5602 = vmatpush.bf16.msra.mxu0 %v4342
    %5603 = vmatpush.bf16.msra.mxu0 %v4340
    %5604 = vmatpush.bf16.msra.mxu0 %v4338
    %5605 = vmatpush.bf16.msra.mxu0 %v4336
    %5606 = vmatmul.bf16.gmra.mxu0 %v2036
    %v5607 = vpop.f32.mrf.mxu0
    %v5608 = vadd.f32 %v5595, %v5607
    %v5609 = vpop.f32.mrf.mxu0
    %5610 = vdwg.mxu0
    %5611 = vmatpush.bf16.msra.mxu0 %v4366
    %5612 = vmatpush.bf16.msra.mxu0 %v4364
    %5613 = vmatpush.bf16.msra.mxu0 %v4362
    %5614 = vmatpush.bf16.msra.mxu0 %v4360
    %5615 = vmatpush.bf16.msra.mxu0 %v4358
    %5616 = vmatpush.bf16.msra.mxu0 %v4356
    %5617 = vmatpush.bf16.msra.mxu0 %v4354
    %5618 = vmatpush.bf16.msra.mxu0 %v4352
    %5619 = vmatmul.bf16.gmra.mxu0 %v2037
    %v5620 = vpop.f32.mrf.mxu0
    %v5621 = vadd.f32 %v5608, %v5620
    %v5622 = vpop.f32.mrf.mxu0
    %5623 = vdwg.mxu0
    %5624 = vmatpush.bf16.msra.mxu0 %v4382
    %5625 = vmatpush.bf16.msra.mxu0 %v4380
    %5626 = vmatpush.bf16.msra.mxu0 %v4378
    %5627 = vmatpush.bf16.msra.mxu0 %v4376
    %5628 = vmatpush.bf16.msra.mxu0 %v4374
    %5629 = vmatpush.bf16.msra.mxu0 %v4372
    %5630 = vmatpush.bf16.msra.mxu0 %v4370
    %5631 = vmatpush.bf16.msra.mxu0 %v4368
    %5632 = vmatmul.bf16.gmra.mxu0 %v2038
    %v5633 = vpop.f32.mrf.mxu0
    %v5634 = vadd.f32 %v5621, %v5633
    %v5635 = vpop.f32.mrf.mxu0
    %5636 = vdwg.mxu0
    %5637 = vmatpush.bf16.msra.mxu0 %v4398
    %5638 = vmatpush.bf16.msra.mxu0 %v4396
    %5639 = vmatpush.bf16.msra.mxu0 %v4394
    %5640 = vmatpush.bf16.msra.mxu0 %v4392
    %5641 = vmatpush.bf16.msra.mxu0 %v4390
    %5642 = vmatpush.bf16.msra.mxu0 %v4388
    %5643 = vmatpush.bf16.msra.mxu0 %v4386
    %5644 = vmatpush.bf16.msra.mxu0 %v4384
    %5645 = vmatmul.bf16.gmra.mxu0 %v2039
    %v5646 = vpop.f32.mrf.mxu0
    %v5647 = vadd.f32 %v5634, %v5646
    %v5648 = vpop.f32.mrf.mxu0
    %5649 = vdwg.mxu0
    %5650 = vmatpush.bf16.msra.mxu0 0
    %5651 = vmatpush.bf16.msra.mxu0 0
    %5652 = vmatpush.bf16.msra.mxu0 0
    %5653 = vmatpush.bf16.msra.mxu0 0
    %5654 = vmatpush.bf16.msra.mxu0 %v4406
    %5655 = vmatpush.bf16.msra.mxu0 %v4404
    %5656 = vmatpush.bf16.msra.mxu0 %v4402
    %5657 = vmatpush.bf16.msra.mxu0 %v4400
    %5658 = vmatmul.bf16.gmra.mxu0 %v4881
    %v5659 = vpop.f32.mrf.mxu0
    %v5660 = vadd.f32 %v5647, %v5659
    %v5661 = vpop.f32.mrf.mxu0
    %5662 = vdwg.mxu0
    %vm5663 = vcmp.gt.f32.partialorder %v5270, 0.0
    %vm5664 = vcmp.gt.f32.partialorder %v5660, 0.0
    %v5665 = vmul.f32 %v5270, 0.2
    %v5666 = vmul.f32 %v5660, 0.2
    %v5667 = vsel %vm5663, %v5270, %v5665
    %v5668 = vsel %vm5664, %v5660, %v5666
    %v5669 = vld [vmem:[#allocation15] sm:$0x3]
    %v5671 = vperm.slane %v5669, 0
    %v5672 = vperm.slane %v5669, 1
    %v5675 = vmul.f32 %v5667, %v5671
    %v5676 = vmul.f32 %v5668, %v5672
    %v5677 = vsel %vm1415, %v5675, 0.0
    %v5678 = vsel %vm1415, %v5676, 0.0
    %v5679 = vadd.f32 %v5677, %v5678
    %5680 = vadd.xlane.f32.xlu0 %v5679
    %v5681 = vpop.xlane.xlu0 %5680
    %v5682 = vld [vmem:[#allocation4] sm:$0x1]
    %v5684 = vperm.slane %v5682, 0
    %v5686 = vadd.f32 %v5681, %v5684
    %v5687 = vsub.f32 0.0, %v5686
    %v5688 = vmul.f32 %v5687, 1.442695
    %v5689 = vpow.pop %v5688
    %v5690 = vadd.f32 %v5689, 1.0
    %v5691 = vrcp.pop %v5690
    %v5692 = vmul.f32 %v5690, %v5691
    %v5693 = vsub.f32 1.0, %v5692
    %v5694 = vmul.f32 %v5691, %v5693
    %v5695 = vadd.f32 %v5691, %v5694
    %vm5696 = vweird.f32 %v5690
    %vm5697 = vweird.f32 %v5691
    %vm5698 = vmor %vm5696, %vm5697
    %v5699 = vsel %vm5698, %v5691, %v5695
    %v5700 = vand.u32 2147483647, %v5690
    %vm5701 = vcmp.eq.f32.partialorder %v5700, 8.507059e+37
    %v5702 = vand.u32 %v5690, 2147483648
    %v5703 = vor.u32 1.1754944e-38, %v5702
    %v5704 = vsel %vm5701, %v5703, %v5699
    %v5705 = vmul.f32 1.0, %v5704
    %vm5706 = vcmask 1024
    %5707 = vst.msk [vmem:[%s12] sm:$0x3] %vm5706, %v5705
    // Predicated region
    $region78: #{convolution_d_forward.1} parent=1 // pred_check
      _
    $region79: #{convolution_d_forward.1} parent=1 // pred_check_branch
      %5709 = sbr.rel (0) target = $region81
    $region80: #{convolution_d_forward.1} parent=1 // pred_region
      _
    $region81: #{convolution_d_forward.1} parent=1 // pred_fallthru
      _
    // Predicated region
    $region82: #{convolution_d_forward.1} parent=1 // pred_check
      _
    $region83: #{convolution_d_forward.1} parent=1 // pred_check_branch
      %5711 = sbr.rel (0) target = $region85
    $region84: #{convolution_d_forward.1} parent=1 // pred_region
      _
    $region85: #{convolution_d_forward.1} parent=1 // pred_fallthru
      _
    %5712 = vsyncpa [#allocation6], 1
    %5713 = vsyncpa [#allocation8], 1
    %5714 = vsyncpa [#allocation11], 1
    %5715 = vsyncpa [#allocation14], 1

</llo_original>
